<compile_context>
chip_gen: v7x
topology: tpu7x:2x2x1
jax: 0.10.0
libtpu: 0.0.40
codegen_flags: <defaults>
</compile_context>

<pallas_src>
import jax
import jax.numpy as jnp
from jax.experimental import pallas as pl
from jax.experimental.pallas import tpu as pltpu

NEG_SLOPE = 0.01  # nn.LeakyReLU default


def _leaky_relu(y):
    # single vmul + vmax per vreg (NEG_SLOPE < 1 so this equals the where() form)
    return jnp.maximum(y, NEG_SLOPE * y)


def _round_up(x, m):
    return ((x + m - 1) // m) * m


def _choose_tb(batch):
    """Batch-tile size: multiple of 16 (bf16 LHS tile), capped at 256, split
    into >=2 grid steps when the batch is big enough (v7x has 2 TCs/chip)."""
    if batch <= 16:
        return _round_up(max(batch, 8), 8)
    tb = min(256, _round_up(batch, 16))
    if pl.cdiv(batch, tb) < 2:
        tb = max(16, _round_up(pl.cdiv(batch, 2), 16))
    return tb


def _server_resnet_kernel(x1_ref, x2_ref, w1_ref, w2_ref, w3_ref, w4_ref,
                          w5_ref, w6_ref, b_ref, out5_ref, out6_ref):
    # (x1 + x2); the /2 averaging is folded into the first-layer weights.
    h = (x1_ref[...] + x2_ref[...]).astype(jnp.bfloat16)          # (TB, H) bf16

    w_refs = (w1_ref, w2_ref, w3_ref, w4_ref, w5_ref, w6_ref)
    off = 0
    h5 = None
    y = None
    for i, w_ref in enumerate(w_refs):
        fan_out = w_ref.shape[1]
        b = b_ref[:, off:off + fan_out]            # (1, fan_out) f32, static slice
        y = jnp.dot(h, w_ref[...], preferred_element_type=jnp.float32) + b
        if i < 5:
            y = _leaky_relu(y)                     # f32 VPU
        if i == 4:
            h5 = y                                 # fc6 post-activation (f32)
        h = y.astype(jnp.bfloat16)                 # bf16 inter-layer activations
        off += fan_out

    out5_ref[...] = h5.astype(out5_ref.dtype)      # (TB, 128)
    out6_ref[...] = y.astype(out6_ref.dtype)       # (TB, 128) lane-dense, padded


def init_params(key, hidden2=128, num_classes=2):
    """PyTorch-style uniform(-1/sqrt(in), 1/sqrt(in)) init.
    Returns (weights_bf16 list [in,out] with the 0.5 averaging folded into the
    first layer, bias_slab f32 (1, total_out_padded))."""
    layer_dims = [(hidden2, hidden2), (hidden2, 1024), (1024, 512),
                  (512, 256), (256, 128), (128, num_classes)]
    weights, biases = [], []
    for fan_in, fan_out in layer_dims:
        key, kw, kb = jax.random.split(key, 3)
        bound = 1.0 / (fan_in ** 0.5)
        w = jax.random.uniform(kw, (fan_in, fan_out), jnp.float32, -bound, bound)
        b = jax.random.uniform(kb, (fan_out,), jnp.float32, -bound, bound)
        weights.append(w)
        biases.append(b)

    # Fold the (x1 + x2)/2 averaging into the first-layer weight.
    weights[0] = weights[0] * 0.5

    # Pad the final classifier to a lane-dense width of 128 (zeros -> zero logits).
    c_pad = 128 - num_classes
    weights[-1] = jnp.pad(weights[-1], ((0, 0), (0, c_pad)))
    biases[-1] = jnp.pad(biases[-1], ((0, c_pad),))

    weights_bf16 = [w.astype(jnp.bfloat16) for w in weights]
    bias_slab = jnp.concatenate(biases)[None, :].astype(jnp.float32)
    return weights_bf16, bias_slab


def server_resnet_sum(x1, x2, weights, bias_slab, num_classes):
    B, H = x1.shape
    out5_w = weights[4].shape[1]      # 128
    out6_w = weights[5].shape[1]      # 128 (lane-dense padded classes)

    TB = _choose_tb(B)
    grid = (pl.cdiv(B, TB),)          # ragged last tile handled by Pallas masking

    x_spec = pl.BlockSpec((TB, H), lambda i: (i, 0))
    in_specs = [x_spec, x_spec]
    for w in weights:
        # constant block index -> weights stay resident in VMEM across batch tiles
        in_specs.append(pl.BlockSpec(w.shape, lambda i: (0, 0)))
    in_specs.append(pl.BlockSpec(bias_slab.shape, lambda i: (0, 0)))

    out_specs = (pl.BlockSpec((TB, out5_w), lambda i: (i, 0)),
                 pl.BlockSpec((TB, out6_w), lambda i: (i, 0)))
    out_shape = (jax.ShapeDtypeStruct((B, out5_w), jnp.float32),
                 jax.ShapeDtypeStruct((B, out6_w), jnp.float32))

    flops = 2 * B * sum(w.shape[0] * w.shape[1] for w in weights)
    bytes_accessed = (sum(w.size * w.dtype.itemsize for w in weights)
                      + bias_slab.size * bias_slab.dtype.itemsize
                      + (x1.size + x2.size) * x1.dtype.itemsize
                      + B * (out5_w + out6_w) * 4)
    cost = pl.CostEstimate(flops=flops, transcendentals=0,
                           bytes_accessed=bytes_accessed)

    out5, out6 = pl.pallas_call(
        _server_resnet_kernel,
        out_shape=out_shape,
        grid=grid,
        in_specs=in_specs,
        out_specs=out_specs,
        compiler_params=pltpu.CompilerParams(
            dimension_semantics=("parallel",)),
        cost_estimate=cost,
    )(x1, x2, *weights, bias_slab)

    return out5, out6[:, :num_classes]


def _reference(x1, x2, weights, bias_slab, num_classes):
    """Pure-JAX reference mirroring the kernel's bf16-weight/activation,
    f32-accumulate math (0.5 averaging already folded into weights[0])."""
    h = (x1 + x2).astype(jnp.bfloat16)
    off = 0
    outs = []
    for i, w in enumerate(weights):
        fo = w.shape[1]
        b = bias_slab[:, off:off + fo]
        y = jnp.dot(h, w, preferred_element_type=jnp.float32) + b
        if i < 5:
            y = jnp.maximum(y, NEG_SLOPE * y)
        outs.append(y)
        h = y.astype(jnp.bfloat16)
        off += fo
    return outs[4], outs[5][:, :num_classes]


if __name__ == "__main__":
    key = jax.random.PRNGKey(0)
    B, hidden2, num_classes = 8, 128, 2

    kx, kp = jax.random.split(key)
    k1, k2 = jax.random.split(kx)
    x1 = jax.random.normal(k1, (B, hidden2), jnp.float32)
    x2 = jax.random.normal(k2, (B, hidden2), jnp.float32)

    weights, bias_slab = init_params(kp, hidden2=hidden2, num_classes=num_classes)

    out5, out6 = server_resnet_sum(x1, x2, weights, bias_slab, num_classes)
    jax.block_until_ready((out5, out6))

    ref5, ref6 = _reference(x1, x2, weights, bias_slab, num_classes)
    assert out5.shape == (B, 128) and out6.shape == (B, num_classes)
    assert jnp.allclose(out5, ref5, atol=1e-3, rtol=1e-3)
    assert jnp.allclose(out6, ref6, atol=1e-3, rtol=1e-3)

    print("KERNEL_OK")
</pallas_src>

<mosaic_0001>
module attributes {stable_mosaic.version = 11 : i64} {
  func.func @_server_resnet_kernel(%arg0: i32, %arg1: memref<8x128xf32, #tpu.memory_space<vmem>>, %arg2: memref<8x128xf32, #tpu.memory_space<vmem>>, %arg3: memref<128x128xbf16, #tpu.memory_space<vmem>>, %arg4: memref<128x1024xbf16, #tpu.memory_space<vmem>>, %arg5: memref<1024x512xbf16, #tpu.memory_space<vmem>>, %arg6: memref<512x256xbf16, #tpu.memory_space<vmem>>, %arg7: memref<256x128xbf16, #tpu.memory_space<vmem>>, %arg8: memref<128x128xbf16, #tpu.memory_space<vmem>>, %arg9: memref<1x2176xf32, #tpu.memory_space<vmem>>, %arg10: memref<8x128xf32, #tpu.memory_space<vmem>>, %arg11: memref<8x128xf32, #tpu.memory_space<vmem>>) attributes {dimension_semantics = [#tpu.dimension_semantics<parallel>], iteration_bounds = array<i64: 1>, scalar_prefetch = 0 : i64, scratch_operands = 0 : i64, tpu.core_type = #tpu.core_type<tc>, window_params = [{transform_indices = @transform_0, window_bounds = array<i64: 8, 128>}, {transform_indices = @transform_1, window_bounds = array<i64: 8, 128>}, {pipeline_mode = #tpu.pipeline_mode<synchronous>, transform_indices = @transform_2, window_bounds = array<i64: 128, 128>}, {pipeline_mode = #tpu.pipeline_mode<synchronous>, transform_indices = @transform_3, window_bounds = array<i64: 128, 1024>}, {pipeline_mode = #tpu.pipeline_mode<synchronous>, transform_indices = @transform_4, window_bounds = array<i64: 1024, 512>}, {pipeline_mode = #tpu.pipeline_mode<synchronous>, transform_indices = @transform_5, window_bounds = array<i64: 512, 256>}, {pipeline_mode = #tpu.pipeline_mode<synchronous>, transform_indices = @transform_6, window_bounds = array<i64: 256, 128>}, {pipeline_mode = #tpu.pipeline_mode<synchronous>, transform_indices = @transform_7, window_bounds = array<i64: 128, 128>}, {pipeline_mode = #tpu.pipeline_mode<synchronous>, transform_indices = @transform_8, window_bounds = array<i64: 1, 2176>}, {transform_indices = @transform_9, window_bounds = array<i64: 8, 128>}, {transform_indices = @transform_10, window_bounds = array<i64: 8, 128>}]} {
    %c0 = arith.constant 0 : index
    %c0_0 = arith.constant 0 : index
    %0 = vector.load %arg1[%c0, %c0_0] : memref<8x128xf32, #tpu.memory_space<vmem>>, vector<8x128xf32>
    %c0_1 = arith.constant 0 : index
    %c0_2 = arith.constant 0 : index
    %1 = vector.load %arg2[%c0_1, %c0_2] : memref<8x128xf32, #tpu.memory_space<vmem>>, vector<8x128xf32>
    %2 = arith.addf %0, %1 : vector<8x128xf32>
    %3 = arith.truncf %2 : vector<8x128xf32> to vector<8x128xbf16>
    %c0_3 = arith.constant 0 : index
    %c0_4 = arith.constant 0 : index
    %4 = vector.load %arg9[%c0_3, %c0_4] : memref<1x2176xf32, #tpu.memory_space<vmem>>, vector<1x128xf32>
    %c0_5 = arith.constant 0 : index
    %c0_6 = arith.constant 0 : index
    %5 = vector.load %arg3[%c0_5, %c0_6] : memref<128x128xbf16, #tpu.memory_space<vmem>>, vector<128x128xbf16>
    %cst = arith.constant dense<0.000000e+00> : vector<8x128xf32>
    %6 = tpu.matmul %3, %5, %cst {dimension_numbers = #tpu.dot_dimension_numbers<[1], [0], [0], [1], [0, 0, 1, 1], [], []>} : vector<8x128xbf16>, vector<128x128xbf16>, vector<8x128xf32> -> vector<8x128xf32>
    %7 = vector.broadcast %4 : vector<1x128xf32> to vector<8x128xf32>
    %8 = arith.addf %6, %7 : vector<8x128xf32>
    %cst_7 = arith.constant 0.00999999977 : f32
    %9 = vector.broadcast %cst_7 : f32 to vector<8x128xf32>
    %10 = arith.mulf %9, %8 : vector<8x128xf32>
    %11 = arith.maximumf %8, %10 : vector<8x128xf32>
    %12 = arith.truncf %11 : vector<8x128xf32> to vector<8x128xbf16>
    %c0_8 = arith.constant 0 : index
    %c128 = arith.constant 128 : index
    %13 = vector.load %arg9[%c0_8, %c128] : memref<1x2176xf32, #tpu.memory_space<vmem>>, vector<1x1024xf32>
    %c0_9 = arith.constant 0 : index
    %c0_10 = arith.constant 0 : index
    %14 = vector.load %arg4[%c0_9, %c0_10] : memref<128x1024xbf16, #tpu.memory_space<vmem>>, vector<128x1024xbf16>
    %cst_11 = arith.constant dense<0.000000e+00> : vector<8x1024xf32>
    %15 = tpu.matmul %12, %14, %cst_11 {dimension_numbers = #tpu.dot_dimension_numbers<[1], [0], [0], [1], [0, 0, 1, 1], [], []>} : vector<8x128xbf16>, vector<128x1024xbf16>, vector<8x1024xf32> -> vector<8x1024xf32>
    %16 = vector.broadcast %13 : vector<1x1024xf32> to vector<8x1024xf32>
    %17 = arith.addf %15, %16 : vector<8x1024xf32>
    %cst_12 = arith.constant 0.00999999977 : f32
    %18 = vector.broadcast %cst_12 : f32 to vector<8x1024xf32>
    %19 = arith.mulf %18, %17 : vector<8x1024xf32>
    %20 = arith.maximumf %17, %19 : vector<8x1024xf32>
    %21 = arith.truncf %20 : vector<8x1024xf32> to vector<8x1024xbf16>
    %c0_13 = arith.constant 0 : index
    %c1152 = arith.constant 1152 : index
    %22 = vector.load %arg9[%c0_13, %c1152] : memref<1x2176xf32, #tpu.memory_space<vmem>>, vector<1x512xf32>
    %c0_14 = arith.constant 0 : index
    %c0_15 = arith.constant 0 : index
    %23 = vector.load %arg5[%c0_14, %c0_15] : memref<1024x512xbf16, #tpu.memory_space<vmem>>, vector<1024x512xbf16>
    %cst_16 = arith.constant dense<0.000000e+00> : vector<8x512xf32>
    %24 = tpu.matmul %21, %23, %cst_16 {dimension_numbers = #tpu.dot_dimension_numbers<[1], [0], [0], [1], [0, 0, 1, 1], [], []>} : vector<8x1024xbf16>, vector<1024x512xbf16>, vector<8x512xf32> -> vector<8x512xf32>
    %25 = vector.broadcast %22 : vector<1x512xf32> to vector<8x512xf32>
    %26 = arith.addf %24, %25 : vector<8x512xf32>
    %cst_17 = arith.constant 0.00999999977 : f32
    %27 = vector.broadcast %cst_17 : f32 to vector<8x512xf32>
    %28 = arith.mulf %27, %26 : vector<8x512xf32>
    %29 = arith.maximumf %26, %28 : vector<8x512xf32>
    %30 = arith.truncf %29 : vector<8x512xf32> to vector<8x512xbf16>
    %c0_18 = arith.constant 0 : index
    %c1664 = arith.constant 1664 : index
    %31 = vector.load %arg9[%c0_18, %c1664] : memref<1x2176xf32, #tpu.memory_space<vmem>>, vector<1x256xf32>
    %c0_19 = arith.constant 0 : index
    %c0_20 = arith.constant 0 : index
    %32 = vector.load %arg6[%c0_19, %c0_20] : memref<512x256xbf16, #tpu.memory_space<vmem>>, vector<512x256xbf16>
    %cst_21 = arith.constant dense<0.000000e+00> : vector<8x256xf32>
    %33 = tpu.matmul %30, %32, %cst_21 {dimension_numbers = #tpu.dot_dimension_numbers<[1], [0], [0], [1], [0, 0, 1, 1], [], []>} : vector<8x512xbf16>, vector<512x256xbf16>, vector<8x256xf32> -> vector<8x256xf32>
    %34 = vector.broadcast %31 : vector<1x256xf32> to vector<8x256xf32>
    %35 = arith.addf %33, %34 : vector<8x256xf32>
    %cst_22 = arith.constant 0.00999999977 : f32
    %36 = vector.broadcast %cst_22 : f32 to vector<8x256xf32>
    %37 = arith.mulf %36, %35 : vector<8x256xf32>
    %38 = arith.maximumf %35, %37 : vector<8x256xf32>
    %39 = arith.truncf %38 : vector<8x256xf32> to vector<8x256xbf16>
    %c0_23 = arith.constant 0 : index
    %c1920 = arith.constant 1920 : index
    %40 = vector.load %arg9[%c0_23, %c1920] : memref<1x2176xf32, #tpu.memory_space<vmem>>, vector<1x128xf32>
    %c0_24 = arith.constant 0 : index
    %c0_25 = arith.constant 0 : index
    %41 = vector.load %arg7[%c0_24, %c0_25] : memref<256x128xbf16, #tpu.memory_space<vmem>>, vector<256x128xbf16>
    %cst_26 = arith.constant dense<0.000000e+00> : vector<8x128xf32>
    %42 = tpu.matmul %39, %41, %cst_26 {dimension_numbers = #tpu.dot_dimension_numbers<[1], [0], [0], [1], [0, 0, 1, 1], [], []>} : vector<8x256xbf16>, vector<256x128xbf16>, vector<8x128xf32> -> vector<8x128xf32>
    %43 = vector.broadcast %40 : vector<1x128xf32> to vector<8x128xf32>
    %44 = arith.addf %42, %43 : vector<8x128xf32>
    %cst_27 = arith.constant 0.00999999977 : f32
    %45 = vector.broadcast %cst_27 : f32 to vector<8x128xf32>
    %46 = arith.mulf %45, %44 : vector<8x128xf32>
    %47 = arith.maximumf %44, %46 : vector<8x128xf32>
    %48 = arith.truncf %47 : vector<8x128xf32> to vector<8x128xbf16>
    %c0_28 = arith.constant 0 : index
    %c2048 = arith.constant 2048 : index
    %49 = vector.load %arg9[%c0_28, %c2048] : memref<1x2176xf32, #tpu.memory_space<vmem>>, vector<1x128xf32>
    %c0_29 = arith.constant 0 : index
    %c0_30 = arith.constant 0 : index
    %50 = vector.load %arg8[%c0_29, %c0_30] : memref<128x128xbf16, #tpu.memory_space<vmem>>, vector<128x128xbf16>
    %cst_31 = arith.constant dense<0.000000e+00> : vector<8x128xf32>
    %51 = tpu.matmul %48, %50, %cst_31 {dimension_numbers = #tpu.dot_dimension_numbers<[1], [0], [0], [1], [0, 0, 1, 1], [], []>} : vector<8x128xbf16>, vector<128x128xbf16>, vector<8x128xf32> -> vector<8x128xf32>
    %52 = vector.broadcast %49 : vector<1x128xf32> to vector<8x128xf32>
    %53 = arith.addf %51, %52 : vector<8x128xf32>
    %c0_32 = arith.constant 0 : index
    %c0_33 = arith.constant 0 : index
    %54 = vector.load %arg10[%c0_32, %c0_33] : memref<8x128xf32, #tpu.memory_space<vmem>>, vector<8x128xf32>
    tpu.vector_store %arg10[%c0_32, %c0_33], %47 {strides = array<i32>} : memref<8x128xf32, #tpu.memory_space<vmem>>, vector<8x128xf32>,
    %c0_34 = arith.constant 0 : index
    %c0_35 = arith.constant 0 : index
    %55 = vector.load %arg11[%c0_34, %c0_35] : memref<8x128xf32, #tpu.memory_space<vmem>>, vector<8x128xf32>
    tpu.vector_store %arg11[%c0_34, %c0_35], %53 {strides = array<i32>} : memref<8x128xf32, #tpu.memory_space<vmem>>, vector<8x128xf32>,
    return
  }
  func.func @transform_0(%arg0: i32) -> (i32, i32) {
    %c0_i32 = arith.constant 0 : i32
    %c0_i32_0 = arith.constant 0 : i32
    return %arg0, %c0_i32 : i32, i32
  }
  func.func @transform_1(%arg0: i32) -> (i32, i32) {
    %c0_i32 = arith.constant 0 : i32
    %c0_i32_0 = arith.constant 0 : i32
    return %arg0, %c0_i32 : i32, i32
  }
  func.func @transform_2(%arg0: i32) -> (i32, i32) {
    %c0_i32 = arith.constant 0 : i32
    %c0_i32_0 = arith.constant 0 : i32
    %c0_i32_1 = arith.constant 0 : i32
    return %c0_i32, %c0_i32_0 : i32, i32
  }
  func.func @transform_3(%arg0: i32) -> (i32, i32) {
    %c0_i32 = arith.constant 0 : i32
    %c0_i32_0 = arith.constant 0 : i32
    %c0_i32_1 = arith.constant 0 : i32
    return %c0_i32, %c0_i32_0 : i32, i32
  }
  func.func @transform_4(%arg0: i32) -> (i32, i32) {
    %c0_i32 = arith.constant 0 : i32
    %c0_i32_0 = arith.constant 0 : i32
    %c0_i32_1 = arith.constant 0 : i32
    return %c0_i32, %c0_i32_0 : i32, i32
  }
  func.func @transform_5(%arg0: i32) -> (i32, i32) {
    %c0_i32 = arith.constant 0 : i32
    %c0_i32_0 = arith.constant 0 : i32
    %c0_i32_1 = arith.constant 0 : i32
    return %c0_i32, %c0_i32_0 : i32, i32
  }
  func.func @transform_6(%arg0: i32) -> (i32, i32) {
    %c0_i32 = arith.constant 0 : i32
    %c0_i32_0 = arith.constant 0 : i32
    %c0_i32_1 = arith.constant 0 : i32
    return %c0_i32, %c0_i32_0 : i32, i32
  }
  func.func @transform_7(%arg0: i32) -> (i32, i32) {
    %c0_i32 = arith.constant 0 : i32
    %c0_i32_0 = arith.constant 0 : i32
    %c0_i32_1 = arith.constant 0 : i32
    return %c0_i32, %c0_i32_0 : i32, i32
  }
  func.func @transform_8(%arg0: i32) -> (i32, i32) {
    %c0_i32 = arith.constant 0 : i32
    %c0_i32_0 = arith.constant 0 : i32
    %c0_i32_1 = arith.constant 0 : i32
    return %c0_i32, %c0_i32_0 : i32, i32
  }
  func.func @transform_9(%arg0: i32) -> (i32, i32) {
    %c0_i32 = arith.constant 0 : i32
    %c0_i32_0 = arith.constant 0 : i32
    return %arg0, %c0_i32 : i32, i32
  }
  func.func @transform_10(%arg0: i32) -> (i32, i32) {
    %c0_i32 = arith.constant 0 : i32
    %c0_i32_0 = arith.constant 0 : i32
    return %arg0, %c0_i32 : i32, i32
  }
}

</mosaic_0001>

<llo_original>
// kernel: tpu_custom_call.1
$region0: #{tpu_custom_call.1}
  #allocation0 [shape = 'u32[]', space=smem, size = 0x4, offset = 0x4, fixed_abs, tag = 'smem constant byte address 0x4 - core index']
  #allocation1 [shape = 'u32[144,128]{1,0:T(1,128)}', space=vmem, size = 0x12000, scoped, tag = 'internal scratch']
  %s0 = inlined_call_operand.hbm [shape: f32[8,128], index: 0, kind: input, shape index: {}]
  %s1 = inlined_call_operand.hbm [shape: f32[8,128], index: 1, kind: input, shape index: {}]
  %s2 = inlined_call_operand.hbm [shape: bf16[128,128], index: 2, kind: input, shape index: {}]
  %s3 = inlined_call_operand.hbm [shape: bf16[128,1024], index: 3, kind: input, shape index: {}]
  %s4 = inlined_call_operand.hbm [shape: bf16[1024,512], index: 4, kind: input, shape index: {}]
  %s5 = inlined_call_operand.hbm [shape: bf16[512,256], index: 5, kind: input, shape index: {}]
  %s6 = inlined_call_operand.hbm [shape: bf16[256,128], index: 6, kind: input, shape index: {}]
  %s7 = inlined_call_operand.hbm [shape: bf16[128,128], index: 7, kind: input, shape index: {}]
  %s8 = inlined_call_operand.vmem [shape: f32[1,2176], index: 8, kind: input, shape index: {}]
  %s9 = inlined_call_operand.hbm [shape: f32[8,128], index: 9, kind: output, shape index: {0}]
  %s10 = inlined_call_operand.hbm [shape: f32[8,128], index: 10, kind: output, shape index: {1}]
  %11 = xla_tuple %s9, %s10
  %s12 = sld [smem:[#allocation0]]
  $region86: #{tpu_custom_call.1} parent=0
    _
  %s14 = ssub.s32 1, %s12
  %s15 = scalar_select 0, %s14, %s12
  $region1: #{tpu_custom_call.1} parent=0
    #allocation2 [shape = 'u8[4096]{0}', space=vmem, size = 0x1000, scoped, tag = 'input window, operand 0, single buffered']
    #allocation3 [shape = 's32[1]{0}', space=sflag, size = 0x4, scoped, tag = 'scoped memory for tpu_custom_call.1']
    #allocation4 [shape = 's32[1]{0}', space=sflag, size = 0x4, scoped, tag = 'scoped memory for tpu_custom_call.1']
    #allocation5 [shape = 'u8[4096]{0}', space=vmem, size = 0x1000, scoped, tag = 'input window, operand 1, single buffered']
    #allocation6 [shape = 's32[1]{0}', space=sflag, size = 0x4, scoped, tag = 'scoped memory for tpu_custom_call.1']
    #allocation7 [shape = 'u8[32768]{0}', space=vmem, size = 0x8000, scoped, tag = 'input window, operand 2, single buffered']
    #allocation8 [shape = 'u8[262144]{0}', space=vmem, size = 0x40000, scoped, tag = 'input window, operand 3, single buffered']
    #allocation9 [shape = 's32[1]{0}', space=sflag, size = 0x4, scoped, tag = 'scoped memory for tpu_custom_call.1']
    #allocation10 [shape = 'u8[1048576]{0}', space=vmem, size = 0x100000, scoped, tag = 'input window, operand 4, single buffered']
    #allocation11 [shape = 'u8[262144]{0}', space=vmem, size = 0x40000, scoped, tag = 'input window, operand 5, single buffered']
    #allocation12 [shape = 's32[1]{0}', space=sflag, size = 0x4, scoped, tag = 'scoped memory for tpu_custom_call.1']
    #allocation13 [shape = 'u8[65536]{0}', space=vmem, size = 0x10000, scoped, tag = 'input window, operand 6, single buffered']
    #allocation14 [shape = 'u8[32768]{0}', space=vmem, size = 0x8000, scoped, tag = 'input window, operand 7, single buffered']
    #allocation15 [shape = 's32[1]{0}', space=sflag, size = 0x4, scoped, tag = 'scoped memory for tpu_custom_call.1']
    #allocation16 [shape = 'u8[4096]{0}', space=vmem, size = 0x1000, scoped, tag = 'output window, operand 0, single buffered']
    #allocation17 [shape = 'u8[4096]{0}', space=vmem, size = 0x1000, scoped, tag = 'output window, operand 1, single buffered']
    #allocation18 [shape = 's32[1]{0}', space=sflag, size = 0x4, scoped, tag = 'scoped memory for tpu_custom_call.1']
    %16 = vsyncpa [#allocation3], 0
    %17 = vsyncpa [#allocation6], 0
    %18 = vsyncpa [#allocation9], 0
    %19 = vsyncpa [#allocation12], 0
    %20 = vsyncpa [#allocation15], 0
    %21 = vsyncpa [#allocation4], 0
    %22 = vsyncpa [#allocation18], 0
    // Predicated region
    $region2: #{tpu_custom_call.1} parent=1 // pred_check
      _
    $region3: #{tpu_custom_call.1} parent=1 // pred_check_branch
      %24 = sbr.rel (0) target = $region5
    $region4: #{tpu_custom_call.1} parent=1 // pred_region
      %s26 = ssub.s32 128, 128
      %27 = vsyncadd [#allocation3], %s26
      %s29 = sshll.u32 [#allocation2], 4
      %s30 = int_to_ptr.vmem [resolvable:$true] %s29
      %32 = dma.hbm_to_vmem [thread:$0]  %s0, 128, %s30, [#allocation3]
    $region5: #{tpu_custom_call.1} parent=1 // pred_fallthru
      _
    // Predicated region
    $region6: #{tpu_custom_call.1} parent=1 // pred_check
      _
    $region7: #{tpu_custom_call.1} parent=1 // pred_check_branch
      %34 = sbr.rel (0) target = $region9
    $region8: #{tpu_custom_call.1} parent=1 // pred_region
      %s36 = ssub.s32 128, 128
      %37 = vsyncadd [#allocation6], %s36
      %s39 = sshll.u32 [#allocation5], 4
      %s40 = int_to_ptr.vmem [resolvable:$true] %s39
      %42 = dma.hbm_to_vmem [thread:$0]  %s1, 128, %s40, [#allocation6]
    $region9: #{tpu_custom_call.1} parent=1 // pred_fallthru
      _
    // Predicated region
    $region10: #{tpu_custom_call.1} parent=1 // pred_check
      _
    $region11: #{tpu_custom_call.1} parent=1 // pred_check_branch
      %44 = sbr.rel (0) target = $region13
    $region12: #{tpu_custom_call.1} parent=1 // pred_region
      %s46 = ssub.s32 1024, 1024
      %47 = vsyncadd [#allocation6], %s46
      %s48 = sshll.u32 [#allocation7], 4
      %s49 = int_to_ptr.vmem [resolvable:$true] %s48
      %54 = dma.hbm_to_vmem [thread:$0]  %s2, 1024, %s49, [#allocation6], 64, 64, 4
    $region13: #{tpu_custom_call.1} parent=1 // pred_fallthru
      _
    // Predicated region
    $region14: #{tpu_custom_call.1} parent=1 // pred_check
      _
    $region15: #{tpu_custom_call.1} parent=1 // pred_check_branch
      %56 = sbr.rel (0) target = $region17
    $region16: #{tpu_custom_call.1} parent=1 // pred_region
      %s58 = ssub.s32 8192, 8192
      %59 = vsyncadd [#allocation9], %s58
      %s60 = sshll.u32 [#allocation8], 4
      %s61 = int_to_ptr.vmem [resolvable:$true] %s60
      %66 = dma.hbm_to_vmem [thread:$0]  %s3, 8192, %s61, [#allocation9], 512, 512, 32
    $region17: #{tpu_custom_call.1} parent=1 // pred_fallthru
      _
    // Predicated region
    $region18: #{tpu_custom_call.1} parent=1 // pred_check
      _
    $region19: #{tpu_custom_call.1} parent=1 // pred_check_branch
      %68 = sbr.rel (0) target = $region21
    $region20: #{tpu_custom_call.1} parent=1 // pred_region
      %s70 = ssub.s32 32768, 32768
      %71 = vsyncadd [#allocation9], %s70
      %s72 = sshll.u32 [#allocation10], 4
      %s73 = int_to_ptr.vmem [resolvable:$true] %s72
      %78 = dma.hbm_to_vmem [thread:$0]  %s4, 32768, %s73, [#allocation9], 256, 256, 16
    $region21: #{tpu_custom_call.1} parent=1 // pred_fallthru
      _
    // Predicated region
    $region22: #{tpu_custom_call.1} parent=1 // pred_check
      _
    $region23: #{tpu_custom_call.1} parent=1 // pred_check_branch
      %80 = sbr.rel (0) target = $region25
    $region24: #{tpu_custom_call.1} parent=1 // pred_region
      %s82 = ssub.s32 8192, 8192
      %83 = vsyncadd [#allocation12], %s82
      %s84 = sshll.u32 [#allocation11], 4
      %s85 = int_to_ptr.vmem [resolvable:$true] %s84
      %90 = dma.hbm_to_vmem [thread:$0]  %s5, 8192, %s85, [#allocation12], 128, 128, 8
    $region25: #{tpu_custom_call.1} parent=1 // pred_fallthru
      _
    // Predicated region
    $region26: #{tpu_custom_call.1} parent=1 // pred_check
      _
    $region27: #{tpu_custom_call.1} parent=1 // pred_check_branch
      %92 = sbr.rel (0) target = $region29
    $region28: #{tpu_custom_call.1} parent=1 // pred_region
      %s94 = ssub.s32 2048, 2048
      %95 = vsyncadd [#allocation12], %s94
      %s96 = sshll.u32 [#allocation13], 4
      %s97 = int_to_ptr.vmem [resolvable:$true] %s96
      %102 = dma.hbm_to_vmem [thread:$0]  %s6, 2048, %s97, [#allocation12], 64, 64, 4
    $region29: #{tpu_custom_call.1} parent=1 // pred_fallthru
      _
    // Predicated region
    $region30: #{tpu_custom_call.1} parent=1 // pred_check
      _
    $region31: #{tpu_custom_call.1} parent=1 // pred_check_branch
      %104 = sbr.rel (0) target = $region33
    $region32: #{tpu_custom_call.1} parent=1 // pred_region
      %s106 = ssub.s32 1024, 1024
      %107 = vsyncadd [#allocation15], %s106
      %s108 = sshll.u32 [#allocation14], 4
      %s109 = int_to_ptr.vmem [resolvable:$true] %s108
      %114 = dma.hbm_to_vmem [thread:$0]  %s7, 1024, %s109, [#allocation15], 64, 64, 4
    $region33: #{tpu_custom_call.1} parent=1 // pred_fallthru
      _
    // Predicated region
    $region34: #{tpu_custom_call.1} parent=1 // pred_check
      _
    $region35: #{tpu_custom_call.1} parent=1 // pred_check_branch
      %116 = sbr.rel (0) target = $region37
    $region36: #{tpu_custom_call.1} parent=1 // pred_region
      _
    $region37: #{tpu_custom_call.1} parent=1 // pred_fallthru
      _
    // Predicated region
    $region38: #{tpu_custom_call.1} parent=1 // pred_check
      _
    $region39: #{tpu_custom_call.1} parent=1 // pred_check_branch
      %118 = sbr.rel (0) target = $region41
    $region40: #{tpu_custom_call.1} parent=1 // pred_region
      %119 = dma.done [#allocation3], 128
    $region41: #{tpu_custom_call.1} parent=1 // pred_fallthru
      _
    // Predicated region
    $region42: #{tpu_custom_call.1} parent=1 // pred_check
      _
    $region43: #{tpu_custom_call.1} parent=1 // pred_check_branch
      %121 = sbr.rel (0) target = $region45
    $region44: #{tpu_custom_call.1} parent=1 // pred_region
      %122 = dma.done [#allocation6], 128
    $region45: #{tpu_custom_call.1} parent=1 // pred_fallthru
      _
    // Predicated region
    $region46: #{tpu_custom_call.1} parent=1 // pred_check
      _
    $region47: #{tpu_custom_call.1} parent=1 // pred_check_branch
      %124 = sbr.rel (0) target = $region49
    $region48: #{tpu_custom_call.1} parent=1 // pred_region
      %125 = dma.done [#allocation6], 1024
    $region49: #{tpu_custom_call.1} parent=1 // pred_fallthru
      _
    // Predicated region
    $region50: #{tpu_custom_call.1} parent=1 // pred_check
      _
    $region51: #{tpu_custom_call.1} parent=1 // pred_check_branch
      %127 = sbr.rel (0) target = $region53
    $region52: #{tpu_custom_call.1} parent=1 // pred_region
      %128 = dma.done [#allocation9], 8192
    $region53: #{tpu_custom_call.1} parent=1 // pred_fallthru
      _
    // Predicated region
    $region54: #{tpu_custom_call.1} parent=1 // pred_check
      _
    $region55: #{tpu_custom_call.1} parent=1 // pred_check_branch
      %130 = sbr.rel (0) target = $region57
    $region56: #{tpu_custom_call.1} parent=1 // pred_region
      %131 = dma.done [#allocation9], 32768
    $region57: #{tpu_custom_call.1} parent=1 // pred_fallthru
      _
    // Predicated region
    $region58: #{tpu_custom_call.1} parent=1 // pred_check
      _
    $region59: #{tpu_custom_call.1} parent=1 // pred_check_branch
      %133 = sbr.rel (0) target = $region61
    $region60: #{tpu_custom_call.1} parent=1 // pred_region
      %134 = dma.done [#allocation12], 8192
    $region61: #{tpu_custom_call.1} parent=1 // pred_fallthru
      _
    // Predicated region
    $region62: #{tpu_custom_call.1} parent=1 // pred_check
      _
    $region63: #{tpu_custom_call.1} parent=1 // pred_check_branch
      %136 = sbr.rel (0) target = $region65
    $region64: #{tpu_custom_call.1} parent=1 // pred_region
      %137 = dma.done [#allocation12], 2048
    $region65: #{tpu_custom_call.1} parent=1 // pred_fallthru
      _
    // Predicated region
    $region66: #{tpu_custom_call.1} parent=1 // pred_check
      _
    $region67: #{tpu_custom_call.1} parent=1 // pred_check_branch
      %139 = sbr.rel (0) target = $region69
    $region68: #{tpu_custom_call.1} parent=1 // pred_region
      %140 = dma.done [#allocation15], 1024
    $region69: #{tpu_custom_call.1} parent=1 // pred_fallthru
      _
    %v142 = vld [vmem:[#allocation2] sm:$0xff]
    %v143 = vld [vmem:[#allocation5] sm:$0xff]
    %v144 = vadd.f32 %v142, %v143
    %v145 = vpack.c.bf16 %v144, %v144
    %v146 = vld [vmem:[%s8] sm:$0x1]
    %v147 = vld [vmem:[#allocation7] sm:$0xf]
    %v148 = vld [vmem:[#allocation7 + $0x4] sm:$0xf]
    %v149 = vld [vmem:[#allocation7 + $0x8] sm:$0xf]
    %v150 = vld [vmem:[#allocation7 + $0xc] sm:$0xf]
    %v151 = vld [vmem:[#allocation7 + $0x10] sm:$0xf]
    %v152 = vld [vmem:[#allocation7 + $0x14] sm:$0xf]
    %v153 = vld [vmem:[#allocation7 + $0x18] sm:$0xf]
    %v154 = vld [vmem:[#allocation7 + $0x1c] sm:$0xf]
    %v155 = vld [vmem:[#allocation7 + $0x20] sm:$0xf]
    %v156 = vld [vmem:[#allocation7 + $0x24] sm:$0xf]
    %v157 = vld [vmem:[#allocation7 + $0x28] sm:$0xf]
    %v158 = vld [vmem:[#allocation7 + $0x2c] sm:$0xf]
    %v159 = vld [vmem:[#allocation7 + $0x30] sm:$0xf]
    %v160 = vld [vmem:[#allocation7 + $0x34] sm:$0xf]
    %v161 = vld [vmem:[#allocation7 + $0x38] sm:$0xf]
    %v162 = vld [vmem:[#allocation7 + $0x3c] sm:$0xf]
    %v164 = vlaneseq
    %v165 = vshrl.u32 %v164, 7
    %v166 = vsub.s32 0, %v165
    %v167 = vrot.slane %v146, %v166
    %v185 = vunpack.c.l.b16 %v147
    %v186 = vunpack.c.l.b16 %v148
    %v187 = vunpack.c.l.b16 %v149
    %v188 = vunpack.c.l.b16 %v150
    %v189 = vunpack.c.l.b16 %v151
    %v190 = vunpack.c.l.b16 %v152
    %v191 = vunpack.c.l.b16 %v153
    %v192 = vunpack.c.l.b16 %v154
    %v193 = vunpack.c.l.b16 %v155
    %v194 = vunpack.c.l.b16 %v156
    %v195 = vunpack.c.l.b16 %v157
    %v196 = vunpack.c.l.b16 %v158
    %v197 = vunpack.c.l.b16 %v159
    %v198 = vunpack.c.l.b16 %v160
    %v199 = vunpack.c.l.b16 %v161
    %v200 = vunpack.c.l.b16 %v162
    %v201 = vpack.c.b16 %v186, %v185
    %v202 = vpack.c.b16 %v188, %v187
    %v203 = vpack.c.b16 %v190, %v189
    %v204 = vpack.c.b16 %v192, %v191
    %v205 = vpack.c.b16 %v194, %v193
    %v206 = vpack.c.b16 %v196, %v195
    %v207 = vpack.c.b16 %v198, %v197
    %v208 = vpack.c.b16 %v200, %v199
    %217 = vmatprep.subr.bf16.mxu0 0
    %218 = vmatpush1.bf16.msra.mxu0 %v201
    %219 = vmatprep.subr.bf16.mxu0 0
    %220 = vmatpush1.bf16.msra.mxu0 %v202
    %221 = vmatprep.subr.bf16.mxu0 0
    %222 = vmatpush1.bf16.msra.mxu0 %v203
    %223 = vmatprep.subr.bf16.mxu0 0
    %224 = vmatpush1.bf16.msra.mxu0 %v204
    %225 = vmatprep.subr.bf16.mxu0 0
    %226 = vmatpush1.bf16.msra.mxu0 %v205
    %227 = vmatprep.subr.bf16.mxu0 0
    %228 = vmatpush1.bf16.msra.mxu0 %v206
    %229 = vmatprep.subr.bf16.mxu0 0
    %230 = vmatpush1.bf16.msra.mxu0 %v207
    %231 = vmatprep.subr.bf16.mxu0 0
    %232 = vmatpush1.bf16.msra.mxu0 %v208
    %233 = vmatprep.subr.bf16.mxu0 0
    %234 = vmatpush1.bf16.msra.mxu0 0
    %235 = vmatprep.subr.bf16.mxu0 0
    %236 = vmatpush1.bf16.msra.mxu0 0
    %237 = vmatprep.subr.bf16.mxu0 0
    %238 = vmatpush1.bf16.msra.mxu0 0
    %239 = vmatprep.subr.bf16.mxu0 0
    %240 = vmatpush1.bf16.msra.mxu0 0
    %241 = vmatprep.subr.bf16.mxu0 0
    %242 = vmatpush1.bf16.msra.mxu0 0
    %243 = vmatprep.subr.bf16.mxu0 0
    %244 = vmatpush1.bf16.msra.mxu0 0
    %245 = vmatprep.subr.bf16.mxu0 0
    %246 = vmatpush1.bf16.msra.mxu0 0
    %247 = vmatprep.subr.bf16.mxu0 0
    %248 = vmatpush1.bf16.msra.mxu0 0
    %249 = vmatprep.mubr.bf16.mxu0 0
    %250 = vmatmul.mubr.bf16.gmra.mrb[0].mxu0 %v145
    %v251 = vpop.f32.mrb[0].mxu0
    %v252 = vadd.f32 %v167, %v251
    %v253 = vpop.f32.mrb[0].mxu0
    %v254 = vpop.f32.mrb[0].mxu0
    %v255 = vpop.f32.mrb[0].mxu0
    %256 = vdwg.mxu0
    %v257 = vmul.f32 %v252, 0.01
    %v258 = vmax.f32 %v252, %v257
    %v259 = vpack.c.bf16 %v258, %v258
    %v260 = vld [vmem:[%s8 + $0x1] sm:$0xff]
    %v261 = vld [vmem:[#allocation8] sm:$0xff]
    %v262 = vld [vmem:[#allocation8 + $0x8] sm:$0xff]
    %v263 = vld [vmem:[#allocation8 + $0x10] sm:$0xff]
    %v264 = vld [vmem:[#allocation8 + $0x18] sm:$0xff]
    %v265 = vld [vmem:[#allocation8 + $0x20] sm:$0xff]
    %v266 = vld [vmem:[#allocation8 + $0x28] sm:$0xff]
    %v267 = vld [vmem:[#allocation8 + $0x30] sm:$0xff]
    %v268 = vld [vmem:[#allocation8 + $0x38] sm:$0xff]
    %v269 = vld [vmem:[#allocation8 + $0x40] sm:$0xff]
    %v270 = vld [vmem:[#allocation8 + $0x48] sm:$0xff]
    %v271 = vld [vmem:[#allocation8 + $0x50] sm:$0xff]
    %v272 = vld [vmem:[#allocation8 + $0x58] sm:$0xff]
    %v273 = vld [vmem:[#allocation8 + $0x60] sm:$0xff]
    %v274 = vld [vmem:[#allocation8 + $0x68] sm:$0xff]
    %v275 = vld [vmem:[#allocation8 + $0x70] sm:$0xff]
    %v276 = vld [vmem:[#allocation8 + $0x78] sm:$0xff]
    %v277 = vld [vmem:[#allocation8 + $0x80] sm:$0xff]
    %v278 = vld [vmem:[#allocation8 + $0x88] sm:$0xff]
    %v279 = vld [vmem:[#allocation8 + $0x90] sm:$0xff]
    %v280 = vld [vmem:[#allocation8 + $0x98] sm:$0xff]
    %v281 = vld [vmem:[#allocation8 + $0xa0] sm:$0xff]
    %v282 = vld [vmem:[#allocation8 + $0xa8] sm:$0xff]
    %v283 = vld [vmem:[#allocation8 + $0xb0] sm:$0xff]
    %v284 = vld [vmem:[#allocation8 + $0xb8] sm:$0xff]
    %v285 = vld [vmem:[#allocation8 + $0xc0] sm:$0xff]
    %v286 = vld [vmem:[#allocation8 + $0xc8] sm:$0xff]
    %v287 = vld [vmem:[#allocation8 + $0xd0] sm:$0xff]
    %v288 = vld [vmem:[#allocation8 + $0xd8] sm:$0xff]
    %v289 = vld [vmem:[#allocation8 + $0xe0] sm:$0xff]
    %v290 = vld [vmem:[#allocation8 + $0xe8] sm:$0xff]
    %v291 = vld [vmem:[#allocation8 + $0xf0] sm:$0xff]
    %v292 = vld [vmem:[#allocation8 + $0xf8] sm:$0xff]
    %v293 = vld [vmem:[#allocation8 + $0x100] sm:$0xff]
    %v294 = vld [vmem:[#allocation8 + $0x108] sm:$0xff]
    %v295 = vld [vmem:[#allocation8 + $0x110] sm:$0xff]
    %v296 = vld [vmem:[#allocation8 + $0x118] sm:$0xff]
    %v297 = vld [vmem:[#allocation8 + $0x120] sm:$0xff]
    %v298 = vld [vmem:[#allocation8 + $0x128] sm:$0xff]
    %v299 = vld [vmem:[#allocation8 + $0x130] sm:$0xff]
    %v300 = vld [vmem:[#allocation8 + $0x138] sm:$0xff]
    %v301 = vld [vmem:[#allocation8 + $0x140] sm:$0xff]
    %v302 = vld [vmem:[#allocation8 + $0x148] sm:$0xff]
    %v303 = vld [vmem:[#allocation8 + $0x150] sm:$0xff]
    %v304 = vld [vmem:[#allocation8 + $0x158] sm:$0xff]
    %v305 = vld [vmem:[#allocation8 + $0x160] sm:$0xff]
    %v306 = vld [vmem:[#allocation8 + $0x168] sm:$0xff]
    %v307 = vld [vmem:[#allocation8 + $0x170] sm:$0xff]
    %v308 = vld [vmem:[#allocation8 + $0x178] sm:$0xff]
    %v309 = vld [vmem:[#allocation8 + $0x180] sm:$0xff]
    %v310 = vld [vmem:[#allocation8 + $0x188] sm:$0xff]
    %v311 = vld [vmem:[#allocation8 + $0x190] sm:$0xff]
    %v312 = vld [vmem:[#allocation8 + $0x198] sm:$0xff]
    %v313 = vld [vmem:[#allocation8 + $0x1a0] sm:$0xff]
    %v314 = vld [vmem:[#allocation8 + $0x1a8] sm:$0xff]
    %v315 = vld [vmem:[#allocation8 + $0x1b0] sm:$0xff]
    %v316 = vld [vmem:[#allocation8 + $0x1b8] sm:$0xff]
    %v317 = vld [vmem:[#allocation8 + $0x1c0] sm:$0xff]
    %v318 = vld [vmem:[#allocation8 + $0x1c8] sm:$0xff]
    %v319 = vld [vmem:[#allocation8 + $0x1d0] sm:$0xff]
    %v320 = vld [vmem:[#allocation8 + $0x1d8] sm:$0xff]
    %v321 = vld [vmem:[#allocation8 + $0x1e0] sm:$0xff]
    %v322 = vld [vmem:[#allocation8 + $0x1e8] sm:$0xff]
    %v323 = vld [vmem:[#allocation8 + $0x1f0] sm:$0xff]
    %v324 = vld [vmem:[#allocation8 + $0x1f8] sm:$0xff]
    %v326 = vlaneseq
    %v327 = vshrl.u32 %v326, 7
    %v328 = vsub.s32 0, %v327
    %v329 = vrot.slane %v260, %v328
    %v330 = vlaneseq
    %v331 = vshrl.u32 %v330, 7
    %v332 = vsub.s32 1, %v331
    %v333 = vrot.slane %v260, %v332
    %v334 = vlaneseq
    %v335 = vshrl.u32 %v334, 7
    %v336 = vsub.s32 2, %v335
    %v337 = vrot.slane %v260, %v336
    %v338 = vlaneseq
    %v339 = vshrl.u32 %v338, 7
    %v340 = vsub.s32 3, %v339
    %v341 = vrot.slane %v260, %v340
    %v342 = vlaneseq
    %v343 = vshrl.u32 %v342, 7
    %v344 = vsub.s32 4, %v343
    %v345 = vrot.slane %v260, %v344
    %v346 = vlaneseq
    %v347 = vshrl.u32 %v346, 7
    %v348 = vsub.s32 5, %v347
    %v349 = vrot.slane %v260, %v348
    %v350 = vlaneseq
    %v351 = vshrl.u32 %v350, 7
    %v352 = vsub.s32 6, %v351
    %v353 = vrot.slane %v260, %v352
    %v354 = vlaneseq
    %v355 = vshrl.u32 %v354, 7
    %v356 = vsub.s32 7, %v355
    %v357 = vrot.slane %v260, %v356
    %v430 = vunpack.c.l.b16 %v261
    %v431 = vunpack.c.h.b16 %v261
    %v432 = vunpack.c.l.b16 %v262
    %v433 = vunpack.c.h.b16 %v262
    %v434 = vunpack.c.l.b16 %v263
    %v435 = vunpack.c.h.b16 %v263
    %v436 = vunpack.c.l.b16 %v264
    %v437 = vunpack.c.h.b16 %v264
    %v438 = vunpack.c.l.b16 %v265
    %v439 = vunpack.c.h.b16 %v265
    %v440 = vunpack.c.l.b16 %v266
    %v441 = vunpack.c.h.b16 %v266
    %v442 = vunpack.c.l.b16 %v267
    %v443 = vunpack.c.h.b16 %v267
    %v444 = vunpack.c.l.b16 %v268
    %v445 = vunpack.c.h.b16 %v268
    %v446 = vunpack.c.l.b16 %v269
    %v447 = vunpack.c.h.b16 %v269
    %v448 = vunpack.c.l.b16 %v270
    %v449 = vunpack.c.h.b16 %v270
    %v450 = vunpack.c.l.b16 %v271
    %v451 = vunpack.c.h.b16 %v271
    %v452 = vunpack.c.l.b16 %v272
    %v453 = vunpack.c.h.b16 %v272
    %v454 = vunpack.c.l.b16 %v273
    %v455 = vunpack.c.h.b16 %v273
    %v456 = vunpack.c.l.b16 %v274
    %v457 = vunpack.c.h.b16 %v274
    %v458 = vunpack.c.l.b16 %v275
    %v459 = vunpack.c.h.b16 %v275
    %v460 = vunpack.c.l.b16 %v276
    %v461 = vunpack.c.h.b16 %v276
    %v462 = vunpack.c.l.b16 %v277
    %v463 = vunpack.c.h.b16 %v277
    %v464 = vunpack.c.l.b16 %v278
    %v465 = vunpack.c.h.b16 %v278
    %v466 = vunpack.c.l.b16 %v279
    %v467 = vunpack.c.h.b16 %v279
    %v468 = vunpack.c.l.b16 %v280
    %v469 = vunpack.c.h.b16 %v280
    %v470 = vunpack.c.l.b16 %v281
    %v471 = vunpack.c.h.b16 %v281
    %v472 = vunpack.c.l.b16 %v282
    %v473 = vunpack.c.h.b16 %v282
    %v474 = vunpack.c.l.b16 %v283
    %v475 = vunpack.c.h.b16 %v283
    %v476 = vunpack.c.l.b16 %v284
    %v477 = vunpack.c.h.b16 %v284
    %v478 = vunpack.c.l.b16 %v285
    %v479 = vunpack.c.h.b16 %v285
    %v480 = vunpack.c.l.b16 %v286
    %v481 = vunpack.c.h.b16 %v286
    %v482 = vunpack.c.l.b16 %v287
    %v483 = vunpack.c.h.b16 %v287
    %v484 = vunpack.c.l.b16 %v288
    %v485 = vunpack.c.h.b16 %v288
    %v486 = vunpack.c.l.b16 %v289
    %v487 = vunpack.c.h.b16 %v289
    %v488 = vunpack.c.l.b16 %v290
    %v489 = vunpack.c.h.b16 %v290
    %v490 = vunpack.c.l.b16 %v291
    %v491 = vunpack.c.h.b16 %v291
    %v492 = vunpack.c.l.b16 %v292
    %v493 = vunpack.c.h.b16 %v292
    %v494 = vunpack.c.l.b16 %v293
    %v495 = vunpack.c.h.b16 %v293
    %v496 = vunpack.c.l.b16 %v294
    %v497 = vunpack.c.h.b16 %v294
    %v498 = vunpack.c.l.b16 %v295
    %v499 = vunpack.c.h.b16 %v295
    %v500 = vunpack.c.l.b16 %v296
    %v501 = vunpack.c.h.b16 %v296
    %v502 = vunpack.c.l.b16 %v297
    %v503 = vunpack.c.h.b16 %v297
    %v504 = vunpack.c.l.b16 %v298
    %v505 = vunpack.c.h.b16 %v298
    %v506 = vunpack.c.l.b16 %v299
    %v507 = vunpack.c.h.b16 %v299
    %v508 = vunpack.c.l.b16 %v300
    %v509 = vunpack.c.h.b16 %v300
    %v510 = vunpack.c.l.b16 %v301
    %v511 = vunpack.c.h.b16 %v301
    %v512 = vunpack.c.l.b16 %v302
    %v513 = vunpack.c.h.b16 %v302
    %v514 = vunpack.c.l.b16 %v303
    %v515 = vunpack.c.h.b16 %v303
    %v516 = vunpack.c.l.b16 %v304
    %v517 = vunpack.c.h.b16 %v304
    %v518 = vunpack.c.l.b16 %v305
    %v519 = vunpack.c.h.b16 %v305
    %v520 = vunpack.c.l.b16 %v306
    %v521 = vunpack.c.h.b16 %v306
    %v522 = vunpack.c.l.b16 %v307
    %v523 = vunpack.c.h.b16 %v307
    %v524 = vunpack.c.l.b16 %v308
    %v525 = vunpack.c.h.b16 %v308
    %v526 = vunpack.c.l.b16 %v309
    %v527 = vunpack.c.h.b16 %v309
    %v528 = vunpack.c.l.b16 %v310
    %v529 = vunpack.c.h.b16 %v310
    %v530 = vunpack.c.l.b16 %v311
    %v531 = vunpack.c.h.b16 %v311
    %v532 = vunpack.c.l.b16 %v312
    %v533 = vunpack.c.h.b16 %v312
    %v534 = vunpack.c.l.b16 %v313
    %v535 = vunpack.c.h.b16 %v313
    %v536 = vunpack.c.l.b16 %v314
    %v537 = vunpack.c.h.b16 %v314
    %v538 = vunpack.c.l.b16 %v315
    %v539 = vunpack.c.h.b16 %v315
    %v540 = vunpack.c.l.b16 %v316
    %v541 = vunpack.c.h.b16 %v316
    %v542 = vunpack.c.l.b16 %v317
    %v543 = vunpack.c.h.b16 %v317
    %v544 = vunpack.c.l.b16 %v318
    %v545 = vunpack.c.h.b16 %v318
    %v546 = vunpack.c.l.b16 %v319
    %v547 = vunpack.c.h.b16 %v319
    %v548 = vunpack.c.l.b16 %v320
    %v549 = vunpack.c.h.b16 %v320
    %v550 = vunpack.c.l.b16 %v321
    %v551 = vunpack.c.h.b16 %v321
    %v552 = vunpack.c.l.b16 %v322
    %v553 = vunpack.c.h.b16 %v322
    %v554 = vunpack.c.l.b16 %v323
    %v555 = vunpack.c.h.b16 %v323
    %v556 = vunpack.c.l.b16 %v324
    %v557 = vunpack.c.h.b16 %v324
    %v558 = vpack.c.b16 %v438, %v430
    %v559 = vpack.c.b16 %v439, %v431
    %v560 = vpack.c.b16 %v440, %v432
    %v561 = vpack.c.b16 %v441, %v433
    %v562 = vpack.c.b16 %v442, %v434
    %v563 = vpack.c.b16 %v443, %v435
    %v564 = vpack.c.b16 %v444, %v436
    %v565 = vpack.c.b16 %v445, %v437
    %v566 = vpack.c.b16 %v454, %v446
    %v567 = vpack.c.b16 %v455, %v447
    %v568 = vpack.c.b16 %v456, %v448
    %v569 = vpack.c.b16 %v457, %v449
    %v570 = vpack.c.b16 %v458, %v450
    %v571 = vpack.c.b16 %v459, %v451
    %v572 = vpack.c.b16 %v460, %v452
    %v573 = vpack.c.b16 %v461, %v453
    %v574 = vpack.c.b16 %v470, %v462
    %v575 = vpack.c.b16 %v471, %v463
    %v576 = vpack.c.b16 %v472, %v464
    %v577 = vpack.c.b16 %v473, %v465
    %v578 = vpack.c.b16 %v474, %v466
    %v579 = vpack.c.b16 %v475, %v467
    %v580 = vpack.c.b16 %v476, %v468
    %v581 = vpack.c.b16 %v477, %v469
    %v582 = vpack.c.b16 %v486, %v478
    %v583 = vpack.c.b16 %v487, %v479
    %v584 = vpack.c.b16 %v488, %v480
    %v585 = vpack.c.b16 %v489, %v481
    %v586 = vpack.c.b16 %v490, %v482
    %v587 = vpack.c.b16 %v491, %v483
    %v588 = vpack.c.b16 %v492, %v484
    %v589 = vpack.c.b16 %v493, %v485
    %v590 = vpack.c.b16 %v502, %v494
    %v591 = vpack.c.b16 %v503, %v495
    %v592 = vpack.c.b16 %v504, %v496
    %v593 = vpack.c.b16 %v505, %v497
    %v594 = vpack.c.b16 %v506, %v498
    %v595 = vpack.c.b16 %v507, %v499
    %v596 = vpack.c.b16 %v508, %v500
    %v597 = vpack.c.b16 %v509, %v501
    %v598 = vpack.c.b16 %v518, %v510
    %v599 = vpack.c.b16 %v519, %v511
    %v600 = vpack.c.b16 %v520, %v512
    %v601 = vpack.c.b16 %v521, %v513
    %v602 = vpack.c.b16 %v522, %v514
    %v603 = vpack.c.b16 %v523, %v515
    %v604 = vpack.c.b16 %v524, %v516
    %v605 = vpack.c.b16 %v525, %v517
    %v606 = vpack.c.b16 %v534, %v526
    %v607 = vpack.c.b16 %v535, %v527
    %v608 = vpack.c.b16 %v536, %v528
    %v609 = vpack.c.b16 %v537, %v529
    %v610 = vpack.c.b16 %v538, %v530
    %v611 = vpack.c.b16 %v539, %v531
    %v612 = vpack.c.b16 %v540, %v532
    %v613 = vpack.c.b16 %v541, %v533
    %v614 = vpack.c.b16 %v550, %v542
    %v615 = vpack.c.b16 %v551, %v543
    %v616 = vpack.c.b16 %v552, %v544
    %v617 = vpack.c.b16 %v553, %v545
    %v618 = vpack.c.b16 %v554, %v546
    %v619 = vpack.c.b16 %v555, %v547
    %v620 = vpack.c.b16 %v556, %v548
    %v621 = vpack.c.b16 %v557, %v549
    %686 = vmatprep.subr.bf16.mxu0 %v559
    %687 = vmatpush1.bf16.msra.mxu0 %v558
    %688 = vmatprep.subr.bf16.mxu0 %v567
    %689 = vmatpush1.bf16.msra.mxu0 %v566
    %690 = vmatprep.subr.bf16.mxu0 %v575
    %691 = vmatpush1.bf16.msra.mxu0 %v574
    %692 = vmatprep.subr.bf16.mxu0 %v583
    %693 = vmatpush1.bf16.msra.mxu0 %v582
    %694 = vmatprep.subr.bf16.mxu0 %v591
    %695 = vmatpush1.bf16.msra.mxu0 %v590
    %696 = vmatprep.subr.bf16.mxu0 %v599
    %697 = vmatpush1.bf16.msra.mxu0 %v598
    %698 = vmatprep.subr.bf16.mxu0 %v607
    %699 = vmatpush1.bf16.msra.mxu0 %v606
    %700 = vmatprep.subr.bf16.mxu0 %v615
    %701 = vmatpush1.bf16.msra.mxu0 %v614
    %702 = vmatprep.subr.bf16.mxu0 0
    %703 = vmatpush1.bf16.msra.mxu0 0
    %704 = vmatprep.subr.bf16.mxu0 0
    %705 = vmatpush1.bf16.msra.mxu0 0
    %706 = vmatprep.subr.bf16.mxu0 0
    %707 = vmatpush1.bf16.msra.mxu0 0
    %708 = vmatprep.subr.bf16.mxu0 0
    %709 = vmatpush1.bf16.msra.mxu0 0
    %710 = vmatprep.subr.bf16.mxu0 0
    %711 = vmatpush1.bf16.msra.mxu0 0
    %712 = vmatprep.subr.bf16.mxu0 0
    %713 = vmatpush1.bf16.msra.mxu0 0
    %714 = vmatprep.subr.bf16.mxu0 0
    %715 = vmatpush1.bf16.msra.mxu0 0
    %716 = vmatprep.subr.bf16.mxu0 0
    %717 = vmatpush1.bf16.msra.mxu0 0
    %718 = vmatprep.mubr.bf16.mxu0 0
    %719 = vmatmul.mubr.bf16.gmra.mrb[0].mxu0 %v259
    %v720 = vpop.f32.mrb[0].mxu0
    %v721 = vadd.f32 %v329, %v720
    %v722 = vpop.f32.mrb[0].mxu0
    %v723 = vadd.f32 %v333, %v722
    %v724 = vpop.f32.mrb[0].mxu0
    %v725 = vpop.f32.mrb[0].mxu0
    %726 = vdwg.mxu0
    %727 = vmatprep.subr.bf16.mxu0 %v561
    %728 = vmatpush1.bf16.msra.mxu0 %v560
    %729 = vmatprep.subr.bf16.mxu0 %v569
    %730 = vmatpush1.bf16.msra.mxu0 %v568
    %731 = vmatprep.subr.bf16.mxu0 %v577
    %732 = vmatpush1.bf16.msra.mxu0 %v576
    %733 = vmatprep.subr.bf16.mxu0 %v585
    %734 = vmatpush1.bf16.msra.mxu0 %v584
    %735 = vmatprep.subr.bf16.mxu0 %v593
    %736 = vmatpush1.bf16.msra.mxu0 %v592
    %737 = vmatprep.subr.bf16.mxu0 %v601
    %738 = vmatpush1.bf16.msra.mxu0 %v600
    %739 = vmatprep.subr.bf16.mxu0 %v609
    %740 = vmatpush1.bf16.msra.mxu0 %v608
    %741 = vmatprep.subr.bf16.mxu0 %v617
    %742 = vmatpush1.bf16.msra.mxu0 %v616
    %743 = vmatprep.subr.bf16.mxu0 0
    %744 = vmatpush1.bf16.msra.mxu0 0
    %745 = vmatprep.subr.bf16.mxu0 0
    %746 = vmatpush1.bf16.msra.mxu0 0
    %747 = vmatprep.subr.bf16.mxu0 0
    %748 = vmatpush1.bf16.msra.mxu0 0
    %749 = vmatprep.subr.bf16.mxu0 0
    %750 = vmatpush1.bf16.msra.mxu0 0
    %751 = vmatprep.subr.bf16.mxu0 0
    %752 = vmatpush1.bf16.msra.mxu0 0
    %753 = vmatprep.subr.bf16.mxu0 0
    %754 = vmatpush1.bf16.msra.mxu0 0
    %755 = vmatprep.subr.bf16.mxu0 0
    %756 = vmatpush1.bf16.msra.mxu0 0
    %757 = vmatprep.subr.bf16.mxu0 0
    %758 = vmatpush1.bf16.msra.mxu0 0
    %759 = vmatprep.mubr.bf16.mxu0 0
    %760 = vmatmul.mubr.bf16.gmra.mrb[0].mxu0 %v259
    %v761 = vpop.f32.mrb[0].mxu0
    %v762 = vadd.f32 %v337, %v761
    %v763 = vpop.f32.mrb[0].mxu0
    %v764 = vadd.f32 %v341, %v763
    %v765 = vpop.f32.mrb[0].mxu0
    %v766 = vpop.f32.mrb[0].mxu0
    %767 = vdwg.mxu0
    %768 = vmatprep.subr.bf16.mxu0 %v563
    %769 = vmatpush1.bf16.msra.mxu0 %v562
    %770 = vmatprep.subr.bf16.mxu0 %v571
    %771 = vmatpush1.bf16.msra.mxu0 %v570
    %772 = vmatprep.subr.bf16.mxu0 %v579
    %773 = vmatpush1.bf16.msra.mxu0 %v578
    %774 = vmatprep.subr.bf16.mxu0 %v587
    %775 = vmatpush1.bf16.msra.mxu0 %v586
    %776 = vmatprep.subr.bf16.mxu0 %v595
    %777 = vmatpush1.bf16.msra.mxu0 %v594
    %778 = vmatprep.subr.bf16.mxu0 %v603
    %779 = vmatpush1.bf16.msra.mxu0 %v602
    %780 = vmatprep.subr.bf16.mxu0 %v611
    %781 = vmatpush1.bf16.msra.mxu0 %v610
    %782 = vmatprep.subr.bf16.mxu0 %v619
    %783 = vmatpush1.bf16.msra.mxu0 %v618
    %784 = vmatprep.subr.bf16.mxu0 0
    %785 = vmatpush1.bf16.msra.mxu0 0
    %786 = vmatprep.subr.bf16.mxu0 0
    %787 = vmatpush1.bf16.msra.mxu0 0
    %788 = vmatprep.subr.bf16.mxu0 0
    %789 = vmatpush1.bf16.msra.mxu0 0
    %790 = vmatprep.subr.bf16.mxu0 0
    %791 = vmatpush1.bf16.msra.mxu0 0
    %792 = vmatprep.subr.bf16.mxu0 0
    %793 = vmatpush1.bf16.msra.mxu0 0
    %794 = vmatprep.subr.bf16.mxu0 0
    %795 = vmatpush1.bf16.msra.mxu0 0
    %796 = vmatprep.subr.bf16.mxu0 0
    %797 = vmatpush1.bf16.msra.mxu0 0
    %798 = vmatprep.subr.bf16.mxu0 0
    %799 = vmatpush1.bf16.msra.mxu0 0
    %800 = vmatprep.mubr.bf16.mxu0 0
    %801 = vmatmul.mubr.bf16.gmra.mrb[0].mxu0 %v259
    %v802 = vpop.f32.mrb[0].mxu0
    %v803 = vadd.f32 %v345, %v802
    %v804 = vpop.f32.mrb[0].mxu0
    %v805 = vadd.f32 %v349, %v804
    %v806 = vpop.f32.mrb[0].mxu0
    %v807 = vpop.f32.mrb[0].mxu0
    %808 = vdwg.mxu0
    %809 = vmatprep.subr.bf16.mxu0 %v565
    %810 = vmatpush1.bf16.msra.mxu0 %v564
    %811 = vmatprep.subr.bf16.mxu0 %v573
    %812 = vmatpush1.bf16.msra.mxu0 %v572
    %813 = vmatprep.subr.bf16.mxu0 %v581
    %814 = vmatpush1.bf16.msra.mxu0 %v580
    %815 = vmatprep.subr.bf16.mxu0 %v589
    %816 = vmatpush1.bf16.msra.mxu0 %v588
    %817 = vmatprep.subr.bf16.mxu0 %v597
    %818 = vmatpush1.bf16.msra.mxu0 %v596
    %819 = vmatprep.subr.bf16.mxu0 %v605
    %820 = vmatpush1.bf16.msra.mxu0 %v604
    %821 = vmatprep.subr.bf16.mxu0 %v613
    %822 = vmatpush1.bf16.msra.mxu0 %v612
    %823 = vmatprep.subr.bf16.mxu0 %v621
    %824 = vmatpush1.bf16.msra.mxu0 %v620
    %825 = vmatprep.subr.bf16.mxu0 0
    %826 = vmatpush1.bf16.msra.mxu0 0
    %827 = vmatprep.subr.bf16.mxu0 0
    %828 = vmatpush1.bf16.msra.mxu0 0
    %829 = vmatprep.subr.bf16.mxu0 0
    %830 = vmatpush1.bf16.msra.mxu0 0
    %831 = vmatprep.subr.bf16.mxu0 0
    %832 = vmatpush1.bf16.msra.mxu0 0
    %833 = vmatprep.subr.bf16.mxu0 0
    %834 = vmatpush1.bf16.msra.mxu0 0
    %835 = vmatprep.subr.bf16.mxu0 0
    %836 = vmatpush1.bf16.msra.mxu0 0
    %837 = vmatprep.subr.bf16.mxu0 0
    %838 = vmatpush1.bf16.msra.mxu0 0
    %839 = vmatprep.subr.bf16.mxu0 0
    %840 = vmatpush1.bf16.msra.mxu0 0
    %841 = vmatprep.mubr.bf16.mxu0 0
    %842 = vmatmul.mubr.bf16.gmra.mrb[0].mxu0 %v259
    %v843 = vpop.f32.mrb[0].mxu0
    %v844 = vadd.f32 %v353, %v843
    %v845 = vpop.f32.mrb[0].mxu0
    %v846 = vadd.f32 %v357, %v845
    %v847 = vpop.f32.mrb[0].mxu0
    %v848 = vpop.f32.mrb[0].mxu0
    %849 = vdwg.mxu0
    %v850 = vmul.f32 %v721, 0.01
    %v851 = vmul.f32 %v723, 0.01
    %v852 = vmul.f32 %v762, 0.01
    %v853 = vmul.f32 %v764, 0.01
    %v854 = vmul.f32 %v803, 0.01
    %v855 = vmul.f32 %v805, 0.01
    %v856 = vmul.f32 %v844, 0.01
    %v857 = vmul.f32 %v846, 0.01
    %v858 = vmax.f32 %v721, %v850
    %v859 = vmax.f32 %v723, %v851
    %v860 = vmax.f32 %v762, %v852
    %v861 = vmax.f32 %v764, %v853
    %v862 = vmax.f32 %v803, %v854
    %v863 = vmax.f32 %v805, %v855
    %v864 = vmax.f32 %v844, %v856
    %v865 = vmax.f32 %v846, %v857
    %v866 = vpack.c.bf16 %v858, %v858
    %v867 = vpack.c.bf16 %v859, %v859
    %v868 = vpack.c.bf16 %v860, %v860
    %v869 = vpack.c.bf16 %v861, %v861
    %v870 = vpack.c.bf16 %v862, %v862
    %v871 = vpack.c.bf16 %v863, %v863
    %v872 = vpack.c.bf16 %v864, %v864
    %v873 = vpack.c.bf16 %v865, %v865
    %v874 = vld [vmem:[%s8 + $0x9] sm:$0xf]
    %v875 = vld [vmem:[#allocation10] sm:$0xff]
    %v876 = vld [vmem:[#allocation10 + $0x8] sm:$0xff]
    %v877 = vld [vmem:[#allocation10 + $0x10] sm:$0xff]
    %v878 = vld [vmem:[#allocation10 + $0x18] sm:$0xff]
    %v879 = vld [vmem:[#allocation10 + $0x20] sm:$0xff]
    %v880 = vld [vmem:[#allocation10 + $0x28] sm:$0xff]
    %v881 = vld [vmem:[#allocation10 + $0x30] sm:$0xff]
    %v882 = vld [vmem:[#allocation10 + $0x38] sm:$0xff]
    %v883 = vld [vmem:[#allocation10 + $0x40] sm:$0xff]
    %v884 = vld [vmem:[#allocation10 + $0x48] sm:$0xff]
    %v885 = vld [vmem:[#allocation10 + $0x50] sm:$0xff]
    %v886 = vld [vmem:[#allocation10 + $0x58] sm:$0xff]
    %v887 = vld [vmem:[#allocation10 + $0x60] sm:$0xff]
    %v888 = vld [vmem:[#allocation10 + $0x68] sm:$0xff]
    %v889 = vld [vmem:[#allocation10 + $0x70] sm:$0xff]
    %v890 = vld [vmem:[#allocation10 + $0x78] sm:$0xff]
    %v891 = vld [vmem:[#allocation10 + $0x80] sm:$0xff]
    %v892 = vld [vmem:[#allocation10 + $0x88] sm:$0xff]
    %v893 = vld [vmem:[#allocation10 + $0x90] sm:$0xff]
    %v894 = vld [vmem:[#allocation10 + $0x98] sm:$0xff]
    %v895 = vld [vmem:[#allocation10 + $0xa0] sm:$0xff]
    %v896 = vld [vmem:[#allocation10 + $0xa8] sm:$0xff]
    %v897 = vld [vmem:[#allocation10 + $0xb0] sm:$0xff]
    %v898 = vld [vmem:[#allocation10 + $0xb8] sm:$0xff]
    %v899 = vld [vmem:[#allocation10 + $0xc0] sm:$0xff]
    %v900 = vld [vmem:[#allocation10 + $0xc8] sm:$0xff]
    %v901 = vld [vmem:[#allocation10 + $0xd0] sm:$0xff]
    %v902 = vld [vmem:[#allocation10 + $0xd8] sm:$0xff]
    %v903 = vld [vmem:[#allocation10 + $0xe0] sm:$0xff]
    %v904 = vld [vmem:[#allocation10 + $0xe8] sm:$0xff]
    %v905 = vld [vmem:[#allocation10 + $0xf0] sm:$0xff]
    %v906 = vld [vmem:[#allocation10 + $0xf8] sm:$0xff]
    %v907 = vld [vmem:[#allocation10 + $0x100] sm:$0xff]
    %v908 = vld [vmem:[#allocation10 + $0x108] sm:$0xff]
    %v909 = vld [vmem:[#allocation10 + $0x110] sm:$0xff]
    %v910 = vld [vmem:[#allocation10 + $0x118] sm:$0xff]
    %v911 = vld [vmem:[#allocation10 + $0x120] sm:$0xff]
    %v912 = vld [vmem:[#allocation10 + $0x128] sm:$0xff]
    %v913 = vld [vmem:[#allocation10 + $0x130] sm:$0xff]
    %v914 = vld [vmem:[#allocation10 + $0x138] sm:$0xff]
    %v915 = vld [vmem:[#allocation10 + $0x140] sm:$0xff]
    %v916 = vld [vmem:[#allocation10 + $0x148] sm:$0xff]
    %v917 = vld [vmem:[#allocation10 + $0x150] sm:$0xff]
    %v918 = vld [vmem:[#allocation10 + $0x158] sm:$0xff]
    %v919 = vld [vmem:[#allocation10 + $0x160] sm:$0xff]
    %v920 = vld [vmem:[#allocation10 + $0x168] sm:$0xff]
    %v921 = vld [vmem:[#allocation10 + $0x170] sm:$0xff]
    %v922 = vld [vmem:[#allocation10 + $0x178] sm:$0xff]
    %v923 = vld [vmem:[#allocation10 + $0x180] sm:$0xff]
    %v924 = vld [vmem:[#allocation10 + $0x188] sm:$0xff]
    %v925 = vld [vmem:[#allocation10 + $0x190] sm:$0xff]
    %v926 = vld [vmem:[#allocation10 + $0x198] sm:$0xff]
    %v927 = vld [vmem:[#allocation10 + $0x1a0] sm:$0xff]
    %v928 = vld [vmem:[#allocation10 + $0x1a8] sm:$0xff]
    %v929 = vld [vmem:[#allocation10 + $0x1b0] sm:$0xff]
    %v930 = vld [vmem:[#allocation10 + $0x1b8] sm:$0xff]
    %v931 = vld [vmem:[#allocation10 + $0x1c0] sm:$0xff]
    %v932 = vld [vmem:[#allocation10 + $0x1c8] sm:$0xff]
    %v933 = vld [vmem:[#allocation10 + $0x1d0] sm:$0xff]
    %v934 = vld [vmem:[#allocation10 + $0x1d8] sm:$0xff]
    %v935 = vld [vmem:[#allocation10 + $0x1e0] sm:$0xff]
    %v936 = vld [vmem:[#allocation10 + $0x1e8] sm:$0xff]
    %v937 = vld [vmem:[#allocation10 + $0x1f0] sm:$0xff]
    %v938 = vld [vmem:[#allocation10 + $0x1f8] sm:$0xff]
    %v939 = vld [vmem:[#allocation10 + $0x200] sm:$0xff]
    %v940 = vld [vmem:[#allocation10 + $0x208] sm:$0xff]
    %v941 = vld [vmem:[#allocation10 + $0x210] sm:$0xff]
    %v942 = vld [vmem:[#allocation10 + $0x218] sm:$0xff]
    %v943 = vld [vmem:[#allocation10 + $0x220] sm:$0xff]
    %v944 = vld [vmem:[#allocation10 + $0x228] sm:$0xff]
    %v945 = vld [vmem:[#allocation10 + $0x230] sm:$0xff]
    %v946 = vld [vmem:[#allocation10 + $0x238] sm:$0xff]
    %v947 = vld [vmem:[#allocation10 + $0x240] sm:$0xff]
    %v948 = vld [vmem:[#allocation10 + $0x248] sm:$0xff]
    %v949 = vld [vmem:[#allocation10 + $0x250] sm:$0xff]
    %v950 = vld [vmem:[#allocation10 + $0x258] sm:$0xff]
    %v951 = vld [vmem:[#allocation10 + $0x260] sm:$0xff]
    %v952 = vld [vmem:[#allocation10 + $0x268] sm:$0xff]
    %v953 = vld [vmem:[#allocation10 + $0x270] sm:$0xff]
    %v954 = vld [vmem:[#allocation10 + $0x278] sm:$0xff]
    %v955 = vld [vmem:[#allocation10 + $0x280] sm:$0xff]
    %v956 = vld [vmem:[#allocation10 + $0x288] sm:$0xff]
    %v957 = vld [vmem:[#allocation10 + $0x290] sm:$0xff]
    %v958 = vld [vmem:[#allocation10 + $0x298] sm:$0xff]
    %v959 = vld [vmem:[#allocation10 + $0x2a0] sm:$0xff]
    %v960 = vld [vmem:[#allocation10 + $0x2a8] sm:$0xff]
    %v961 = vld [vmem:[#allocation10 + $0x2b0] sm:$0xff]
    %v962 = vld [vmem:[#allocation10 + $0x2b8] sm:$0xff]
    %v963 = vld [vmem:[#allocation10 + $0x2c0] sm:$0xff]
    %v964 = vld [vmem:[#allocation10 + $0x2c8] sm:$0xff]
    %v965 = vld [vmem:[#allocation10 + $0x2d0] sm:$0xff]
    %v966 = vld [vmem:[#allocation10 + $0x2d8] sm:$0xff]
    %v967 = vld [vmem:[#allocation10 + $0x2e0] sm:$0xff]
    %v968 = vld [vmem:[#allocation10 + $0x2e8] sm:$0xff]
    %v969 = vld [vmem:[#allocation10 + $0x2f0] sm:$0xff]
    %v970 = vld [vmem:[#allocation10 + $0x2f8] sm:$0xff]
    %v971 = vld [vmem:[#allocation10 + $0x300] sm:$0xff]
    %v972 = vld [vmem:[#allocation10 + $0x308] sm:$0xff]
    %v973 = vld [vmem:[#allocation10 + $0x310] sm:$0xff]
    %v974 = vld [vmem:[#allocation10 + $0x318] sm:$0xff]
    %v975 = vld [vmem:[#allocation10 + $0x320] sm:$0xff]
    %v976 = vld [vmem:[#allocation10 + $0x328] sm:$0xff]
    %v977 = vld [vmem:[#allocation10 + $0x330] sm:$0xff]
    %v978 = vld [vmem:[#allocation10 + $0x338] sm:$0xff]
    %v979 = vld [vmem:[#allocation10 + $0x340] sm:$0xff]
    %v980 = vld [vmem:[#allocation10 + $0x348] sm:$0xff]
    %v981 = vld [vmem:[#allocation10 + $0x350] sm:$0xff]
    %v982 = vld [vmem:[#allocation10 + $0x358] sm:$0xff]
    %v983 = vld [vmem:[#allocation10 + $0x360] sm:$0xff]
    %v984 = vld [vmem:[#allocation10 + $0x368] sm:$0xff]
    %v985 = vld [vmem:[#allocation10 + $0x370] sm:$0xff]
    %v986 = vld [vmem:[#allocation10 + $0x378] sm:$0xff]
    %v987 = vld [vmem:[#allocation10 + $0x380] sm:$0xff]
    %v988 = vld [vmem:[#allocation10 + $0x388] sm:$0xff]
    %v989 = vld [vmem:[#allocation10 + $0x390] sm:$0xff]
    %v990 = vld [vmem:[#allocation10 + $0x398] sm:$0xff]
    %v991 = vld [vmem:[#allocation10 + $0x3a0] sm:$0xff]
    %v992 = vld [vmem:[#allocation10 + $0x3a8] sm:$0xff]
    %v993 = vld [vmem:[#allocation10 + $0x3b0] sm:$0xff]
    %v994 = vld [vmem:[#allocation10 + $0x3b8] sm:$0xff]
    %v995 = vld [vmem:[#allocation10 + $0x3c0] sm:$0xff]
    %v996 = vld [vmem:[#allocation10 + $0x3c8] sm:$0xff]
    %v997 = vld [vmem:[#allocation10 + $0x3d0] sm:$0xff]
    %v998 = vld [vmem:[#allocation10 + $0x3d8] sm:$0xff]
    %v999 = vld [vmem:[#allocation10 + $0x3e0] sm:$0xff]
    %v1000 = vld [vmem:[#allocation10 + $0x3e8] sm:$0xff]
    %v1001 = vld [vmem:[#allocation10 + $0x3f0] sm:$0xff]
    %v1002 = vld [vmem:[#allocation10 + $0x3f8] sm:$0xff]
    %v1003 = vld [vmem:[#allocation10 + $0x400] sm:$0xff]
    %v1004 = vld [vmem:[#allocation10 + $0x408] sm:$0xff]
    %v1005 = vld [vmem:[#allocation10 + $0x410] sm:$0xff]
    %v1006 = vld [vmem:[#allocation10 + $0x418] sm:$0xff]
    %v1007 = vld [vmem:[#allocation10 + $0x420] sm:$0xff]
    %v1008 = vld [vmem:[#allocation10 + $0x428] sm:$0xff]
    %v1009 = vld [vmem:[#allocation10 + $0x430] sm:$0xff]
    %v1010 = vld [vmem:[#allocation10 + $0x438] sm:$0xff]
    %v1011 = vld [vmem:[#allocation10 + $0x440] sm:$0xff]
    %v1012 = vld [vmem:[#allocation10 + $0x448] sm:$0xff]
    %v1013 = vld [vmem:[#allocation10 + $0x450] sm:$0xff]
    %v1014 = vld [vmem:[#allocation10 + $0x458] sm:$0xff]
    %v1015 = vld [vmem:[#allocation10 + $0x460] sm:$0xff]
    %v1016 = vld [vmem:[#allocation10 + $0x468] sm:$0xff]
    %v1017 = vld [vmem:[#allocation10 + $0x470] sm:$0xff]
    %v1018 = vld [vmem:[#allocation10 + $0x478] sm:$0xff]
    %v1019 = vld [vmem:[#allocation10 + $0x480] sm:$0xff]
    %v1020 = vld [vmem:[#allocation10 + $0x488] sm:$0xff]
    %v1021 = vld [vmem:[#allocation10 + $0x490] sm:$0xff]
    %v1022 = vld [vmem:[#allocation10 + $0x498] sm:$0xff]
    %v1023 = vld [vmem:[#allocation10 + $0x4a0] sm:$0xff]
    %v1024 = vld [vmem:[#allocation10 + $0x4a8] sm:$0xff]
    %v1025 = vld [vmem:[#allocation10 + $0x4b0] sm:$0xff]
    %v1026 = vld [vmem:[#allocation10 + $0x4b8] sm:$0xff]
    %v1027 = vld [vmem:[#allocation10 + $0x4c0] sm:$0xff]
    %v1028 = vld [vmem:[#allocation10 + $0x4c8] sm:$0xff]
    %v1029 = vld [vmem:[#allocation10 + $0x4d0] sm:$0xff]
    %v1030 = vld [vmem:[#allocation10 + $0x4d8] sm:$0xff]
    %v1031 = vld [vmem:[#allocation10 + $0x4e0] sm:$0xff]
    %v1032 = vld [vmem:[#allocation10 + $0x4e8] sm:$0xff]
    %v1033 = vld [vmem:[#allocation10 + $0x4f0] sm:$0xff]
    %v1034 = vld [vmem:[#allocation10 + $0x4f8] sm:$0xff]
    %v1035 = vld [vmem:[#allocation10 + $0x500] sm:$0xff]
    %v1036 = vld [vmem:[#allocation10 + $0x508] sm:$0xff]
    %v1037 = vld [vmem:[#allocation10 + $0x510] sm:$0xff]
    %v1038 = vld [vmem:[#allocation10 + $0x518] sm:$0xff]
    %v1039 = vld [vmem:[#allocation10 + $0x520] sm:$0xff]
    %v1040 = vld [vmem:[#allocation10 + $0x528] sm:$0xff]
    %v1041 = vld [vmem:[#allocation10 + $0x530] sm:$0xff]
    %v1042 = vld [vmem:[#allocation10 + $0x538] sm:$0xff]
    %v1043 = vld [vmem:[#allocation10 + $0x540] sm:$0xff]
    %v1044 = vld [vmem:[#allocation10 + $0x548] sm:$0xff]
    %v1045 = vld [vmem:[#allocation10 + $0x550] sm:$0xff]
    %v1046 = vld [vmem:[#allocation10 + $0x558] sm:$0xff]
    %v1047 = vld [vmem:[#allocation10 + $0x560] sm:$0xff]
    %v1048 = vld [vmem:[#allocation10 + $0x568] sm:$0xff]
    %v1049 = vld [vmem:[#allocation10 + $0x570] sm:$0xff]
    %v1050 = vld [vmem:[#allocation10 + $0x578] sm:$0xff]
    %v1051 = vld [vmem:[#allocation10 + $0x580] sm:$0xff]
    %v1052 = vld [vmem:[#allocation10 + $0x588] sm:$0xff]
    %v1053 = vld [vmem:[#allocation10 + $0x590] sm:$0xff]
    %v1054 = vld [vmem:[#allocation10 + $0x598] sm:$0xff]
    %v1055 = vld [vmem:[#allocation10 + $0x5a0] sm:$0xff]
    %v1056 = vld [vmem:[#allocation10 + $0x5a8] sm:$0xff]
    %v1057 = vld [vmem:[#allocation10 + $0x5b0] sm:$0xff]
    %v1058 = vld [vmem:[#allocation10 + $0x5b8] sm:$0xff]
    %v1059 = vld [vmem:[#allocation10 + $0x5c0] sm:$0xff]
    %v1060 = vld [vmem:[#allocation10 + $0x5c8] sm:$0xff]
    %v1061 = vld [vmem:[#allocation10 + $0x5d0] sm:$0xff]
    %v1062 = vld [vmem:[#allocation10 + $0x5d8] sm:$0xff]
    %v1063 = vld [vmem:[#allocation10 + $0x5e0] sm:$0xff]
    %v1064 = vld [vmem:[#allocation10 + $0x5e8] sm:$0xff]
    %v1065 = vld [vmem:[#allocation10 + $0x5f0] sm:$0xff]
    %v1066 = vld [vmem:[#allocation10 + $0x5f8] sm:$0xff]
    %v1067 = vld [vmem:[#allocation10 + $0x600] sm:$0xff]
    %v1068 = vld [vmem:[#allocation10 + $0x608] sm:$0xff]
    %v1069 = vld [vmem:[#allocation10 + $0x610] sm:$0xff]
    %v1070 = vld [vmem:[#allocation10 + $0x618] sm:$0xff]
    %v1071 = vld [vmem:[#allocation10 + $0x620] sm:$0xff]
    %v1072 = vld [vmem:[#allocation10 + $0x628] sm:$0xff]
    %v1073 = vld [vmem:[#allocation10 + $0x630] sm:$0xff]
    %v1074 = vld [vmem:[#allocation10 + $0x638] sm:$0xff]
    %v1075 = vld [vmem:[#allocation10 + $0x640] sm:$0xff]
    %v1076 = vld [vmem:[#allocation10 + $0x648] sm:$0xff]
    %v1077 = vld [vmem:[#allocation10 + $0x650] sm:$0xff]
    %v1078 = vld [vmem:[#allocation10 + $0x658] sm:$0xff]
    %v1079 = vld [vmem:[#allocation10 + $0x660] sm:$0xff]
    %v1080 = vld [vmem:[#allocation10 + $0x668] sm:$0xff]
    %v1081 = vld [vmem:[#allocation10 + $0x670] sm:$0xff]
    %v1082 = vld [vmem:[#allocation10 + $0x678] sm:$0xff]
    %v1083 = vld [vmem:[#allocation10 + $0x680] sm:$0xff]
    %v1084 = vld [vmem:[#allocation10 + $0x688] sm:$0xff]
    %v1085 = vld [vmem:[#allocation10 + $0x690] sm:$0xff]
    %v1086 = vld [vmem:[#allocation10 + $0x698] sm:$0xff]
    %v1087 = vld [vmem:[#allocation10 + $0x6a0] sm:$0xff]
    %v1088 = vld [vmem:[#allocation10 + $0x6a8] sm:$0xff]
    %v1089 = vld [vmem:[#allocation10 + $0x6b0] sm:$0xff]
    %v1090 = vld [vmem:[#allocation10 + $0x6b8] sm:$0xff]
    %v1091 = vld [vmem:[#allocation10 + $0x6c0] sm:$0xff]
    %v1092 = vld [vmem:[#allocation10 + $0x6c8] sm:$0xff]
    %v1093 = vld [vmem:[#allocation10 + $0x6d0] sm:$0xff]
    %v1094 = vld [vmem:[#allocation10 + $0x6d8] sm:$0xff]
    %v1095 = vld [vmem:[#allocation10 + $0x6e0] sm:$0xff]
    %v1096 = vld [vmem:[#allocation10 + $0x6e8] sm:$0xff]
    %v1097 = vld [vmem:[#allocation10 + $0x6f0] sm:$0xff]
    %v1098 = vld [vmem:[#allocation10 + $0x6f8] sm:$0xff]
    %v1099 = vld [vmem:[#allocation10 + $0x700] sm:$0xff]
    %v1100 = vld [vmem:[#allocation10 + $0x708] sm:$0xff]
    %v1101 = vld [vmem:[#allocation10 + $0x710] sm:$0xff]
    %v1102 = vld [vmem:[#allocation10 + $0x718] sm:$0xff]
    %v1103 = vld [vmem:[#allocation10 + $0x720] sm:$0xff]
    %v1104 = vld [vmem:[#allocation10 + $0x728] sm:$0xff]
    %v1105 = vld [vmem:[#allocation10 + $0x730] sm:$0xff]
    %v1106 = vld [vmem:[#allocation10 + $0x738] sm:$0xff]
    %v1107 = vld [vmem:[#allocation10 + $0x740] sm:$0xff]
    %v1108 = vld [vmem:[#allocation10 + $0x748] sm:$0xff]
    %v1109 = vld [vmem:[#allocation10 + $0x750] sm:$0xff]
    %v1110 = vld [vmem:[#allocation10 + $0x758] sm:$0xff]
    %v1111 = vld [vmem:[#allocation10 + $0x760] sm:$0xff]
    %v1112 = vld [vmem:[#allocation10 + $0x768] sm:$0xff]
    %v1113 = vld [vmem:[#allocation10 + $0x770] sm:$0xff]
    %v1114 = vld [vmem:[#allocation10 + $0x778] sm:$0xff]
    %v1115 = vld [vmem:[#allocation10 + $0x780] sm:$0xff]
    %v1116 = vld [vmem:[#allocation10 + $0x788] sm:$0xff]
    %v1117 = vld [vmem:[#allocation10 + $0x790] sm:$0xff]
    %v1118 = vld [vmem:[#allocation10 + $0x798] sm:$0xff]
    %v1119 = vld [vmem:[#allocation10 + $0x7a0] sm:$0xff]
    %v1120 = vld [vmem:[#allocation10 + $0x7a8] sm:$0xff]
    %v1121 = vld [vmem:[#allocation10 + $0x7b0] sm:$0xff]
    %v1122 = vld [vmem:[#allocation10 + $0x7b8] sm:$0xff]
    %v1123 = vld [vmem:[#allocation10 + $0x7c0] sm:$0xff]
    %v1124 = vld [vmem:[#allocation10 + $0x7c8] sm:$0xff]
    %v1125 = vld [vmem:[#allocation10 + $0x7d0] sm:$0xff]
    %v1126 = vld [vmem:[#allocation10 + $0x7d8] sm:$0xff]
    %v1127 = vld [vmem:[#allocation10 + $0x7e0] sm:$0xff]
    %v1128 = vld [vmem:[#allocation10 + $0x7e8] sm:$0xff]
    %v1129 = vld [vmem:[#allocation10 + $0x7f0] sm:$0xff]
    %v1130 = vld [vmem:[#allocation10 + $0x7f8] sm:$0xff]
    %v1132 = vlaneseq
    %v1133 = vshrl.u32 %v1132, 7
    %v1134 = vsub.s32 0, %v1133
    %v1135 = vrot.slane %v874, %v1134
    %v1136 = vlaneseq
    %v1137 = vshrl.u32 %v1136, 7
    %v1138 = vsub.s32 1, %v1137
    %v1139 = vrot.slane %v874, %v1138
    %v1140 = vlaneseq
    %v1141 = vshrl.u32 %v1140, 7
    %v1142 = vsub.s32 2, %v1141
    %v1143 = vrot.slane %v874, %v1142
    %v1144 = vlaneseq
    %v1145 = vshrl.u32 %v1144, 7
    %v1146 = vsub.s32 3, %v1145
    %v1147 = vrot.slane %v874, %v1146
    %v1408 = vunpack.c.l.b16 %v875
    %v1409 = vunpack.c.h.b16 %v875
    %v1410 = vunpack.c.l.b16 %v876
    %v1411 = vunpack.c.h.b16 %v876
    %v1412 = vunpack.c.l.b16 %v877
    %v1413 = vunpack.c.h.b16 %v877
    %v1414 = vunpack.c.l.b16 %v878
    %v1415 = vunpack.c.h.b16 %v878
    %v1416 = vunpack.c.l.b16 %v879
    %v1417 = vunpack.c.h.b16 %v879
    %v1418 = vunpack.c.l.b16 %v880
    %v1419 = vunpack.c.h.b16 %v880
    %v1420 = vunpack.c.l.b16 %v881
    %v1421 = vunpack.c.h.b16 %v881
    %v1422 = vunpack.c.l.b16 %v882
    %v1423 = vunpack.c.h.b16 %v882
    %v1424 = vunpack.c.l.b16 %v883
    %v1425 = vunpack.c.h.b16 %v883
    %v1426 = vunpack.c.l.b16 %v884
    %v1427 = vunpack.c.h.b16 %v884
    %v1428 = vunpack.c.l.b16 %v885
    %v1429 = vunpack.c.h.b16 %v885
    %v1430 = vunpack.c.l.b16 %v886
    %v1431 = vunpack.c.h.b16 %v886
    %v1432 = vunpack.c.l.b16 %v887
    %v1433 = vunpack.c.h.b16 %v887
    %v1434 = vunpack.c.l.b16 %v888
    %v1435 = vunpack.c.h.b16 %v888
    %v1436 = vunpack.c.l.b16 %v889
    %v1437 = vunpack.c.h.b16 %v889
    %v1438 = vunpack.c.l.b16 %v890
    %v1439 = vunpack.c.h.b16 %v890
    %v1440 = vunpack.c.l.b16 %v891
    %v1441 = vunpack.c.h.b16 %v891
    %v1442 = vunpack.c.l.b16 %v892
    %v1443 = vunpack.c.h.b16 %v892
    %v1444 = vunpack.c.l.b16 %v893
    %v1445 = vunpack.c.h.b16 %v893
    %v1446 = vunpack.c.l.b16 %v894
    %v1447 = vunpack.c.h.b16 %v894
    %v1448 = vunpack.c.l.b16 %v895
    %v1449 = vunpack.c.h.b16 %v895
    %v1450 = vunpack.c.l.b16 %v896
    %v1451 = vunpack.c.h.b16 %v896
    %v1452 = vunpack.c.l.b16 %v897
    %v1453 = vunpack.c.h.b16 %v897
    %v1454 = vunpack.c.l.b16 %v898
    %v1455 = vunpack.c.h.b16 %v898
    %v1456 = vunpack.c.l.b16 %v899
    %v1457 = vunpack.c.h.b16 %v899
    %v1458 = vunpack.c.l.b16 %v900
    %v1459 = vunpack.c.h.b16 %v900
    %v1460 = vunpack.c.l.b16 %v901
    %v1461 = vunpack.c.h.b16 %v901
    %v1462 = vunpack.c.l.b16 %v902
    %v1463 = vunpack.c.h.b16 %v902
    %v1464 = vunpack.c.l.b16 %v903
    %v1465 = vunpack.c.h.b16 %v903
    %v1466 = vunpack.c.l.b16 %v904
    %v1467 = vunpack.c.h.b16 %v904
    %v1468 = vunpack.c.l.b16 %v905
    %v1469 = vunpack.c.h.b16 %v905
    %v1470 = vunpack.c.l.b16 %v906
    %v1471 = vunpack.c.h.b16 %v906
    %v1472 = vunpack.c.l.b16 %v907
    %v1473 = vunpack.c.h.b16 %v907
    %v1474 = vunpack.c.l.b16 %v908
    %v1475 = vunpack.c.h.b16 %v908
    %v1476 = vunpack.c.l.b16 %v909
    %v1477 = vunpack.c.h.b16 %v909
    %v1478 = vunpack.c.l.b16 %v910
    %v1479 = vunpack.c.h.b16 %v910
    %v1480 = vunpack.c.l.b16 %v911
    %v1481 = vunpack.c.h.b16 %v911
    %v1482 = vunpack.c.l.b16 %v912
    %v1483 = vunpack.c.h.b16 %v912
    %v1484 = vunpack.c.l.b16 %v913
    %v1485 = vunpack.c.h.b16 %v913
    %v1486 = vunpack.c.l.b16 %v914
    %v1487 = vunpack.c.h.b16 %v914
    %v1488 = vunpack.c.l.b16 %v915
    %v1489 = vunpack.c.h.b16 %v915
    %v1490 = vunpack.c.l.b16 %v916
    %v1491 = vunpack.c.h.b16 %v916
    %v1492 = vunpack.c.l.b16 %v917
    %v1493 = vunpack.c.h.b16 %v917
    %v1494 = vunpack.c.l.b16 %v918
    %v1495 = vunpack.c.h.b16 %v918
    %v1496 = vunpack.c.l.b16 %v919
    %v1497 = vunpack.c.h.b16 %v919
    %v1498 = vunpack.c.l.b16 %v920
    %v1499 = vunpack.c.h.b16 %v920
    %v1500 = vunpack.c.l.b16 %v921
    %v1501 = vunpack.c.h.b16 %v921
    %v1502 = vunpack.c.l.b16 %v922
    %v1503 = vunpack.c.h.b16 %v922
    %v1504 = vunpack.c.l.b16 %v923
    %v1505 = vunpack.c.h.b16 %v923
    %v1506 = vunpack.c.l.b16 %v924
    %v1507 = vunpack.c.h.b16 %v924
    %v1508 = vunpack.c.l.b16 %v925
    %v1509 = vunpack.c.h.b16 %v925
    %v1510 = vunpack.c.l.b16 %v926
    %v1511 = vunpack.c.h.b16 %v926
    %v1512 = vunpack.c.l.b16 %v927
    %v1513 = vunpack.c.h.b16 %v927
    %v1514 = vunpack.c.l.b16 %v928
    %v1515 = vunpack.c.h.b16 %v928
    %v1516 = vunpack.c.l.b16 %v929
    %v1517 = vunpack.c.h.b16 %v929
    %v1518 = vunpack.c.l.b16 %v930
    %v1519 = vunpack.c.h.b16 %v930
    %v1520 = vunpack.c.l.b16 %v931
    %v1521 = vunpack.c.h.b16 %v931
    %v1522 = vunpack.c.l.b16 %v932
    %v1523 = vunpack.c.h.b16 %v932
    %v1524 = vunpack.c.l.b16 %v933
    %v1525 = vunpack.c.h.b16 %v933
    %v1526 = vunpack.c.l.b16 %v934
    %v1527 = vunpack.c.h.b16 %v934
    %v1528 = vunpack.c.l.b16 %v935
    %v1529 = vunpack.c.h.b16 %v935
    %v1530 = vunpack.c.l.b16 %v936
    %v1531 = vunpack.c.h.b16 %v936
    %v1532 = vunpack.c.l.b16 %v937
    %v1533 = vunpack.c.h.b16 %v937
    %v1534 = vunpack.c.l.b16 %v938
    %v1535 = vunpack.c.h.b16 %v938
    %v1536 = vunpack.c.l.b16 %v939
    %v1537 = vunpack.c.h.b16 %v939
    %v1538 = vunpack.c.l.b16 %v940
    %v1539 = vunpack.c.h.b16 %v940
    %v1540 = vunpack.c.l.b16 %v941
    %v1541 = vunpack.c.h.b16 %v941
    %v1542 = vunpack.c.l.b16 %v942
    %v1543 = vunpack.c.h.b16 %v942
    %v1544 = vunpack.c.l.b16 %v943
    %v1545 = vunpack.c.h.b16 %v943
    %v1546 = vunpack.c.l.b16 %v944
    %v1547 = vunpack.c.h.b16 %v944
    %v1548 = vunpack.c.l.b16 %v945
    %v1549 = vunpack.c.h.b16 %v945
    %v1550 = vunpack.c.l.b16 %v946
    %v1551 = vunpack.c.h.b16 %v946
    %v1552 = vunpack.c.l.b16 %v947
    %v1553 = vunpack.c.h.b16 %v947
    %v1554 = vunpack.c.l.b16 %v948
    %v1555 = vunpack.c.h.b16 %v948
    %v1556 = vunpack.c.l.b16 %v949
    %v1557 = vunpack.c.h.b16 %v949
    %v1558 = vunpack.c.l.b16 %v950
    %v1559 = vunpack.c.h.b16 %v950
    %v1560 = vunpack.c.l.b16 %v951
    %v1561 = vunpack.c.h.b16 %v951
    %v1562 = vunpack.c.l.b16 %v952
    %v1563 = vunpack.c.h.b16 %v952
    %v1564 = vunpack.c.l.b16 %v953
    %v1565 = vunpack.c.h.b16 %v953
    %v1566 = vunpack.c.l.b16 %v954
    %v1567 = vunpack.c.h.b16 %v954
    %v1568 = vunpack.c.l.b16 %v955
    %v1569 = vunpack.c.h.b16 %v955
    %v1570 = vunpack.c.l.b16 %v956
    %v1571 = vunpack.c.h.b16 %v956
    %v1572 = vunpack.c.l.b16 %v957
    %v1573 = vunpack.c.h.b16 %v957
    %v1574 = vunpack.c.l.b16 %v958
    %v1575 = vunpack.c.h.b16 %v958
    %v1576 = vunpack.c.l.b16 %v959
    %v1577 = vunpack.c.h.b16 %v959
    %v1578 = vunpack.c.l.b16 %v960
    %v1579 = vunpack.c.h.b16 %v960
    %v1580 = vunpack.c.l.b16 %v961
    %v1581 = vunpack.c.h.b16 %v961
    %v1582 = vunpack.c.l.b16 %v962
    %v1583 = vunpack.c.h.b16 %v962
    %v1584 = vunpack.c.l.b16 %v963
    %v1585 = vunpack.c.h.b16 %v963
    %v1586 = vunpack.c.l.b16 %v964
    %v1587 = vunpack.c.h.b16 %v964
    %v1588 = vunpack.c.l.b16 %v965
    %v1589 = vunpack.c.h.b16 %v965
    %v1590 = vunpack.c.l.b16 %v966
    %v1591 = vunpack.c.h.b16 %v966
    %v1592 = vunpack.c.l.b16 %v967
    %v1593 = vunpack.c.h.b16 %v967
    %v1594 = vunpack.c.l.b16 %v968
    %v1595 = vunpack.c.h.b16 %v968
    %v1596 = vunpack.c.l.b16 %v969
    %v1597 = vunpack.c.h.b16 %v969
    %v1598 = vunpack.c.l.b16 %v970
    %v1599 = vunpack.c.h.b16 %v970
    %v1600 = vunpack.c.l.b16 %v971
    %v1601 = vunpack.c.h.b16 %v971
    %v1602 = vunpack.c.l.b16 %v972
    %v1603 = vunpack.c.h.b16 %v972
    %v1604 = vunpack.c.l.b16 %v973
    %v1605 = vunpack.c.h.b16 %v973
    %v1606 = vunpack.c.l.b16 %v974
    %v1607 = vunpack.c.h.b16 %v974
    %v1608 = vunpack.c.l.b16 %v975
    %v1609 = vunpack.c.h.b16 %v975
    %v1610 = vunpack.c.l.b16 %v976
    %v1611 = vunpack.c.h.b16 %v976
    %v1612 = vunpack.c.l.b16 %v977
    %v1613 = vunpack.c.h.b16 %v977
    %v1614 = vunpack.c.l.b16 %v978
    %v1615 = vunpack.c.h.b16 %v978
    %v1616 = vunpack.c.l.b16 %v979
    %v1617 = vunpack.c.h.b16 %v979
    %v1618 = vunpack.c.l.b16 %v980
    %v1619 = vunpack.c.h.b16 %v980
    %v1620 = vunpack.c.l.b16 %v981
    %v1621 = vunpack.c.h.b16 %v981
    %v1622 = vunpack.c.l.b16 %v982
    %v1623 = vunpack.c.h.b16 %v982
    %v1624 = vunpack.c.l.b16 %v983
    %v1625 = vunpack.c.h.b16 %v983
    %v1626 = vunpack.c.l.b16 %v984
    %v1627 = vunpack.c.h.b16 %v984
    %v1628 = vunpack.c.l.b16 %v985
    %v1629 = vunpack.c.h.b16 %v985
    %v1630 = vunpack.c.l.b16 %v986
    %v1631 = vunpack.c.h.b16 %v986
    %v1632 = vunpack.c.l.b16 %v987
    %v1633 = vunpack.c.h.b16 %v987
    %v1634 = vunpack.c.l.b16 %v988
    %v1635 = vunpack.c.h.b16 %v988
    %v1636 = vunpack.c.l.b16 %v989
    %v1637 = vunpack.c.h.b16 %v989
    %v1638 = vunpack.c.l.b16 %v990
    %v1639 = vunpack.c.h.b16 %v990
    %v1640 = vunpack.c.l.b16 %v991
    %v1641 = vunpack.c.h.b16 %v991
    %v1642 = vunpack.c.l.b16 %v992
    %v1643 = vunpack.c.h.b16 %v992
    %v1644 = vunpack.c.l.b16 %v993
    %v1645 = vunpack.c.h.b16 %v993
    %v1646 = vunpack.c.l.b16 %v994
    %v1647 = vunpack.c.h.b16 %v994
    %v1648 = vunpack.c.l.b16 %v995
    %v1649 = vunpack.c.h.b16 %v995
    %v1650 = vunpack.c.l.b16 %v996
    %v1651 = vunpack.c.h.b16 %v996
    %v1652 = vunpack.c.l.b16 %v997
    %v1653 = vunpack.c.h.b16 %v997
    %v1654 = vunpack.c.l.b16 %v998
    %v1655 = vunpack.c.h.b16 %v998
    %v1656 = vunpack.c.l.b16 %v999
    %v1657 = vunpack.c.h.b16 %v999
    %v1658 = vunpack.c.l.b16 %v1000
    %v1659 = vunpack.c.h.b16 %v1000
    %v1660 = vunpack.c.l.b16 %v1001
    %v1661 = vunpack.c.h.b16 %v1001
    %v1662 = vunpack.c.l.b16 %v1002
    %v1663 = vunpack.c.h.b16 %v1002
    %v1664 = vunpack.c.l.b16 %v1003
    %v1665 = vunpack.c.h.b16 %v1003
    %v1666 = vunpack.c.l.b16 %v1004
    %v1667 = vunpack.c.h.b16 %v1004
    %v1668 = vunpack.c.l.b16 %v1005
    %v1669 = vunpack.c.h.b16 %v1005
    %v1670 = vunpack.c.l.b16 %v1006
    %v1671 = vunpack.c.h.b16 %v1006
    %v1672 = vunpack.c.l.b16 %v1007
    %v1673 = vunpack.c.h.b16 %v1007
    %v1674 = vunpack.c.l.b16 %v1008
    %v1675 = vunpack.c.h.b16 %v1008
    %v1676 = vunpack.c.l.b16 %v1009
    %v1677 = vunpack.c.h.b16 %v1009
    %v1678 = vunpack.c.l.b16 %v1010
    %v1679 = vunpack.c.h.b16 %v1010
    %v1680 = vunpack.c.l.b16 %v1011
    %v1681 = vunpack.c.h.b16 %v1011
    %v1682 = vunpack.c.l.b16 %v1012
    %v1683 = vunpack.c.h.b16 %v1012
    %v1684 = vunpack.c.l.b16 %v1013
    %v1685 = vunpack.c.h.b16 %v1013
    %v1686 = vunpack.c.l.b16 %v1014
    %v1687 = vunpack.c.h.b16 %v1014
    %v1688 = vunpack.c.l.b16 %v1015
    %v1689 = vunpack.c.h.b16 %v1015
    %v1690 = vunpack.c.l.b16 %v1016
    %v1691 = vunpack.c.h.b16 %v1016
    %v1692 = vunpack.c.l.b16 %v1017
    %v1693 = vunpack.c.h.b16 %v1017
    %v1694 = vunpack.c.l.b16 %v1018
    %v1695 = vunpack.c.h.b16 %v1018
    %v1696 = vunpack.c.l.b16 %v1019
    %v1697 = vunpack.c.h.b16 %v1019
    %v1698 = vunpack.c.l.b16 %v1020
    %v1699 = vunpack.c.h.b16 %v1020
    %v1700 = vunpack.c.l.b16 %v1021
    %v1701 = vunpack.c.h.b16 %v1021
    %v1702 = vunpack.c.l.b16 %v1022
    %v1703 = vunpack.c.h.b16 %v1022
    %v1704 = vunpack.c.l.b16 %v1023
    %v1705 = vunpack.c.h.b16 %v1023
    %v1706 = vunpack.c.l.b16 %v1024
    %v1707 = vunpack.c.h.b16 %v1024
    %v1708 = vunpack.c.l.b16 %v1025
    %v1709 = vunpack.c.h.b16 %v1025
    %v1710 = vunpack.c.l.b16 %v1026
    %v1711 = vunpack.c.h.b16 %v1026
    %v1712 = vunpack.c.l.b16 %v1027
    %v1713 = vunpack.c.h.b16 %v1027
    %v1714 = vunpack.c.l.b16 %v1028
    %v1715 = vunpack.c.h.b16 %v1028
    %v1716 = vunpack.c.l.b16 %v1029
    %v1717 = vunpack.c.h.b16 %v1029
    %v1718 = vunpack.c.l.b16 %v1030
    %v1719 = vunpack.c.h.b16 %v1030
    %v1720 = vunpack.c.l.b16 %v1031
    %v1721 = vunpack.c.h.b16 %v1031
    %v1722 = vunpack.c.l.b16 %v1032
    %v1723 = vunpack.c.h.b16 %v1032
    %v1724 = vunpack.c.l.b16 %v1033
    %v1725 = vunpack.c.h.b16 %v1033
    %v1726 = vunpack.c.l.b16 %v1034
    %v1727 = vunpack.c.h.b16 %v1034
    %v1728 = vunpack.c.l.b16 %v1035
    %v1729 = vunpack.c.h.b16 %v1035
    %v1730 = vunpack.c.l.b16 %v1036
    %v1731 = vunpack.c.h.b16 %v1036
    %v1732 = vunpack.c.l.b16 %v1037
    %v1733 = vunpack.c.h.b16 %v1037
    %v1734 = vunpack.c.l.b16 %v1038
    %v1735 = vunpack.c.h.b16 %v1038
    %v1736 = vunpack.c.l.b16 %v1039
    %v1737 = vunpack.c.h.b16 %v1039
    %v1738 = vunpack.c.l.b16 %v1040
    %v1739 = vunpack.c.h.b16 %v1040
    %v1740 = vunpack.c.l.b16 %v1041
    %v1741 = vunpack.c.h.b16 %v1041
    %v1742 = vunpack.c.l.b16 %v1042
    %v1743 = vunpack.c.h.b16 %v1042
    %v1744 = vunpack.c.l.b16 %v1043
    %v1745 = vunpack.c.h.b16 %v1043
    %v1746 = vunpack.c.l.b16 %v1044
    %v1747 = vunpack.c.h.b16 %v1044
    %v1748 = vunpack.c.l.b16 %v1045
    %v1749 = vunpack.c.h.b16 %v1045
    %v1750 = vunpack.c.l.b16 %v1046
    %v1751 = vunpack.c.h.b16 %v1046
    %v1752 = vunpack.c.l.b16 %v1047
    %v1753 = vunpack.c.h.b16 %v1047
    %v1754 = vunpack.c.l.b16 %v1048
    %v1755 = vunpack.c.h.b16 %v1048
    %v1756 = vunpack.c.l.b16 %v1049
    %v1757 = vunpack.c.h.b16 %v1049
    %v1758 = vunpack.c.l.b16 %v1050
    %v1759 = vunpack.c.h.b16 %v1050
    %v1760 = vunpack.c.l.b16 %v1051
    %v1761 = vunpack.c.h.b16 %v1051
    %v1762 = vunpack.c.l.b16 %v1052
    %v1763 = vunpack.c.h.b16 %v1052
    %v1764 = vunpack.c.l.b16 %v1053
    %v1765 = vunpack.c.h.b16 %v1053
    %v1766 = vunpack.c.l.b16 %v1054
    %v1767 = vunpack.c.h.b16 %v1054
    %v1768 = vunpack.c.l.b16 %v1055
    %v1769 = vunpack.c.h.b16 %v1055
    %v1770 = vunpack.c.l.b16 %v1056
    %v1771 = vunpack.c.h.b16 %v1056
    %v1772 = vunpack.c.l.b16 %v1057
    %v1773 = vunpack.c.h.b16 %v1057
    %v1774 = vunpack.c.l.b16 %v1058
    %v1775 = vunpack.c.h.b16 %v1058
    %v1776 = vunpack.c.l.b16 %v1059
    %v1777 = vunpack.c.h.b16 %v1059
    %v1778 = vunpack.c.l.b16 %v1060
    %v1779 = vunpack.c.h.b16 %v1060
    %v1780 = vunpack.c.l.b16 %v1061
    %v1781 = vunpack.c.h.b16 %v1061
    %v1782 = vunpack.c.l.b16 %v1062
    %v1783 = vunpack.c.h.b16 %v1062
    %v1784 = vunpack.c.l.b16 %v1063
    %v1785 = vunpack.c.h.b16 %v1063
    %v1786 = vunpack.c.l.b16 %v1064
    %v1787 = vunpack.c.h.b16 %v1064
    %v1788 = vunpack.c.l.b16 %v1065
    %v1789 = vunpack.c.h.b16 %v1065
    %v1790 = vunpack.c.l.b16 %v1066
    %v1791 = vunpack.c.h.b16 %v1066
    %v1792 = vunpack.c.l.b16 %v1067
    %v1793 = vunpack.c.h.b16 %v1067
    %v1794 = vunpack.c.l.b16 %v1068
    %v1795 = vunpack.c.h.b16 %v1068
    %v1796 = vunpack.c.l.b16 %v1069
    %v1797 = vunpack.c.h.b16 %v1069
    %v1798 = vunpack.c.l.b16 %v1070
    %v1799 = vunpack.c.h.b16 %v1070
    %v1800 = vunpack.c.l.b16 %v1071
    %v1801 = vunpack.c.h.b16 %v1071
    %v1802 = vunpack.c.l.b16 %v1072
    %v1803 = vunpack.c.h.b16 %v1072
    %v1804 = vunpack.c.l.b16 %v1073
    %v1805 = vunpack.c.h.b16 %v1073
    %v1806 = vunpack.c.l.b16 %v1074
    %v1807 = vunpack.c.h.b16 %v1074
    %v1808 = vunpack.c.l.b16 %v1075
    %v1809 = vunpack.c.h.b16 %v1075
    %v1810 = vunpack.c.l.b16 %v1076
    %v1811 = vunpack.c.h.b16 %v1076
    %v1812 = vunpack.c.l.b16 %v1077
    %v1813 = vunpack.c.h.b16 %v1077
    %v1814 = vunpack.c.l.b16 %v1078
    %v1815 = vunpack.c.h.b16 %v1078
    %v1816 = vunpack.c.l.b16 %v1079
    %v1817 = vunpack.c.h.b16 %v1079
    %v1818 = vunpack.c.l.b16 %v1080
    %v1819 = vunpack.c.h.b16 %v1080
    %v1820 = vunpack.c.l.b16 %v1081
    %v1821 = vunpack.c.h.b16 %v1081
    %v1822 = vunpack.c.l.b16 %v1082
    %v1823 = vunpack.c.h.b16 %v1082
    %v1824 = vunpack.c.l.b16 %v1083
    %v1825 = vunpack.c.h.b16 %v1083
    %v1826 = vunpack.c.l.b16 %v1084
    %v1827 = vunpack.c.h.b16 %v1084
    %v1828 = vunpack.c.l.b16 %v1085
    %v1829 = vunpack.c.h.b16 %v1085
    %v1830 = vunpack.c.l.b16 %v1086
    %v1831 = vunpack.c.h.b16 %v1086
    %v1832 = vunpack.c.l.b16 %v1087
    %v1833 = vunpack.c.h.b16 %v1087
    %v1834 = vunpack.c.l.b16 %v1088
    %v1835 = vunpack.c.h.b16 %v1088
    %v1836 = vunpack.c.l.b16 %v1089
    %v1837 = vunpack.c.h.b16 %v1089
    %v1838 = vunpack.c.l.b16 %v1090
    %v1839 = vunpack.c.h.b16 %v1090
    %v1840 = vunpack.c.l.b16 %v1091
    %v1841 = vunpack.c.h.b16 %v1091
    %v1842 = vunpack.c.l.b16 %v1092
    %v1843 = vunpack.c.h.b16 %v1092
    %v1844 = vunpack.c.l.b16 %v1093
    %v1845 = vunpack.c.h.b16 %v1093
    %v1846 = vunpack.c.l.b16 %v1094
    %v1847 = vunpack.c.h.b16 %v1094
    %v1848 = vunpack.c.l.b16 %v1095
    %v1849 = vunpack.c.h.b16 %v1095
    %v1850 = vunpack.c.l.b16 %v1096
    %v1851 = vunpack.c.h.b16 %v1096
    %v1852 = vunpack.c.l.b16 %v1097
    %v1853 = vunpack.c.h.b16 %v1097
    %v1854 = vunpack.c.l.b16 %v1098
    %v1855 = vunpack.c.h.b16 %v1098
    %v1856 = vunpack.c.l.b16 %v1099
    %v1857 = vunpack.c.h.b16 %v1099
    %v1858 = vunpack.c.l.b16 %v1100
    %v1859 = vunpack.c.h.b16 %v1100
    %v1860 = vunpack.c.l.b16 %v1101
    %v1861 = vunpack.c.h.b16 %v1101
    %v1862 = vunpack.c.l.b16 %v1102
    %v1863 = vunpack.c.h.b16 %v1102
    %v1864 = vunpack.c.l.b16 %v1103
    %v1865 = vunpack.c.h.b16 %v1103
    %v1866 = vunpack.c.l.b16 %v1104
    %v1867 = vunpack.c.h.b16 %v1104
    %v1868 = vunpack.c.l.b16 %v1105
    %v1869 = vunpack.c.h.b16 %v1105
    %v1870 = vunpack.c.l.b16 %v1106
    %v1871 = vunpack.c.h.b16 %v1106
    %v1872 = vunpack.c.l.b16 %v1107
    %v1873 = vunpack.c.h.b16 %v1107
    %v1874 = vunpack.c.l.b16 %v1108
    %v1875 = vunpack.c.h.b16 %v1108
    %v1876 = vunpack.c.l.b16 %v1109
    %v1877 = vunpack.c.h.b16 %v1109
    %v1878 = vunpack.c.l.b16 %v1110
    %v1879 = vunpack.c.h.b16 %v1110
    %v1880 = vunpack.c.l.b16 %v1111
    %v1881 = vunpack.c.h.b16 %v1111
    %v1882 = vunpack.c.l.b16 %v1112
    %v1883 = vunpack.c.h.b16 %v1112
    %v1884 = vunpack.c.l.b16 %v1113
    %v1885 = vunpack.c.h.b16 %v1113
    %v1886 = vunpack.c.l.b16 %v1114
    %v1887 = vunpack.c.h.b16 %v1114
    %v1888 = vunpack.c.l.b16 %v1115
    %v1889 = vunpack.c.h.b16 %v1115
    %v1890 = vunpack.c.l.b16 %v1116
    %v1891 = vunpack.c.h.b16 %v1116
    %v1892 = vunpack.c.l.b16 %v1117
    %v1893 = vunpack.c.h.b16 %v1117
    %v1894 = vunpack.c.l.b16 %v1118
    %v1895 = vunpack.c.h.b16 %v1118
    %v1896 = vunpack.c.l.b16 %v1119
    %v1897 = vunpack.c.h.b16 %v1119
    %v1898 = vunpack.c.l.b16 %v1120
    %v1899 = vunpack.c.h.b16 %v1120
    %v1900 = vunpack.c.l.b16 %v1121
    %v1901 = vunpack.c.h.b16 %v1121
    %v1902 = vunpack.c.l.b16 %v1122
    %v1903 = vunpack.c.h.b16 %v1122
    %v1904 = vunpack.c.l.b16 %v1123
    %v1905 = vunpack.c.h.b16 %v1123
    %v1906 = vunpack.c.l.b16 %v1124
    %v1907 = vunpack.c.h.b16 %v1124
    %v1908 = vunpack.c.l.b16 %v1125
    %v1909 = vunpack.c.h.b16 %v1125
    %v1910 = vunpack.c.l.b16 %v1126
    %v1911 = vunpack.c.h.b16 %v1126
    %v1912 = vunpack.c.l.b16 %v1127
    %v1913 = vunpack.c.h.b16 %v1127
    %v1914 = vunpack.c.l.b16 %v1128
    %v1915 = vunpack.c.h.b16 %v1128
    %v1916 = vunpack.c.l.b16 %v1129
    %v1917 = vunpack.c.h.b16 %v1129
    %v1918 = vunpack.c.l.b16 %v1130
    %v1919 = vunpack.c.h.b16 %v1130
    %v1920 = vpack.c.b16 %v1412, %v1408
    %v1921 = vpack.c.b16 %v1413, %v1409
    %v1922 = vpack.c.b16 %v1414, %v1410
    %v1923 = vpack.c.b16 %v1415, %v1411
    %v1924 = vpack.c.b16 %v1420, %v1416
    %v1925 = vpack.c.b16 %v1421, %v1417
    %v1926 = vpack.c.b16 %v1422, %v1418
    %v1927 = vpack.c.b16 %v1423, %v1419
    %v1928 = vpack.c.b16 %v1428, %v1424
    %v1929 = vpack.c.b16 %v1429, %v1425
    %v1930 = vpack.c.b16 %v1430, %v1426
    %v1931 = vpack.c.b16 %v1431, %v1427
    %v1932 = vpack.c.b16 %v1436, %v1432
    %v1933 = vpack.c.b16 %v1437, %v1433
    %v1934 = vpack.c.b16 %v1438, %v1434
    %v1935 = vpack.c.b16 %v1439, %v1435
    %v1936 = vpack.c.b16 %v1444, %v1440
    %v1937 = vpack.c.b16 %v1445, %v1441
    %v1938 = vpack.c.b16 %v1446, %v1442
    %v1939 = vpack.c.b16 %v1447, %v1443
    %v1940 = vpack.c.b16 %v1452, %v1448
    %v1941 = vpack.c.b16 %v1453, %v1449
    %v1942 = vpack.c.b16 %v1454, %v1450
    %v1943 = vpack.c.b16 %v1455, %v1451
    %v1944 = vpack.c.b16 %v1460, %v1456
    %v1945 = vpack.c.b16 %v1461, %v1457
    %v1946 = vpack.c.b16 %v1462, %v1458
    %v1947 = vpack.c.b16 %v1463, %v1459
    %v1948 = vpack.c.b16 %v1468, %v1464
    %v1949 = vpack.c.b16 %v1469, %v1465
    %v1950 = vpack.c.b16 %v1470, %v1466
    %v1951 = vpack.c.b16 %v1471, %v1467
    %v1952 = vpack.c.b16 %v1476, %v1472
    %v1953 = vpack.c.b16 %v1477, %v1473
    %v1954 = vpack.c.b16 %v1478, %v1474
    %v1955 = vpack.c.b16 %v1479, %v1475
    %v1956 = vpack.c.b16 %v1484, %v1480
    %v1957 = vpack.c.b16 %v1485, %v1481
    %v1958 = vpack.c.b16 %v1486, %v1482
    %v1959 = vpack.c.b16 %v1487, %v1483
    %v1960 = vpack.c.b16 %v1492, %v1488
    %v1961 = vpack.c.b16 %v1493, %v1489
    %v1962 = vpack.c.b16 %v1494, %v1490
    %v1963 = vpack.c.b16 %v1495, %v1491
    %v1964 = vpack.c.b16 %v1500, %v1496
    %v1965 = vpack.c.b16 %v1501, %v1497
    %v1966 = vpack.c.b16 %v1502, %v1498
    %v1967 = vpack.c.b16 %v1503, %v1499
    %v1968 = vpack.c.b16 %v1508, %v1504
    %v1969 = vpack.c.b16 %v1509, %v1505
    %v1970 = vpack.c.b16 %v1510, %v1506
    %v1971 = vpack.c.b16 %v1511, %v1507
    %v1972 = vpack.c.b16 %v1516, %v1512
    %v1973 = vpack.c.b16 %v1517, %v1513
    %v1974 = vpack.c.b16 %v1518, %v1514
    %v1975 = vpack.c.b16 %v1519, %v1515
    %v1976 = vpack.c.b16 %v1524, %v1520
    %v1977 = vpack.c.b16 %v1525, %v1521
    %v1978 = vpack.c.b16 %v1526, %v1522
    %v1979 = vpack.c.b16 %v1527, %v1523
    %v1980 = vpack.c.b16 %v1532, %v1528
    %v1981 = vpack.c.b16 %v1533, %v1529
    %v1982 = vpack.c.b16 %v1534, %v1530
    %v1983 = vpack.c.b16 %v1535, %v1531
    %v1984 = vpack.c.b16 %v1540, %v1536
    %v1985 = vpack.c.b16 %v1541, %v1537
    %v1986 = vpack.c.b16 %v1542, %v1538
    %v1987 = vpack.c.b16 %v1543, %v1539
    %v1988 = vpack.c.b16 %v1548, %v1544
    %v1989 = vpack.c.b16 %v1549, %v1545
    %v1990 = vpack.c.b16 %v1550, %v1546
    %v1991 = vpack.c.b16 %v1551, %v1547
    %v1992 = vpack.c.b16 %v1556, %v1552
    %v1993 = vpack.c.b16 %v1557, %v1553
    %v1994 = vpack.c.b16 %v1558, %v1554
    %v1995 = vpack.c.b16 %v1559, %v1555
    %v1996 = vpack.c.b16 %v1564, %v1560
    %v1997 = vpack.c.b16 %v1565, %v1561
    %v1998 = vpack.c.b16 %v1566, %v1562
    %v1999 = vpack.c.b16 %v1567, %v1563
    %v2000 = vpack.c.b16 %v1572, %v1568
    %v2001 = vpack.c.b16 %v1573, %v1569
    %v2002 = vpack.c.b16 %v1574, %v1570
    %v2003 = vpack.c.b16 %v1575, %v1571
    %v2004 = vpack.c.b16 %v1580, %v1576
    %v2005 = vpack.c.b16 %v1581, %v1577
    %v2006 = vpack.c.b16 %v1582, %v1578
    %v2007 = vpack.c.b16 %v1583, %v1579
    %v2008 = vpack.c.b16 %v1588, %v1584
    %v2009 = vpack.c.b16 %v1589, %v1585
    %v2010 = vpack.c.b16 %v1590, %v1586
    %v2011 = vpack.c.b16 %v1591, %v1587
    %v2012 = vpack.c.b16 %v1596, %v1592
    %v2013 = vpack.c.b16 %v1597, %v1593
    %v2014 = vpack.c.b16 %v1598, %v1594
    %v2015 = vpack.c.b16 %v1599, %v1595
    %v2016 = vpack.c.b16 %v1604, %v1600
    %v2017 = vpack.c.b16 %v1605, %v1601
    %v2018 = vpack.c.b16 %v1606, %v1602
    %v2019 = vpack.c.b16 %v1607, %v1603
    %v2020 = vpack.c.b16 %v1612, %v1608
    %v2021 = vpack.c.b16 %v1613, %v1609
    %v2022 = vpack.c.b16 %v1614, %v1610
    %v2023 = vpack.c.b16 %v1615, %v1611
    %v2024 = vpack.c.b16 %v1620, %v1616
    %v2025 = vpack.c.b16 %v1621, %v1617
    %v2026 = vpack.c.b16 %v1622, %v1618
    %v2027 = vpack.c.b16 %v1623, %v1619
    %v2028 = vpack.c.b16 %v1628, %v1624
    %v2029 = vpack.c.b16 %v1629, %v1625
    %v2030 = vpack.c.b16 %v1630, %v1626
    %v2031 = vpack.c.b16 %v1631, %v1627
    %v2032 = vpack.c.b16 %v1636, %v1632
    %v2033 = vpack.c.b16 %v1637, %v1633
    %v2034 = vpack.c.b16 %v1638, %v1634
    %v2035 = vpack.c.b16 %v1639, %v1635
    %v2036 = vpack.c.b16 %v1644, %v1640
    %v2037 = vpack.c.b16 %v1645, %v1641
    %v2038 = vpack.c.b16 %v1646, %v1642
    %v2039 = vpack.c.b16 %v1647, %v1643
    %v2040 = vpack.c.b16 %v1652, %v1648
    %v2041 = vpack.c.b16 %v1653, %v1649
    %v2042 = vpack.c.b16 %v1654, %v1650
    %v2043 = vpack.c.b16 %v1655, %v1651
    %v2044 = vpack.c.b16 %v1660, %v1656
    %v2045 = vpack.c.b16 %v1661, %v1657
    %v2046 = vpack.c.b16 %v1662, %v1658
    %v2047 = vpack.c.b16 %v1663, %v1659
    %v2048 = vpack.c.b16 %v1668, %v1664
    %v2049 = vpack.c.b16 %v1669, %v1665
    %v2050 = vpack.c.b16 %v1670, %v1666
    %v2051 = vpack.c.b16 %v1671, %v1667
    %v2052 = vpack.c.b16 %v1676, %v1672
    %v2053 = vpack.c.b16 %v1677, %v1673
    %v2054 = vpack.c.b16 %v1678, %v1674
    %v2055 = vpack.c.b16 %v1679, %v1675
    %v2056 = vpack.c.b16 %v1684, %v1680
    %v2057 = vpack.c.b16 %v1685, %v1681
    %v2058 = vpack.c.b16 %v1686, %v1682
    %v2059 = vpack.c.b16 %v1687, %v1683
    %v2060 = vpack.c.b16 %v1692, %v1688
    %v2061 = vpack.c.b16 %v1693, %v1689
    %v2062 = vpack.c.b16 %v1694, %v1690
    %v2063 = vpack.c.b16 %v1695, %v1691
    %v2064 = vpack.c.b16 %v1700, %v1696
    %v2065 = vpack.c.b16 %v1701, %v1697
    %v2066 = vpack.c.b16 %v1702, %v1698
    %v2067 = vpack.c.b16 %v1703, %v1699
    %v2068 = vpack.c.b16 %v1708, %v1704
    %v2069 = vpack.c.b16 %v1709, %v1705
    %v2070 = vpack.c.b16 %v1710, %v1706
    %v2071 = vpack.c.b16 %v1711, %v1707
    %v2072 = vpack.c.b16 %v1716, %v1712
    %v2073 = vpack.c.b16 %v1717, %v1713
    %v2074 = vpack.c.b16 %v1718, %v1714
    %v2075 = vpack.c.b16 %v1719, %v1715
    %v2076 = vpack.c.b16 %v1724, %v1720
    %v2077 = vpack.c.b16 %v1725, %v1721
    %v2078 = vpack.c.b16 %v1726, %v1722
    %v2079 = vpack.c.b16 %v1727, %v1723
    %v2080 = vpack.c.b16 %v1732, %v1728
    %v2081 = vpack.c.b16 %v1733, %v1729
    %v2082 = vpack.c.b16 %v1734, %v1730
    %v2083 = vpack.c.b16 %v1735, %v1731
    %v2084 = vpack.c.b16 %v1740, %v1736
    %v2085 = vpack.c.b16 %v1741, %v1737
    %v2086 = vpack.c.b16 %v1742, %v1738
    %v2087 = vpack.c.b16 %v1743, %v1739
    %v2088 = vpack.c.b16 %v1748, %v1744
    %v2089 = vpack.c.b16 %v1749, %v1745
    %v2090 = vpack.c.b16 %v1750, %v1746
    %v2091 = vpack.c.b16 %v1751, %v1747
    %v2092 = vpack.c.b16 %v1756, %v1752
    %v2093 = vpack.c.b16 %v1757, %v1753
    %v2094 = vpack.c.b16 %v1758, %v1754
    %v2095 = vpack.c.b16 %v1759, %v1755
    %v2096 = vpack.c.b16 %v1764, %v1760
    %v2097 = vpack.c.b16 %v1765, %v1761
    %v2098 = vpack.c.b16 %v1766, %v1762
    %v2099 = vpack.c.b16 %v1767, %v1763
    %v2100 = vpack.c.b16 %v1772, %v1768
    %v2101 = vpack.c.b16 %v1773, %v1769
    %v2102 = vpack.c.b16 %v1774, %v1770
    %v2103 = vpack.c.b16 %v1775, %v1771
    %v2104 = vpack.c.b16 %v1780, %v1776
    %v2105 = vpack.c.b16 %v1781, %v1777
    %v2106 = vpack.c.b16 %v1782, %v1778
    %v2107 = vpack.c.b16 %v1783, %v1779
    %v2108 = vpack.c.b16 %v1788, %v1784
    %v2109 = vpack.c.b16 %v1789, %v1785
    %v2110 = vpack.c.b16 %v1790, %v1786
    %v2111 = vpack.c.b16 %v1791, %v1787
    %v2112 = vpack.c.b16 %v1796, %v1792
    %v2113 = vpack.c.b16 %v1797, %v1793
    %v2114 = vpack.c.b16 %v1798, %v1794
    %v2115 = vpack.c.b16 %v1799, %v1795
    %v2116 = vpack.c.b16 %v1804, %v1800
    %v2117 = vpack.c.b16 %v1805, %v1801
    %v2118 = vpack.c.b16 %v1806, %v1802
    %v2119 = vpack.c.b16 %v1807, %v1803
    %v2120 = vpack.c.b16 %v1812, %v1808
    %v2121 = vpack.c.b16 %v1813, %v1809
    %v2122 = vpack.c.b16 %v1814, %v1810
    %v2123 = vpack.c.b16 %v1815, %v1811
    %v2124 = vpack.c.b16 %v1820, %v1816
    %v2125 = vpack.c.b16 %v1821, %v1817
    %v2126 = vpack.c.b16 %v1822, %v1818
    %v2127 = vpack.c.b16 %v1823, %v1819
    %v2128 = vpack.c.b16 %v1828, %v1824
    %v2129 = vpack.c.b16 %v1829, %v1825
    %v2130 = vpack.c.b16 %v1830, %v1826
    %v2131 = vpack.c.b16 %v1831, %v1827
    %v2132 = vpack.c.b16 %v1836, %v1832
    %v2133 = vpack.c.b16 %v1837, %v1833
    %v2134 = vpack.c.b16 %v1838, %v1834
    %v2135 = vpack.c.b16 %v1839, %v1835
    %v2136 = vpack.c.b16 %v1844, %v1840
    %v2137 = vpack.c.b16 %v1845, %v1841
    %v2138 = vpack.c.b16 %v1846, %v1842
    %v2139 = vpack.c.b16 %v1847, %v1843
    %v2140 = vpack.c.b16 %v1852, %v1848
    %v2141 = vpack.c.b16 %v1853, %v1849
    %v2142 = vpack.c.b16 %v1854, %v1850
    %v2143 = vpack.c.b16 %v1855, %v1851
    %v2144 = vpack.c.b16 %v1860, %v1856
    %v2145 = vpack.c.b16 %v1861, %v1857
    %v2146 = vpack.c.b16 %v1862, %v1858
    %v2147 = vpack.c.b16 %v1863, %v1859
    %v2148 = vpack.c.b16 %v1868, %v1864
    %v2149 = vpack.c.b16 %v1869, %v1865
    %v2150 = vpack.c.b16 %v1870, %v1866
    %v2151 = vpack.c.b16 %v1871, %v1867
    %v2152 = vpack.c.b16 %v1876, %v1872
    %v2153 = vpack.c.b16 %v1877, %v1873
    %v2154 = vpack.c.b16 %v1878, %v1874
    %v2155 = vpack.c.b16 %v1879, %v1875
    %v2156 = vpack.c.b16 %v1884, %v1880
    %v2157 = vpack.c.b16 %v1885, %v1881
    %v2158 = vpack.c.b16 %v1886, %v1882
    %v2159 = vpack.c.b16 %v1887, %v1883
    %v2160 = vpack.c.b16 %v1892, %v1888
    %v2161 = vpack.c.b16 %v1893, %v1889
    %v2162 = vpack.c.b16 %v1894, %v1890
    %v2163 = vpack.c.b16 %v1895, %v1891
    %v2164 = vpack.c.b16 %v1900, %v1896
    %v2165 = vpack.c.b16 %v1901, %v1897
    %v2166 = vpack.c.b16 %v1902, %v1898
    %v2167 = vpack.c.b16 %v1903, %v1899
    %v2168 = vpack.c.b16 %v1908, %v1904
    %v2169 = vpack.c.b16 %v1909, %v1905
    %v2170 = vpack.c.b16 %v1910, %v1906
    %v2171 = vpack.c.b16 %v1911, %v1907
    %v2172 = vpack.c.b16 %v1916, %v1912
    %v2173 = vpack.c.b16 %v1917, %v1913
    %v2174 = vpack.c.b16 %v1918, %v1914
    %v2175 = vpack.c.b16 %v1919, %v1915
    %2432 = vmatprep.subr.bf16.mxu0 %v1921
    %2433 = vmatpush1.bf16.msra.mxu0 %v1920
    %2434 = vmatprep.subr.bf16.mxu0 %v1925
    %2435 = vmatpush1.bf16.msra.mxu0 %v1924
    %2436 = vmatprep.subr.bf16.mxu0 %v1929
    %2437 = vmatpush1.bf16.msra.mxu0 %v1928
    %2438 = vmatprep.subr.bf16.mxu0 %v1933
    %2439 = vmatpush1.bf16.msra.mxu0 %v1932
    %2440 = vmatprep.subr.bf16.mxu0 %v1937
    %2441 = vmatpush1.bf16.msra.mxu0 %v1936
    %2442 = vmatprep.subr.bf16.mxu0 %v1941
    %2443 = vmatpush1.bf16.msra.mxu0 %v1940
    %2444 = vmatprep.subr.bf16.mxu0 %v1945
    %2445 = vmatpush1.bf16.msra.mxu0 %v1944
    %2446 = vmatprep.subr.bf16.mxu0 %v1949
    %2447 = vmatpush1.bf16.msra.mxu0 %v1948
    %2448 = vmatprep.subr.bf16.mxu0 %v1953
    %2449 = vmatpush1.bf16.msra.mxu0 %v1952
    %2450 = vmatprep.subr.bf16.mxu0 %v1957
    %2451 = vmatpush1.bf16.msra.mxu0 %v1956
    %2452 = vmatprep.subr.bf16.mxu0 %v1961
    %2453 = vmatpush1.bf16.msra.mxu0 %v1960
    %2454 = vmatprep.subr.bf16.mxu0 %v1965
    %2455 = vmatpush1.bf16.msra.mxu0 %v1964
    %2456 = vmatprep.subr.bf16.mxu0 %v1969
    %2457 = vmatpush1.bf16.msra.mxu0 %v1968
    %2458 = vmatprep.subr.bf16.mxu0 %v1973
    %2459 = vmatpush1.bf16.msra.mxu0 %v1972
    %2460 = vmatprep.subr.bf16.mxu0 %v1977
    %2461 = vmatpush1.bf16.msra.mxu0 %v1976
    %2462 = vmatprep.subr.bf16.mxu0 %v1981
    %2463 = vmatpush1.bf16.msra.mxu0 %v1980
    %2464 = vmatprep.mubr.bf16.mxu0 %v867
    %2465 = vmatmul.mubr.bf16.gmra.mrb[0].mxu0 %v866
    %v2466 = vpop.f32.mrb[0].mxu0
    %v2467 = vadd.f32 %v1135, %v2466
    %v2468 = vpop.f32.mrb[0].mxu0
    %v2469 = vadd.f32 %v1139, %v2468
    %v2470 = vpop.f32.mrb[0].mxu0
    %v2471 = vpop.f32.mrb[0].mxu0
    %2472 = vdwg.mxu0
    %2473 = vmatprep.subr.bf16.mxu0 %v1985
    %2474 = vmatpush1.bf16.msra.mxu0 %v1984
    %2475 = vmatprep.subr.bf16.mxu0 %v1989
    %2476 = vmatpush1.bf16.msra.mxu0 %v1988
    %2477 = vmatprep.subr.bf16.mxu0 %v1993
    %2478 = vmatpush1.bf16.msra.mxu0 %v1992
    %2479 = vmatprep.subr.bf16.mxu0 %v1997
    %2480 = vmatpush1.bf16.msra.mxu0 %v1996
    %2481 = vmatprep.subr.bf16.mxu0 %v2001
    %2482 = vmatpush1.bf16.msra.mxu0 %v2000
    %2483 = vmatprep.subr.bf16.mxu0 %v2005
    %2484 = vmatpush1.bf16.msra.mxu0 %v2004
    %2485 = vmatprep.subr.bf16.mxu0 %v2009
    %2486 = vmatpush1.bf16.msra.mxu0 %v2008
    %2487 = vmatprep.subr.bf16.mxu0 %v2013
    %2488 = vmatpush1.bf16.msra.mxu0 %v2012
    %2489 = vmatprep.subr.bf16.mxu0 %v2017
    %2490 = vmatpush1.bf16.msra.mxu0 %v2016
    %2491 = vmatprep.subr.bf16.mxu0 %v2021
    %2492 = vmatpush1.bf16.msra.mxu0 %v2020
    %2493 = vmatprep.subr.bf16.mxu0 %v2025
    %2494 = vmatpush1.bf16.msra.mxu0 %v2024
    %2495 = vmatprep.subr.bf16.mxu0 %v2029
    %2496 = vmatpush1.bf16.msra.mxu0 %v2028
    %2497 = vmatprep.subr.bf16.mxu0 %v2033
    %2498 = vmatpush1.bf16.msra.mxu0 %v2032
    %2499 = vmatprep.subr.bf16.mxu0 %v2037
    %2500 = vmatpush1.bf16.msra.mxu0 %v2036
    %2501 = vmatprep.subr.bf16.mxu0 %v2041
    %2502 = vmatpush1.bf16.msra.mxu0 %v2040
    %2503 = vmatprep.subr.bf16.mxu0 %v2045
    %2504 = vmatpush1.bf16.msra.mxu0 %v2044
    %2505 = vmatprep.mubr.bf16.mxu0 %v869
    %2506 = vmatmul.mubr.bf16.gmra.mrb[0].mxu0 %v868
    %v2507 = vpop.f32.mrb[0].mxu0
    %v2508 = vadd.f32 %v2467, %v2507
    %v2509 = vpop.f32.mrb[0].mxu0
    %v2510 = vadd.f32 %v2469, %v2509
    %v2511 = vpop.f32.mrb[0].mxu0
    %v2512 = vpop.f32.mrb[0].mxu0
    %2513 = vdwg.mxu0
    %2514 = vmatprep.subr.bf16.mxu0 %v2049
    %2515 = vmatpush1.bf16.msra.mxu0 %v2048
    %2516 = vmatprep.subr.bf16.mxu0 %v2053
    %2517 = vmatpush1.bf16.msra.mxu0 %v2052
    %2518 = vmatprep.subr.bf16.mxu0 %v2057
    %2519 = vmatpush1.bf16.msra.mxu0 %v2056
    %2520 = vmatprep.subr.bf16.mxu0 %v2061
    %2521 = vmatpush1.bf16.msra.mxu0 %v2060
    %2522 = vmatprep.subr.bf16.mxu0 %v2065
    %2523 = vmatpush1.bf16.msra.mxu0 %v2064
    %2524 = vmatprep.subr.bf16.mxu0 %v2069
    %2525 = vmatpush1.bf16.msra.mxu0 %v2068
    %2526 = vmatprep.subr.bf16.mxu0 %v2073
    %2527 = vmatpush1.bf16.msra.mxu0 %v2072
    %2528 = vmatprep.subr.bf16.mxu0 %v2077
    %2529 = vmatpush1.bf16.msra.mxu0 %v2076
    %2530 = vmatprep.subr.bf16.mxu0 %v2081
    %2531 = vmatpush1.bf16.msra.mxu0 %v2080
    %2532 = vmatprep.subr.bf16.mxu0 %v2085
    %2533 = vmatpush1.bf16.msra.mxu0 %v2084
    %2534 = vmatprep.subr.bf16.mxu0 %v2089
    %2535 = vmatpush1.bf16.msra.mxu0 %v2088
    %2536 = vmatprep.subr.bf16.mxu0 %v2093
    %2537 = vmatpush1.bf16.msra.mxu0 %v2092
    %2538 = vmatprep.subr.bf16.mxu0 %v2097
    %2539 = vmatpush1.bf16.msra.mxu0 %v2096
    %2540 = vmatprep.subr.bf16.mxu0 %v2101
    %2541 = vmatpush1.bf16.msra.mxu0 %v2100
    %2542 = vmatprep.subr.bf16.mxu0 %v2105
    %2543 = vmatpush1.bf16.msra.mxu0 %v2104
    %2544 = vmatprep.subr.bf16.mxu0 %v2109
    %2545 = vmatpush1.bf16.msra.mxu0 %v2108
    %2546 = vmatprep.mubr.bf16.mxu0 %v871
    %2547 = vmatmul.mubr.bf16.gmra.mrb[0].mxu0 %v870
    %v2548 = vpop.f32.mrb[0].mxu0
    %v2549 = vadd.f32 %v2508, %v2548
    %v2550 = vpop.f32.mrb[0].mxu0
    %v2551 = vadd.f32 %v2510, %v2550
    %v2552 = vpop.f32.mrb[0].mxu0
    %v2553 = vpop.f32.mrb[0].mxu0
    %2554 = vdwg.mxu0
    %2555 = vmatprep.subr.bf16.mxu0 %v2113
    %2556 = vmatpush1.bf16.msra.mxu0 %v2112
    %2557 = vmatprep.subr.bf16.mxu0 %v2117
    %2558 = vmatpush1.bf16.msra.mxu0 %v2116
    %2559 = vmatprep.subr.bf16.mxu0 %v2121
    %2560 = vmatpush1.bf16.msra.mxu0 %v2120
    %2561 = vmatprep.subr.bf16.mxu0 %v2125
    %2562 = vmatpush1.bf16.msra.mxu0 %v2124
    %2563 = vmatprep.subr.bf16.mxu0 %v2129
    %2564 = vmatpush1.bf16.msra.mxu0 %v2128
    %2565 = vmatprep.subr.bf16.mxu0 %v2133
    %2566 = vmatpush1.bf16.msra.mxu0 %v2132
    %2567 = vmatprep.subr.bf16.mxu0 %v2137
    %2568 = vmatpush1.bf16.msra.mxu0 %v2136
    %2569 = vmatprep.subr.bf16.mxu0 %v2141
    %2570 = vmatpush1.bf16.msra.mxu0 %v2140
    %2571 = vmatprep.subr.bf16.mxu0 %v2145
    %2572 = vmatpush1.bf16.msra.mxu0 %v2144
    %2573 = vmatprep.subr.bf16.mxu0 %v2149
    %2574 = vmatpush1.bf16.msra.mxu0 %v2148
    %2575 = vmatprep.subr.bf16.mxu0 %v2153
    %2576 = vmatpush1.bf16.msra.mxu0 %v2152
    %2577 = vmatprep.subr.bf16.mxu0 %v2157
    %2578 = vmatpush1.bf16.msra.mxu0 %v2156
    %2579 = vmatprep.subr.bf16.mxu0 %v2161
    %2580 = vmatpush1.bf16.msra.mxu0 %v2160
    %2581 = vmatprep.subr.bf16.mxu0 %v2165
    %2582 = vmatpush1.bf16.msra.mxu0 %v2164
    %2583 = vmatprep.subr.bf16.mxu0 %v2169
    %2584 = vmatpush1.bf16.msra.mxu0 %v2168
    %2585 = vmatprep.subr.bf16.mxu0 %v2173
    %2586 = vmatpush1.bf16.msra.mxu0 %v2172
    %2587 = vmatprep.mubr.bf16.mxu0 %v873
    %2588 = vmatmul.mubr.bf16.gmra.mrb[0].mxu0 %v872
    %v2589 = vpop.f32.mrb[0].mxu0
    %v2590 = vadd.f32 %v2549, %v2589
    %v2591 = vpop.f32.mrb[0].mxu0
    %v2592 = vadd.f32 %v2551, %v2591
    %v2593 = vpop.f32.mrb[0].mxu0
    %v2594 = vpop.f32.mrb[0].mxu0
    %2595 = vdwg.mxu0
    %2596 = vmatprep.subr.bf16.mxu0 %v1923
    %2597 = vmatpush1.bf16.msra.mxu0 %v1922
    %2598 = vmatprep.subr.bf16.mxu0 %v1927
    %2599 = vmatpush1.bf16.msra.mxu0 %v1926
    %2600 = vmatprep.subr.bf16.mxu0 %v1931
    %2601 = vmatpush1.bf16.msra.mxu0 %v1930
    %2602 = vmatprep.subr.bf16.mxu0 %v1935
    %2603 = vmatpush1.bf16.msra.mxu0 %v1934
    %2604 = vmatprep.subr.bf16.mxu0 %v1939
    %2605 = vmatpush1.bf16.msra.mxu0 %v1938
    %2606 = vmatprep.subr.bf16.mxu0 %v1943
    %2607 = vmatpush1.bf16.msra.mxu0 %v1942
    %2608 = vmatprep.subr.bf16.mxu0 %v1947
    %2609 = vmatpush1.bf16.msra.mxu0 %v1946
    %2610 = vmatprep.subr.bf16.mxu0 %v1951
    %2611 = vmatpush1.bf16.msra.mxu0 %v1950
    %2612 = vmatprep.subr.bf16.mxu0 %v1955
    %2613 = vmatpush1.bf16.msra.mxu0 %v1954
    %2614 = vmatprep.subr.bf16.mxu0 %v1959
    %2615 = vmatpush1.bf16.msra.mxu0 %v1958
    %2616 = vmatprep.subr.bf16.mxu0 %v1963
    %2617 = vmatpush1.bf16.msra.mxu0 %v1962
    %2618 = vmatprep.subr.bf16.mxu0 %v1967
    %2619 = vmatpush1.bf16.msra.mxu0 %v1966
    %2620 = vmatprep.subr.bf16.mxu0 %v1971
    %2621 = vmatpush1.bf16.msra.mxu0 %v1970
    %2622 = vmatprep.subr.bf16.mxu0 %v1975
    %2623 = vmatpush1.bf16.msra.mxu0 %v1974
    %2624 = vmatprep.subr.bf16.mxu0 %v1979
    %2625 = vmatpush1.bf16.msra.mxu0 %v1978
    %2626 = vmatprep.subr.bf16.mxu0 %v1983
    %2627 = vmatpush1.bf16.msra.mxu0 %v1982
    %2628 = vmatprep.mubr.bf16.mxu0 %v867
    %2629 = vmatmul.mubr.bf16.gmra.mrb[0].mxu0 %v866
    %v2630 = vpop.f32.mrb[0].mxu0
    %v2631 = vadd.f32 %v1143, %v2630
    %v2632 = vpop.f32.mrb[0].mxu0
    %v2633 = vadd.f32 %v1147, %v2632
    %v2634 = vpop.f32.mrb[0].mxu0
    %v2635 = vpop.f32.mrb[0].mxu0
    %2636 = vdwg.mxu0
    %2637 = vmatprep.subr.bf16.mxu0 %v1987
    %2638 = vmatpush1.bf16.msra.mxu0 %v1986
    %2639 = vmatprep.subr.bf16.mxu0 %v1991
    %2640 = vmatpush1.bf16.msra.mxu0 %v1990
    %2641 = vmatprep.subr.bf16.mxu0 %v1995
    %2642 = vmatpush1.bf16.msra.mxu0 %v1994
    %2643 = vmatprep.subr.bf16.mxu0 %v1999
    %2644 = vmatpush1.bf16.msra.mxu0 %v1998
    %2645 = vmatprep.subr.bf16.mxu0 %v2003
    %2646 = vmatpush1.bf16.msra.mxu0 %v2002
    %2647 = vmatprep.subr.bf16.mxu0 %v2007
    %2648 = vmatpush1.bf16.msra.mxu0 %v2006
    %2649 = vmatprep.subr.bf16.mxu0 %v2011
    %2650 = vmatpush1.bf16.msra.mxu0 %v2010
    %2651 = vmatprep.subr.bf16.mxu0 %v2015
    %2652 = vmatpush1.bf16.msra.mxu0 %v2014
    %2653 = vmatprep.subr.bf16.mxu0 %v2019
    %2654 = vmatpush1.bf16.msra.mxu0 %v2018
    %2655 = vmatprep.subr.bf16.mxu0 %v2023
    %2656 = vmatpush1.bf16.msra.mxu0 %v2022
    %2657 = vmatprep.subr.bf16.mxu0 %v2027
    %2658 = vmatpush1.bf16.msra.mxu0 %v2026
    %2659 = vmatprep.subr.bf16.mxu0 %v2031
    %2660 = vmatpush1.bf16.msra.mxu0 %v2030
    %2661 = vmatprep.subr.bf16.mxu0 %v2035
    %2662 = vmatpush1.bf16.msra.mxu0 %v2034
    %2663 = vmatprep.subr.bf16.mxu0 %v2039
    %2664 = vmatpush1.bf16.msra.mxu0 %v2038
    %2665 = vmatprep.subr.bf16.mxu0 %v2043
    %2666 = vmatpush1.bf16.msra.mxu0 %v2042
    %2667 = vmatprep.subr.bf16.mxu0 %v2047
    %2668 = vmatpush1.bf16.msra.mxu0 %v2046
    %2669 = vmatprep.mubr.bf16.mxu0 %v869
    %2670 = vmatmul.mubr.bf16.gmra.mrb[0].mxu0 %v868
    %v2671 = vpop.f32.mrb[0].mxu0
    %v2672 = vadd.f32 %v2631, %v2671
    %v2673 = vpop.f32.mrb[0].mxu0
    %v2674 = vadd.f32 %v2633, %v2673
    %v2675 = vpop.f32.mrb[0].mxu0
    %v2676 = vpop.f32.mrb[0].mxu0
    %2677 = vdwg.mxu0
    %2678 = vmatprep.subr.bf16.mxu0 %v2051
    %2679 = vmatpush1.bf16.msra.mxu0 %v2050
    %2680 = vmatprep.subr.bf16.mxu0 %v2055
    %2681 = vmatpush1.bf16.msra.mxu0 %v2054
    %2682 = vmatprep.subr.bf16.mxu0 %v2059
    %2683 = vmatpush1.bf16.msra.mxu0 %v2058
    %2684 = vmatprep.subr.bf16.mxu0 %v2063
    %2685 = vmatpush1.bf16.msra.mxu0 %v2062
    %2686 = vmatprep.subr.bf16.mxu0 %v2067
    %2687 = vmatpush1.bf16.msra.mxu0 %v2066
    %2688 = vmatprep.subr.bf16.mxu0 %v2071
    %2689 = vmatpush1.bf16.msra.mxu0 %v2070
    %2690 = vmatprep.subr.bf16.mxu0 %v2075
    %2691 = vmatpush1.bf16.msra.mxu0 %v2074
    %2692 = vmatprep.subr.bf16.mxu0 %v2079
    %2693 = vmatpush1.bf16.msra.mxu0 %v2078
    %2694 = vmatprep.subr.bf16.mxu0 %v2083
    %2695 = vmatpush1.bf16.msra.mxu0 %v2082
    %2696 = vmatprep.subr.bf16.mxu0 %v2087
    %2697 = vmatpush1.bf16.msra.mxu0 %v2086
    %2698 = vmatprep.subr.bf16.mxu0 %v2091
    %2699 = vmatpush1.bf16.msra.mxu0 %v2090
    %2700 = vmatprep.subr.bf16.mxu0 %v2095
    %2701 = vmatpush1.bf16.msra.mxu0 %v2094
    %2702 = vmatprep.subr.bf16.mxu0 %v2099
    %2703 = vmatpush1.bf16.msra.mxu0 %v2098
    %2704 = vmatprep.subr.bf16.mxu0 %v2103
    %2705 = vmatpush1.bf16.msra.mxu0 %v2102
    %2706 = vmatprep.subr.bf16.mxu0 %v2107
    %2707 = vmatpush1.bf16.msra.mxu0 %v2106
    %2708 = vmatprep.subr.bf16.mxu0 %v2111
    %2709 = vmatpush1.bf16.msra.mxu0 %v2110
    %2710 = vmatprep.mubr.bf16.mxu0 %v871
    %2711 = vmatmul.mubr.bf16.gmra.mrb[0].mxu0 %v870
    %v2712 = vpop.f32.mrb[0].mxu0
    %v2713 = vadd.f32 %v2672, %v2712
    %v2714 = vpop.f32.mrb[0].mxu0
    %v2715 = vadd.f32 %v2674, %v2714
    %v2716 = vpop.f32.mrb[0].mxu0
    %v2717 = vpop.f32.mrb[0].mxu0
    %2718 = vdwg.mxu0
    %2719 = vmatprep.subr.bf16.mxu0 %v2115
    %2720 = vmatpush1.bf16.msra.mxu0 %v2114
    %2721 = vmatprep.subr.bf16.mxu0 %v2119
    %2722 = vmatpush1.bf16.msra.mxu0 %v2118
    %2723 = vmatprep.subr.bf16.mxu0 %v2123
    %2724 = vmatpush1.bf16.msra.mxu0 %v2122
    %2725 = vmatprep.subr.bf16.mxu0 %v2127
    %2726 = vmatpush1.bf16.msra.mxu0 %v2126
    %2727 = vmatprep.subr.bf16.mxu0 %v2131
    %2728 = vmatpush1.bf16.msra.mxu0 %v2130
    %2729 = vmatprep.subr.bf16.mxu0 %v2135
    %2730 = vmatpush1.bf16.msra.mxu0 %v2134
    %2731 = vmatprep.subr.bf16.mxu0 %v2139
    %2732 = vmatpush1.bf16.msra.mxu0 %v2138
    %2733 = vmatprep.subr.bf16.mxu0 %v2143
    %2734 = vmatpush1.bf16.msra.mxu0 %v2142
    %2735 = vmatprep.subr.bf16.mxu0 %v2147
    %2736 = vmatpush1.bf16.msra.mxu0 %v2146
    %2737 = vmatprep.subr.bf16.mxu0 %v2151
    %2738 = vmatpush1.bf16.msra.mxu0 %v2150
    %2739 = vmatprep.subr.bf16.mxu0 %v2155
    %2740 = vmatpush1.bf16.msra.mxu0 %v2154
    %2741 = vmatprep.subr.bf16.mxu0 %v2159
    %2742 = vmatpush1.bf16.msra.mxu0 %v2158
    %2743 = vmatprep.subr.bf16.mxu0 %v2163
    %2744 = vmatpush1.bf16.msra.mxu0 %v2162
    %2745 = vmatprep.subr.bf16.mxu0 %v2167
    %2746 = vmatpush1.bf16.msra.mxu0 %v2166
    %2747 = vmatprep.subr.bf16.mxu0 %v2171
    %2748 = vmatpush1.bf16.msra.mxu0 %v2170
    %2749 = vmatprep.subr.bf16.mxu0 %v2175
    %2750 = vmatpush1.bf16.msra.mxu0 %v2174
    %2751 = vmatprep.mubr.bf16.mxu0 %v873
    %2752 = vmatmul.mubr.bf16.gmra.mrb[0].mxu0 %v872
    %v2753 = vpop.f32.mrb[0].mxu0
    %v2754 = vadd.f32 %v2713, %v2753
    %v2755 = vpop.f32.mrb[0].mxu0
    %v2756 = vadd.f32 %v2715, %v2755
    %v2757 = vpop.f32.mrb[0].mxu0
    %v2758 = vpop.f32.mrb[0].mxu0
    %2759 = vdwg.mxu0
    %v2760 = vmul.f32 %v2590, 0.01
    %v2761 = vmul.f32 %v2592, 0.01
    %v2762 = vmul.f32 %v2754, 0.01
    %v2763 = vmul.f32 %v2756, 0.01
    %v2764 = vmax.f32 %v2590, %v2760
    %v2765 = vmax.f32 %v2592, %v2761
    %v2766 = vmax.f32 %v2754, %v2762
    %v2767 = vmax.f32 %v2756, %v2763
    %v2768 = vpack.c.bf16 %v2764, %v2764
    %v2769 = vpack.c.bf16 %v2765, %v2765
    %v2770 = vpack.c.bf16 %v2766, %v2766
    %v2771 = vpack.c.bf16 %v2767, %v2767
    %v2772 = vld [vmem:[%s8 + $0xd] sm:$0x3]
    %v2773 = vld [vmem:[#allocation11] sm:$0xff]
    %v2774 = vld [vmem:[#allocation11 + $0x8] sm:$0xff]
    %v2775 = vld [vmem:[#allocation11 + $0x10] sm:$0xff]
    %v2776 = vld [vmem:[#allocation11 + $0x18] sm:$0xff]
    %v2777 = vld [vmem:[#allocation11 + $0x20] sm:$0xff]
    %v2778 = vld [vmem:[#allocation11 + $0x28] sm:$0xff]
    %v2779 = vld [vmem:[#allocation11 + $0x30] sm:$0xff]
    %v2780 = vld [vmem:[#allocation11 + $0x38] sm:$0xff]
    %v2781 = vld [vmem:[#allocation11 + $0x40] sm:$0xff]
    %v2782 = vld [vmem:[#allocation11 + $0x48] sm:$0xff]
    %v2783 = vld [vmem:[#allocation11 + $0x50] sm:$0xff]
    %v2784 = vld [vmem:[#allocation11 + $0x58] sm:$0xff]
    %v2785 = vld [vmem:[#allocation11 + $0x60] sm:$0xff]
    %v2786 = vld [vmem:[#allocation11 + $0x68] sm:$0xff]
    %v2787 = vld [vmem:[#allocation11 + $0x70] sm:$0xff]
    %v2788 = vld [vmem:[#allocation11 + $0x78] sm:$0xff]
    %v2789 = vld [vmem:[#allocation11 + $0x80] sm:$0xff]
    %v2790 = vld [vmem:[#allocation11 + $0x88] sm:$0xff]
    %v2791 = vld [vmem:[#allocation11 + $0x90] sm:$0xff]
    %v2792 = vld [vmem:[#allocation11 + $0x98] sm:$0xff]
    %v2793 = vld [vmem:[#allocation11 + $0xa0] sm:$0xff]
    %v2794 = vld [vmem:[#allocation11 + $0xa8] sm:$0xff]
    %v2795 = vld [vmem:[#allocation11 + $0xb0] sm:$0xff]
    %v2796 = vld [vmem:[#allocation11 + $0xb8] sm:$0xff]
    %v2797 = vld [vmem:[#allocation11 + $0xc0] sm:$0xff]
    %v2798 = vld [vmem:[#allocation11 + $0xc8] sm:$0xff]
    %v2799 = vld [vmem:[#allocation11 + $0xd0] sm:$0xff]
    %v2800 = vld [vmem:[#allocation11 + $0xd8] sm:$0xff]
    %v2801 = vld [vmem:[#allocation11 + $0xe0] sm:$0xff]
    %v2802 = vld [vmem:[#allocation11 + $0xe8] sm:$0xff]
    %v2803 = vld [vmem:[#allocation11 + $0xf0] sm:$0xff]
    %v2804 = vld [vmem:[#allocation11 + $0xf8] sm:$0xff]
    %v2805 = vld [vmem:[#allocation11 + $0x100] sm:$0xff]
    %v2806 = vld [vmem:[#allocation11 + $0x108] sm:$0xff]
    %v2807 = vld [vmem:[#allocation11 + $0x110] sm:$0xff]
    %v2808 = vld [vmem:[#allocation11 + $0x118] sm:$0xff]
    %v2809 = vld [vmem:[#allocation11 + $0x120] sm:$0xff]
    %v2810 = vld [vmem:[#allocation11 + $0x128] sm:$0xff]
    %v2811 = vld [vmem:[#allocation11 + $0x130] sm:$0xff]
    %v2812 = vld [vmem:[#allocation11 + $0x138] sm:$0xff]
    %v2813 = vld [vmem:[#allocation11 + $0x140] sm:$0xff]
    %v2814 = vld [vmem:[#allocation11 + $0x148] sm:$0xff]
    %v2815 = vld [vmem:[#allocation11 + $0x150] sm:$0xff]
    %v2816 = vld [vmem:[#allocation11 + $0x158] sm:$0xff]
    %v2817 = vld [vmem:[#allocation11 + $0x160] sm:$0xff]
    %v2818 = vld [vmem:[#allocation11 + $0x168] sm:$0xff]
    %v2819 = vld [vmem:[#allocation11 + $0x170] sm:$0xff]
    %v2820 = vld [vmem:[#allocation11 + $0x178] sm:$0xff]
    %v2821 = vld [vmem:[#allocation11 + $0x180] sm:$0xff]
    %v2822 = vld [vmem:[#allocation11 + $0x188] sm:$0xff]
    %v2823 = vld [vmem:[#allocation11 + $0x190] sm:$0xff]
    %v2824 = vld [vmem:[#allocation11 + $0x198] sm:$0xff]
    %v2825 = vld [vmem:[#allocation11 + $0x1a0] sm:$0xff]
    %v2826 = vld [vmem:[#allocation11 + $0x1a8] sm:$0xff]
    %v2827 = vld [vmem:[#allocation11 + $0x1b0] sm:$0xff]
    %v2828 = vld [vmem:[#allocation11 + $0x1b8] sm:$0xff]
    %v2829 = vld [vmem:[#allocation11 + $0x1c0] sm:$0xff]
    %v2830 = vld [vmem:[#allocation11 + $0x1c8] sm:$0xff]
    %v2831 = vld [vmem:[#allocation11 + $0x1d0] sm:$0xff]
    %v2832 = vld [vmem:[#allocation11 + $0x1d8] sm:$0xff]
    %v2833 = vld [vmem:[#allocation11 + $0x1e0] sm:$0xff]
    %v2834 = vld [vmem:[#allocation11 + $0x1e8] sm:$0xff]
    %v2835 = vld [vmem:[#allocation11 + $0x1f0] sm:$0xff]
    %v2836 = vld [vmem:[#allocation11 + $0x1f8] sm:$0xff]
    %v2838 = vlaneseq
    %v2839 = vshrl.u32 %v2838, 7
    %v2840 = vsub.s32 0, %v2839
    %v2841 = vrot.slane %v2772, %v2840
    %v2842 = vlaneseq
    %v2843 = vshrl.u32 %v2842, 7
    %v2844 = vsub.s32 1, %v2843
    %v2845 = vrot.slane %v2772, %v2844
    %v2912 = vunpack.c.l.b16 %v2773
    %v2913 = vunpack.c.h.b16 %v2773
    %v2914 = vunpack.c.l.b16 %v2774
    %v2915 = vunpack.c.h.b16 %v2774
    %v2916 = vunpack.c.l.b16 %v2775
    %v2917 = vunpack.c.h.b16 %v2775
    %v2918 = vunpack.c.l.b16 %v2776
    %v2919 = vunpack.c.h.b16 %v2776
    %v2920 = vunpack.c.l.b16 %v2777
    %v2921 = vunpack.c.h.b16 %v2777
    %v2922 = vunpack.c.l.b16 %v2778
    %v2923 = vunpack.c.h.b16 %v2778
    %v2924 = vunpack.c.l.b16 %v2779
    %v2925 = vunpack.c.h.b16 %v2779
    %v2926 = vunpack.c.l.b16 %v2780
    %v2927 = vunpack.c.h.b16 %v2780
    %v2928 = vunpack.c.l.b16 %v2781
    %v2929 = vunpack.c.h.b16 %v2781
    %v2930 = vunpack.c.l.b16 %v2782
    %v2931 = vunpack.c.h.b16 %v2782
    %v2932 = vunpack.c.l.b16 %v2783
    %v2933 = vunpack.c.h.b16 %v2783
    %v2934 = vunpack.c.l.b16 %v2784
    %v2935 = vunpack.c.h.b16 %v2784
    %v2936 = vunpack.c.l.b16 %v2785
    %v2937 = vunpack.c.h.b16 %v2785
    %v2938 = vunpack.c.l.b16 %v2786
    %v2939 = vunpack.c.h.b16 %v2786
    %v2940 = vunpack.c.l.b16 %v2787
    %v2941 = vunpack.c.h.b16 %v2787
    %v2942 = vunpack.c.l.b16 %v2788
    %v2943 = vunpack.c.h.b16 %v2788
    %v2944 = vunpack.c.l.b16 %v2789
    %v2945 = vunpack.c.h.b16 %v2789
    %v2946 = vunpack.c.l.b16 %v2790
    %v2947 = vunpack.c.h.b16 %v2790
    %v2948 = vunpack.c.l.b16 %v2791
    %v2949 = vunpack.c.h.b16 %v2791
    %v2950 = vunpack.c.l.b16 %v2792
    %v2951 = vunpack.c.h.b16 %v2792
    %v2952 = vunpack.c.l.b16 %v2793
    %v2953 = vunpack.c.h.b16 %v2793
    %v2954 = vunpack.c.l.b16 %v2794
    %v2955 = vunpack.c.h.b16 %v2794
    %v2956 = vunpack.c.l.b16 %v2795
    %v2957 = vunpack.c.h.b16 %v2795
    %v2958 = vunpack.c.l.b16 %v2796
    %v2959 = vunpack.c.h.b16 %v2796
    %v2960 = vunpack.c.l.b16 %v2797
    %v2961 = vunpack.c.h.b16 %v2797
    %v2962 = vunpack.c.l.b16 %v2798
    %v2963 = vunpack.c.h.b16 %v2798
    %v2964 = vunpack.c.l.b16 %v2799
    %v2965 = vunpack.c.h.b16 %v2799
    %v2966 = vunpack.c.l.b16 %v2800
    %v2967 = vunpack.c.h.b16 %v2800
    %v2968 = vunpack.c.l.b16 %v2801
    %v2969 = vunpack.c.h.b16 %v2801
    %v2970 = vunpack.c.l.b16 %v2802
    %v2971 = vunpack.c.h.b16 %v2802
    %v2972 = vunpack.c.l.b16 %v2803
    %v2973 = vunpack.c.h.b16 %v2803
    %v2974 = vunpack.c.l.b16 %v2804
    %v2975 = vunpack.c.h.b16 %v2804
    %v2976 = vunpack.c.l.b16 %v2805
    %v2977 = vunpack.c.h.b16 %v2805
    %v2978 = vunpack.c.l.b16 %v2806
    %v2979 = vunpack.c.h.b16 %v2806
    %v2980 = vunpack.c.l.b16 %v2807
    %v2981 = vunpack.c.h.b16 %v2807
    %v2982 = vunpack.c.l.b16 %v2808
    %v2983 = vunpack.c.h.b16 %v2808
    %v2984 = vunpack.c.l.b16 %v2809
    %v2985 = vunpack.c.h.b16 %v2809
    %v2986 = vunpack.c.l.b16 %v2810
    %v2987 = vunpack.c.h.b16 %v2810
    %v2988 = vunpack.c.l.b16 %v2811
    %v2989 = vunpack.c.h.b16 %v2811
    %v2990 = vunpack.c.l.b16 %v2812
    %v2991 = vunpack.c.h.b16 %v2812
    %v2992 = vunpack.c.l.b16 %v2813
    %v2993 = vunpack.c.h.b16 %v2813
    %v2994 = vunpack.c.l.b16 %v2814
    %v2995 = vunpack.c.h.b16 %v2814
    %v2996 = vunpack.c.l.b16 %v2815
    %v2997 = vunpack.c.h.b16 %v2815
    %v2998 = vunpack.c.l.b16 %v2816
    %v2999 = vunpack.c.h.b16 %v2816
    %v3000 = vunpack.c.l.b16 %v2817
    %v3001 = vunpack.c.h.b16 %v2817
    %v3002 = vunpack.c.l.b16 %v2818
    %v3003 = vunpack.c.h.b16 %v2818
    %v3004 = vunpack.c.l.b16 %v2819
    %v3005 = vunpack.c.h.b16 %v2819
    %v3006 = vunpack.c.l.b16 %v2820
    %v3007 = vunpack.c.h.b16 %v2820
    %v3008 = vunpack.c.l.b16 %v2821
    %v3009 = vunpack.c.h.b16 %v2821
    %v3010 = vunpack.c.l.b16 %v2822
    %v3011 = vunpack.c.h.b16 %v2822
    %v3012 = vunpack.c.l.b16 %v2823
    %v3013 = vunpack.c.h.b16 %v2823
    %v3014 = vunpack.c.l.b16 %v2824
    %v3015 = vunpack.c.h.b16 %v2824
    %v3016 = vunpack.c.l.b16 %v2825
    %v3017 = vunpack.c.h.b16 %v2825
    %v3018 = vunpack.c.l.b16 %v2826
    %v3019 = vunpack.c.h.b16 %v2826
    %v3020 = vunpack.c.l.b16 %v2827
    %v3021 = vunpack.c.h.b16 %v2827
    %v3022 = vunpack.c.l.b16 %v2828
    %v3023 = vunpack.c.h.b16 %v2828
    %v3024 = vunpack.c.l.b16 %v2829
    %v3025 = vunpack.c.h.b16 %v2829
    %v3026 = vunpack.c.l.b16 %v2830
    %v3027 = vunpack.c.h.b16 %v2830
    %v3028 = vunpack.c.l.b16 %v2831
    %v3029 = vunpack.c.h.b16 %v2831
    %v3030 = vunpack.c.l.b16 %v2832
    %v3031 = vunpack.c.h.b16 %v2832
    %v3032 = vunpack.c.l.b16 %v2833
    %v3033 = vunpack.c.h.b16 %v2833
    %v3034 = vunpack.c.l.b16 %v2834
    %v3035 = vunpack.c.h.b16 %v2834
    %v3036 = vunpack.c.l.b16 %v2835
    %v3037 = vunpack.c.h.b16 %v2835
    %v3038 = vunpack.c.l.b16 %v2836
    %v3039 = vunpack.c.h.b16 %v2836
    %v3040 = vpack.c.b16 %v2914, %v2912
    %v3041 = vpack.c.b16 %v2915, %v2913
    %v3042 = vpack.c.b16 %v2918, %v2916
    %v3043 = vpack.c.b16 %v2919, %v2917
    %v3044 = vpack.c.b16 %v2922, %v2920
    %v3045 = vpack.c.b16 %v2923, %v2921
    %v3046 = vpack.c.b16 %v2926, %v2924
    %v3047 = vpack.c.b16 %v2927, %v2925
    %v3048 = vpack.c.b16 %v2930, %v2928
    %v3049 = vpack.c.b16 %v2931, %v2929
    %v3050 = vpack.c.b16 %v2934, %v2932
    %v3051 = vpack.c.b16 %v2935, %v2933
    %v3052 = vpack.c.b16 %v2938, %v2936
    %v3053 = vpack.c.b16 %v2939, %v2937
    %v3054 = vpack.c.b16 %v2942, %v2940
    %v3055 = vpack.c.b16 %v2943, %v2941
    %v3056 = vpack.c.b16 %v2946, %v2944
    %v3057 = vpack.c.b16 %v2947, %v2945
    %v3058 = vpack.c.b16 %v2950, %v2948
    %v3059 = vpack.c.b16 %v2951, %v2949
    %v3060 = vpack.c.b16 %v2954, %v2952
    %v3061 = vpack.c.b16 %v2955, %v2953
    %v3062 = vpack.c.b16 %v2958, %v2956
    %v3063 = vpack.c.b16 %v2959, %v2957
    %v3064 = vpack.c.b16 %v2962, %v2960
    %v3065 = vpack.c.b16 %v2963, %v2961
    %v3066 = vpack.c.b16 %v2966, %v2964
    %v3067 = vpack.c.b16 %v2967, %v2965
    %v3068 = vpack.c.b16 %v2970, %v2968
    %v3069 = vpack.c.b16 %v2971, %v2969
    %v3070 = vpack.c.b16 %v2974, %v2972
    %v3071 = vpack.c.b16 %v2975, %v2973
    %v3072 = vpack.c.b16 %v2978, %v2976
    %v3073 = vpack.c.b16 %v2979, %v2977
    %v3074 = vpack.c.b16 %v2982, %v2980
    %v3075 = vpack.c.b16 %v2983, %v2981
    %v3076 = vpack.c.b16 %v2986, %v2984
    %v3077 = vpack.c.b16 %v2987, %v2985
    %v3078 = vpack.c.b16 %v2990, %v2988
    %v3079 = vpack.c.b16 %v2991, %v2989
    %v3080 = vpack.c.b16 %v2994, %v2992
    %v3081 = vpack.c.b16 %v2995, %v2993
    %v3082 = vpack.c.b16 %v2998, %v2996
    %v3083 = vpack.c.b16 %v2999, %v2997
    %v3084 = vpack.c.b16 %v3002, %v3000
    %v3085 = vpack.c.b16 %v3003, %v3001
    %v3086 = vpack.c.b16 %v3006, %v3004
    %v3087 = vpack.c.b16 %v3007, %v3005
    %v3088 = vpack.c.b16 %v3010, %v3008
    %v3089 = vpack.c.b16 %v3011, %v3009
    %v3090 = vpack.c.b16 %v3014, %v3012
    %v3091 = vpack.c.b16 %v3015, %v3013
    %v3092 = vpack.c.b16 %v3018, %v3016
    %v3093 = vpack.c.b16 %v3019, %v3017
    %v3094 = vpack.c.b16 %v3022, %v3020
    %v3095 = vpack.c.b16 %v3023, %v3021
    %v3096 = vpack.c.b16 %v3026, %v3024
    %v3097 = vpack.c.b16 %v3027, %v3025
    %v3098 = vpack.c.b16 %v3030, %v3028
    %v3099 = vpack.c.b16 %v3031, %v3029
    %v3100 = vpack.c.b16 %v3034, %v3032
    %v3101 = vpack.c.b16 %v3035, %v3033
    %v3102 = vpack.c.b16 %v3038, %v3036
    %v3103 = vpack.c.b16 %v3039, %v3037
    %3168 = vmatprep.subr.bf16.mxu0 %v3041
    %3169 = vmatpush1.bf16.msra.mxu0 %v3040
    %3170 = vmatprep.subr.bf16.mxu0 %v3043
    %3171 = vmatpush1.bf16.msra.mxu0 %v3042
    %3172 = vmatprep.subr.bf16.mxu0 %v3045
    %3173 = vmatpush1.bf16.msra.mxu0 %v3044
    %3174 = vmatprep.subr.bf16.mxu0 %v3047
    %3175 = vmatpush1.bf16.msra.mxu0 %v3046
    %3176 = vmatprep.subr.bf16.mxu0 %v3049
    %3177 = vmatpush1.bf16.msra.mxu0 %v3048
    %3178 = vmatprep.subr.bf16.mxu0 %v3051
    %3179 = vmatpush1.bf16.msra.mxu0 %v3050
    %3180 = vmatprep.subr.bf16.mxu0 %v3053
    %3181 = vmatpush1.bf16.msra.mxu0 %v3052
    %3182 = vmatprep.subr.bf16.mxu0 %v3055
    %3183 = vmatpush1.bf16.msra.mxu0 %v3054
    %3184 = vmatprep.subr.bf16.mxu0 %v3057
    %3185 = vmatpush1.bf16.msra.mxu0 %v3056
    %3186 = vmatprep.subr.bf16.mxu0 %v3059
    %3187 = vmatpush1.bf16.msra.mxu0 %v3058
    %3188 = vmatprep.subr.bf16.mxu0 %v3061
    %3189 = vmatpush1.bf16.msra.mxu0 %v3060
    %3190 = vmatprep.subr.bf16.mxu0 %v3063
    %3191 = vmatpush1.bf16.msra.mxu0 %v3062
    %3192 = vmatprep.subr.bf16.mxu0 %v3065
    %3193 = vmatpush1.bf16.msra.mxu0 %v3064
    %3194 = vmatprep.subr.bf16.mxu0 %v3067
    %3195 = vmatpush1.bf16.msra.mxu0 %v3066
    %3196 = vmatprep.subr.bf16.mxu0 %v3069
    %3197 = vmatpush1.bf16.msra.mxu0 %v3068
    %3198 = vmatprep.subr.bf16.mxu0 %v3071
    %3199 = vmatpush1.bf16.msra.mxu0 %v3070
    %3200 = vmatprep.mubr.bf16.mxu0 %v2769
    %3201 = vmatmul.mubr.bf16.gmra.mrb[0].mxu0 %v2768
    %v3202 = vpop.f32.mrb[0].mxu0
    %v3203 = vadd.f32 %v2841, %v3202
    %v3204 = vpop.f32.mrb[0].mxu0
    %v3205 = vadd.f32 %v2845, %v3204
    %v3206 = vpop.f32.mrb[0].mxu0
    %v3207 = vpop.f32.mrb[0].mxu0
    %3208 = vdwg.mxu0
    %3209 = vmatprep.subr.bf16.mxu0 %v3073
    %3210 = vmatpush1.bf16.msra.mxu0 %v3072
    %3211 = vmatprep.subr.bf16.mxu0 %v3075
    %3212 = vmatpush1.bf16.msra.mxu0 %v3074
    %3213 = vmatprep.subr.bf16.mxu0 %v3077
    %3214 = vmatpush1.bf16.msra.mxu0 %v3076
    %3215 = vmatprep.subr.bf16.mxu0 %v3079
    %3216 = vmatpush1.bf16.msra.mxu0 %v3078
    %3217 = vmatprep.subr.bf16.mxu0 %v3081
    %3218 = vmatpush1.bf16.msra.mxu0 %v3080
    %3219 = vmatprep.subr.bf16.mxu0 %v3083
    %3220 = vmatpush1.bf16.msra.mxu0 %v3082
    %3221 = vmatprep.subr.bf16.mxu0 %v3085
    %3222 = vmatpush1.bf16.msra.mxu0 %v3084
    %3223 = vmatprep.subr.bf16.mxu0 %v3087
    %3224 = vmatpush1.bf16.msra.mxu0 %v3086
    %3225 = vmatprep.subr.bf16.mxu0 %v3089
    %3226 = vmatpush1.bf16.msra.mxu0 %v3088
    %3227 = vmatprep.subr.bf16.mxu0 %v3091
    %3228 = vmatpush1.bf16.msra.mxu0 %v3090
    %3229 = vmatprep.subr.bf16.mxu0 %v3093
    %3230 = vmatpush1.bf16.msra.mxu0 %v3092
    %3231 = vmatprep.subr.bf16.mxu0 %v3095
    %3232 = vmatpush1.bf16.msra.mxu0 %v3094
    %3233 = vmatprep.subr.bf16.mxu0 %v3097
    %3234 = vmatpush1.bf16.msra.mxu0 %v3096
    %3235 = vmatprep.subr.bf16.mxu0 %v3099
    %3236 = vmatpush1.bf16.msra.mxu0 %v3098
    %3237 = vmatprep.subr.bf16.mxu0 %v3101
    %3238 = vmatpush1.bf16.msra.mxu0 %v3100
    %3239 = vmatprep.subr.bf16.mxu0 %v3103
    %3240 = vmatpush1.bf16.msra.mxu0 %v3102
    %3241 = vmatprep.mubr.bf16.mxu0 %v2771
    %3242 = vmatmul.mubr.bf16.gmra.mrb[0].mxu0 %v2770
    %v3243 = vpop.f32.mrb[0].mxu0
    %v3244 = vadd.f32 %v3203, %v3243
    %v3245 = vpop.f32.mrb[0].mxu0
    %v3246 = vadd.f32 %v3205, %v3245
    %v3247 = vpop.f32.mrb[0].mxu0
    %v3248 = vpop.f32.mrb[0].mxu0
    %3249 = vdwg.mxu0
    %v3250 = vmul.f32 %v3244, 0.01
    %v3251 = vmul.f32 %v3246, 0.01
    %v3252 = vmax.f32 %v3244, %v3250
    %v3253 = vmax.f32 %v3246, %v3251
    %v3254 = vpack.c.bf16 %v3252, %v3252
    %v3255 = vpack.c.bf16 %v3253, %v3253
    %v3256 = vld [vmem:[%s8 + $0xf] sm:$0x1]
    %v3257 = vld [vmem:[#allocation13] sm:$0xf]
    %v3258 = vld [vmem:[#allocation13 + $0x4] sm:$0xf]
    %v3259 = vld [vmem:[#allocation13 + $0x8] sm:$0xf]
    %v3260 = vld [vmem:[#allocation13 + $0xc] sm:$0xf]
    %v3261 = vld [vmem:[#allocation13 + $0x10] sm:$0xf]
    %v3262 = vld [vmem:[#allocation13 + $0x14] sm:$0xf]
    %v3263 = vld [vmem:[#allocation13 + $0x18] sm:$0xf]
    %v3264 = vld [vmem:[#allocation13 + $0x1c] sm:$0xf]
    %v3265 = vld [vmem:[#allocation13 + $0x20] sm:$0xf]
    %v3266 = vld [vmem:[#allocation13 + $0x24] sm:$0xf]
    %v3267 = vld [vmem:[#allocation13 + $0x28] sm:$0xf]
    %v3268 = vld [vmem:[#allocation13 + $0x2c] sm:$0xf]
    %v3269 = vld [vmem:[#allocation13 + $0x30] sm:$0xf]
    %v3270 = vld [vmem:[#allocation13 + $0x34] sm:$0xf]
    %v3271 = vld [vmem:[#allocation13 + $0x38] sm:$0xf]
    %v3272 = vld [vmem:[#allocation13 + $0x3c] sm:$0xf]
    %v3273 = vld [vmem:[#allocation13 + $0x40] sm:$0xf]
    %v3274 = vld [vmem:[#allocation13 + $0x44] sm:$0xf]
    %v3275 = vld [vmem:[#allocation13 + $0x48] sm:$0xf]
    %v3276 = vld [vmem:[#allocation13 + $0x4c] sm:$0xf]
    %v3277 = vld [vmem:[#allocation13 + $0x50] sm:$0xf]
    %v3278 = vld [vmem:[#allocation13 + $0x54] sm:$0xf]
    %v3279 = vld [vmem:[#allocation13 + $0x58] sm:$0xf]
    %v3280 = vld [vmem:[#allocation13 + $0x5c] sm:$0xf]
    %v3281 = vld [vmem:[#allocation13 + $0x60] sm:$0xf]
    %v3282 = vld [vmem:[#allocation13 + $0x64] sm:$0xf]
    %v3283 = vld [vmem:[#allocation13 + $0x68] sm:$0xf]
    %v3284 = vld [vmem:[#allocation13 + $0x6c] sm:$0xf]
    %v3285 = vld [vmem:[#allocation13 + $0x70] sm:$0xf]
    %v3286 = vld [vmem:[#allocation13 + $0x74] sm:$0xf]
    %v3287 = vld [vmem:[#allocation13 + $0x78] sm:$0xf]
    %v3288 = vld [vmem:[#allocation13 + $0x7c] sm:$0xf]
    %v3290 = vlaneseq
    %v3291 = vshrl.u32 %v3290, 7
    %v3292 = vsub.s32 0, %v3291
    %v3293 = vrot.slane %v3256, %v3292
    %v3327 = vunpack.c.l.b16 %v3257
    %v3328 = vunpack.c.l.b16 %v3258
    %v3329 = vunpack.c.l.b16 %v3259
    %v3330 = vunpack.c.l.b16 %v3260
    %v3331 = vunpack.c.l.b16 %v3261
    %v3332 = vunpack.c.l.b16 %v3262
    %v3333 = vunpack.c.l.b16 %v3263
    %v3334 = vunpack.c.l.b16 %v3264
    %v3335 = vunpack.c.l.b16 %v3265
    %v3336 = vunpack.c.l.b16 %v3266
    %v3337 = vunpack.c.l.b16 %v3267
    %v3338 = vunpack.c.l.b16 %v3268
    %v3339 = vunpack.c.l.b16 %v3269
    %v3340 = vunpack.c.l.b16 %v3270
    %v3341 = vunpack.c.l.b16 %v3271
    %v3342 = vunpack.c.l.b16 %v3272
    %v3343 = vunpack.c.l.b16 %v3273
    %v3344 = vunpack.c.l.b16 %v3274
    %v3345 = vunpack.c.l.b16 %v3275
    %v3346 = vunpack.c.l.b16 %v3276
    %v3347 = vunpack.c.l.b16 %v3277
    %v3348 = vunpack.c.l.b16 %v3278
    %v3349 = vunpack.c.l.b16 %v3279
    %v3350 = vunpack.c.l.b16 %v3280
    %v3351 = vunpack.c.l.b16 %v3281
    %v3352 = vunpack.c.l.b16 %v3282
    %v3353 = vunpack.c.l.b16 %v3283
    %v3354 = vunpack.c.l.b16 %v3284
    %v3355 = vunpack.c.l.b16 %v3285
    %v3356 = vunpack.c.l.b16 %v3286
    %v3357 = vunpack.c.l.b16 %v3287
    %v3358 = vunpack.c.l.b16 %v3288
    %v3359 = vpack.c.b16 %v3328, %v3327
    %v3360 = vpack.c.b16 %v3330, %v3329
    %v3361 = vpack.c.b16 %v3332, %v3331
    %v3362 = vpack.c.b16 %v3334, %v3333
    %v3363 = vpack.c.b16 %v3336, %v3335
    %v3364 = vpack.c.b16 %v3338, %v3337
    %v3365 = vpack.c.b16 %v3340, %v3339
    %v3366 = vpack.c.b16 %v3342, %v3341
    %v3367 = vpack.c.b16 %v3344, %v3343
    %v3368 = vpack.c.b16 %v3346, %v3345
    %v3369 = vpack.c.b16 %v3348, %v3347
    %v3370 = vpack.c.b16 %v3350, %v3349
    %v3371 = vpack.c.b16 %v3352, %v3351
    %v3372 = vpack.c.b16 %v3354, %v3353
    %v3373 = vpack.c.b16 %v3356, %v3355
    %v3374 = vpack.c.b16 %v3358, %v3357
    %3391 = vmatprep.subr.bf16.mxu0 0
    %3392 = vmatpush1.bf16.msra.mxu0 %v3359
    %3393 = vmatprep.subr.bf16.mxu0 0
    %3394 = vmatpush1.bf16.msra.mxu0 %v3360
    %3395 = vmatprep.subr.bf16.mxu0 0
    %3396 = vmatpush1.bf16.msra.mxu0 %v3361
    %3397 = vmatprep.subr.bf16.mxu0 0
    %3398 = vmatpush1.bf16.msra.mxu0 %v3362
    %3399 = vmatprep.subr.bf16.mxu0 0
    %3400 = vmatpush1.bf16.msra.mxu0 %v3363
    %3401 = vmatprep.subr.bf16.mxu0 0
    %3402 = vmatpush1.bf16.msra.mxu0 %v3364
    %3403 = vmatprep.subr.bf16.mxu0 0
    %3404 = vmatpush1.bf16.msra.mxu0 %v3365
    %3405 = vmatprep.subr.bf16.mxu0 0
    %3406 = vmatpush1.bf16.msra.mxu0 %v3366
    %3407 = vmatprep.subr.bf16.mxu0 0
    %3408 = vmatpush1.bf16.msra.mxu0 %v3367
    %3409 = vmatprep.subr.bf16.mxu0 0
    %3410 = vmatpush1.bf16.msra.mxu0 %v3368
    %3411 = vmatprep.subr.bf16.mxu0 0
    %3412 = vmatpush1.bf16.msra.mxu0 %v3369
    %3413 = vmatprep.subr.bf16.mxu0 0
    %3414 = vmatpush1.bf16.msra.mxu0 %v3370
    %3415 = vmatprep.subr.bf16.mxu0 0
    %3416 = vmatpush1.bf16.msra.mxu0 %v3371
    %3417 = vmatprep.subr.bf16.mxu0 0
    %3418 = vmatpush1.bf16.msra.mxu0 %v3372
    %3419 = vmatprep.subr.bf16.mxu0 0
    %3420 = vmatpush1.bf16.msra.mxu0 %v3373
    %3421 = vmatprep.subr.bf16.mxu0 0
    %3422 = vmatpush1.bf16.msra.mxu0 %v3374
    %3423 = vmatprep.mubr.bf16.mxu0 %v3255
    %3424 = vmatmul.mubr.bf16.gmra.mrb[0].mxu0 %v3254
    %v3425 = vpop.f32.mrb[0].mxu0
    %v3426 = vadd.f32 %v3293, %v3425
    %v3427 = vpop.f32.mrb[0].mxu0
    %v3428 = vpop.f32.mrb[0].mxu0
    %v3429 = vpop.f32.mrb[0].mxu0
    %3430 = vdwg.mxu0
    %v3431 = vmul.f32 %v3426, 0.01
    %v3432 = vmax.f32 %v3426, %v3431
    %v3433 = vpack.c.bf16 %v3432, %v3432
    %v3434 = vld [vmem:[%s8 + $0x10] sm:$0x1]
    %v3435 = vld [vmem:[#allocation14] sm:$0xf]
    %v3436 = vld [vmem:[#allocation14 + $0x4] sm:$0xf]
    %v3437 = vld [vmem:[#allocation14 + $0x8] sm:$0xf]
    %v3438 = vld [vmem:[#allocation14 + $0xc] sm:$0xf]
    %v3439 = vld [vmem:[#allocation14 + $0x10] sm:$0xf]
    %v3440 = vld [vmem:[#allocation14 + $0x14] sm:$0xf]
    %v3441 = vld [vmem:[#allocation14 + $0x18] sm:$0xf]
    %v3442 = vld [vmem:[#allocation14 + $0x1c] sm:$0xf]
    %v3443 = vld [vmem:[#allocation14 + $0x20] sm:$0xf]
    %v3444 = vld [vmem:[#allocation14 + $0x24] sm:$0xf]
    %v3445 = vld [vmem:[#allocation14 + $0x28] sm:$0xf]
    %v3446 = vld [vmem:[#allocation14 + $0x2c] sm:$0xf]
    %v3447 = vld [vmem:[#allocation14 + $0x30] sm:$0xf]
    %v3448 = vld [vmem:[#allocation14 + $0x34] sm:$0xf]
    %v3449 = vld [vmem:[#allocation14 + $0x38] sm:$0xf]
    %v3450 = vld [vmem:[#allocation14 + $0x3c] sm:$0xf]
    %v3452 = vlaneseq
    %v3453 = vshrl.u32 %v3452, 7
    %v3454 = vsub.s32 0, %v3453
    %v3455 = vrot.slane %v3434, %v3454
    %v3473 = vunpack.c.l.b16 %v3435
    %v3474 = vunpack.c.l.b16 %v3436
    %v3475 = vunpack.c.l.b16 %v3437
    %v3476 = vunpack.c.l.b16 %v3438
    %v3477 = vunpack.c.l.b16 %v3439
    %v3478 = vunpack.c.l.b16 %v3440
    %v3479 = vunpack.c.l.b16 %v3441
    %v3480 = vunpack.c.l.b16 %v3442
    %v3481 = vunpack.c.l.b16 %v3443
    %v3482 = vunpack.c.l.b16 %v3444
    %v3483 = vunpack.c.l.b16 %v3445
    %v3484 = vunpack.c.l.b16 %v3446
    %v3485 = vunpack.c.l.b16 %v3447
    %v3486 = vunpack.c.l.b16 %v3448
    %v3487 = vunpack.c.l.b16 %v3449
    %v3488 = vunpack.c.l.b16 %v3450
    %v3489 = vpack.c.b16 %v3474, %v3473
    %v3490 = vpack.c.b16 %v3476, %v3475
    %v3491 = vpack.c.b16 %v3478, %v3477
    %v3492 = vpack.c.b16 %v3480, %v3479
    %v3493 = vpack.c.b16 %v3482, %v3481
    %v3494 = vpack.c.b16 %v3484, %v3483
    %v3495 = vpack.c.b16 %v3486, %v3485
    %v3496 = vpack.c.b16 %v3488, %v3487
    %3505 = vmatprep.subr.bf16.mxu0 0
    %3506 = vmatpush1.bf16.msra.mxu0 %v3489
    %3507 = vmatprep.subr.bf16.mxu0 0
    %3508 = vmatpush1.bf16.msra.mxu0 %v3490
    %3509 = vmatprep.subr.bf16.mxu0 0
    %3510 = vmatpush1.bf16.msra.mxu0 %v3491
    %3511 = vmatprep.subr.bf16.mxu0 0
    %3512 = vmatpush1.bf16.msra.mxu0 %v3492
    %3513 = vmatprep.subr.bf16.mxu0 0
    %3514 = vmatpush1.bf16.msra.mxu0 %v3493
    %3515 = vmatprep.subr.bf16.mxu0 0
    %3516 = vmatpush1.bf16.msra.mxu0 %v3494
    %3517 = vmatprep.subr.bf16.mxu0 0
    %3518 = vmatpush1.bf16.msra.mxu0 %v3495
    %3519 = vmatprep.subr.bf16.mxu0 0
    %3520 = vmatpush1.bf16.msra.mxu0 %v3496
    %3521 = vmatprep.subr.bf16.mxu0 0
    %3522 = vmatpush1.bf16.msra.mxu0 0
    %3523 = vmatprep.subr.bf16.mxu0 0
    %3524 = vmatpush1.bf16.msra.mxu0 0
    %3525 = vmatprep.subr.bf16.mxu0 0
    %3526 = vmatpush1.bf16.msra.mxu0 0
    %3527 = vmatprep.subr.bf16.mxu0 0
    %3528 = vmatpush1.bf16.msra.mxu0 0
    %3529 = vmatprep.subr.bf16.mxu0 0
    %3530 = vmatpush1.bf16.msra.mxu0 0
    %3531 = vmatprep.subr.bf16.mxu0 0
    %3532 = vmatpush1.bf16.msra.mxu0 0
    %3533 = vmatprep.subr.bf16.mxu0 0
    %3534 = vmatpush1.bf16.msra.mxu0 0
    %3535 = vmatprep.subr.bf16.mxu0 0
    %3536 = vmatpush1.bf16.msra.mxu0 0
    %3537 = vmatprep.mubr.bf16.mxu0 0
    %3538 = vmatmul.mubr.bf16.gmra.mrb[0].mxu0 %v3433
    %v3539 = vpop.f32.mrb[0].mxu0
    %v3540 = vadd.f32 %v3455, %v3539
    %v3541 = vpop.f32.mrb[0].mxu0
    %v3542 = vpop.f32.mrb[0].mxu0
    %v3543 = vpop.f32.mrb[0].mxu0
    %3544 = vdwg.mxu0
    %3545 = vst [vmem:[#allocation16] sm:$0xff] %v3432
    %3546 = vst [vmem:[#allocation17] sm:$0xff] %v3540
    // Predicated region
    $region70: #{tpu_custom_call.1} parent=1 // pred_check
      _
    $region71: #{tpu_custom_call.1} parent=1 // pred_check_branch
      %3548 = sbr.rel (0) target = $region73
    $region72: #{tpu_custom_call.1} parent=1 // pred_region
      %s3550 = ssub.s32 128, 128
      %3551 = vsyncadd [#allocation4], %s3550
      %s3553 = sshll.u32 [#allocation16], 4
      %s3554 = int_to_ptr.vmem [resolvable:$true] %s3553
      %3556 = dma.vmem_to_hbm [thread:$0]  %s3554, 128, %s9, [#allocation4]
    $region73: #{tpu_custom_call.1} parent=1 // pred_fallthru
      _
    // Predicated region
    $region74: #{tpu_custom_call.1} parent=1 // pred_check
      _
    $region75: #{tpu_custom_call.1} parent=1 // pred_check_branch
      %3558 = sbr.rel (0) target = $region77
    $region76: #{tpu_custom_call.1} parent=1 // pred_region
      %s3560 = ssub.s32 128, 128
      %3561 = vsyncadd [#allocation18], %s3560
      %s3563 = sshll.u32 [#allocation17], 4
      %s3564 = int_to_ptr.vmem [resolvable:$true] %s3563
      %3566 = dma.vmem_to_hbm [thread:$0]  %s3564, 128, %s10, [#allocation18]
    $region77: #{tpu_custom_call.1} parent=1 // pred_fallthru
      _
    // Predicated region
    $region78: #{tpu_custom_call.1} parent=1 // pred_check
      _
    $region79: #{tpu_custom_call.1} parent=1 // pred_check_branch
      %3568 = sbr.rel (0) target = $region81
    $region80: #{tpu_custom_call.1} parent=1 // pred_region
      %3569 = dma.done [#allocation4], 128
    $region81: #{tpu_custom_call.1} parent=1 // pred_fallthru
      _
    // Predicated region
    $region82: #{tpu_custom_call.1} parent=1 // pred_check
      _
    $region83: #{tpu_custom_call.1} parent=1 // pred_check_branch
      %3571 = sbr.rel (0) target = $region85
    $region84: #{tpu_custom_call.1} parent=1 // pred_region
      %3572 = dma.done [#allocation18], 128
    $region85: #{tpu_custom_call.1} parent=1 // pred_fallthru
      _
    %3573 = vsyncpa [#allocation3], 1
    %3574 = vsyncpa [#allocation6], 1
    %3575 = vsyncpa [#allocation9], 1
    %3576 = vsyncpa [#allocation12], 1
    %3577 = vsyncpa [#allocation15], 1
    %3578 = vsyncpa [#allocation4], 1
    %3579 = vsyncpa [#allocation18], 1

</llo_original>
